<compile_context>
chip_gen: v6e
topology: v6e:2x2x1
jax: 0.10.0
libtpu: 0.0.40
codegen_flags: <defaults>
</compile_context>

<pallas_src>
import numpy as np
import jax
import jax.numpy as jnp
from jax.experimental import pallas as pl
from jax.experimental.pallas import tpu as pltpu

D_IN = 286            # depth implied by the hard-coded reshape to (1, 9, 13, 25)
H_IN, W_IN = 13, 25
HW = H_IN * W_IN      # 325 -> TPU lane axis for the whole network

# conv1 (4x4 kernel) tap offsets in the flat lane space (lane = h*25 + w)
_OFFS3 = tuple(kh * 25 + kw for kh in range(4) for kw in range(4))
# conv2 (2x2 kernel) tap offsets in the sparse pooled lane space (lane = 50*ph + 2*pw)
_OFFS4 = (0, 2, 50, 52)

# ---- trace-time (numpy) index tables for the banded conv3d weight matrices ----
# conv3d_1 (k=11, stride 5) fused with its MaxPool3d((2,1,1)): two pool taps g.
_G1, _O1, _P1, _I1, _K1 = np.meshgrid(np.arange(2), np.arange(4), np.arange(28),
                                      np.arange(4), np.arange(11), indexing="ij")
_ROWS1 = (_G1 * 112 + _O1 * 28 + _P1).ravel().astype(np.int32)
_COLS1 = (_I1 * D_IN + 10 * _P1 + 5 * _G1 + _K1).ravel().astype(np.int32)
_O1F, _I1F, _K1F = (a.ravel().astype(np.int32) for a in (_O1, _I1, _K1))

# conv3d_2 (k=11, stride 1) fused with its MaxPool3d((2,1,1)).
_G2, _P2, _I2, _K2 = np.meshgrid(np.arange(2), np.arange(9), np.arange(4),
                                 np.arange(11), indexing="ij")
_ROWS2 = (_G2 * 9 + _P2).ravel().astype(np.int32)
_COLS2 = (_I2 * 28 + 2 * _P2 + _G2 + _K2).ravel().astype(np.int32)
_I2F, _K2F = (a.ravel().astype(np.int32) for a in (_I2, _K2))

# fc1 flatten remap: p4[c, qh, qw] lives at lane 100*qh + 4*qw of a (2, 117) slab.
_JLANE = (100 * (np.arange(10) // 5) + 4 * (np.arange(10) % 5)).astype(np.int32)


# ----------------------------------------------------------------------------
# The single fused kernel: conv3d_1 -> pool -> conv3d_2 -> pool -> conv1 ->
# pool -> conv2 -> pool -> fc1 -> fc2, entirely VMEM-resident.
# ----------------------------------------------------------------------------
def _net_kernel(x_ref, w1_ref, b1_ref, w2_ref, b2_ref,
                wc1_ref, bc1_ref, wc2_ref, bc2_ref,
                wf1a_ref, wf1b_ref, bf1_ref, wf2_ref, bf2_ref, o_ref):
    f32 = jnp.float32
    x = x_ref[...]                                                    # (1144, 325)

    # conv3d_1 (k=11, stride 5) + ReLU + MaxPool3d(2,1,1) as one banded matmul.
    # Rows 0:112 = pool tap g=0, rows 112:224 = tap g=1, each indexed (o*28 + p).
    z1 = jnp.dot(w1_ref[...], x, preferred_element_type=f32)          # (224, 325)
    p1 = jnp.maximum(jnp.maximum(z1[0:112, :], z1[112:224, :]) + b1_ref[...], 0.0)

    # conv3d_2 (k=11, stride 1) + ReLU + MaxPool3d(2,1,1) as one banded matmul.
    z2 = jnp.dot(w2_ref[...], p1, preferred_element_type=f32)         # (18, 325)
    a2 = jnp.maximum(jnp.maximum(z2[0:9, :], z2[9:18, :]) + b2_ref[...], 0.0)
    # a2 == torch.reshape(x, (1, 9, 13, 25))[0] flattened to (9, 325), lane = h*25+w

    # conv1 (Conv2d 9->4, k=4) + ReLU + MaxPool2d(2): im2col via static lane shifts.
    p3 = jnp.concatenate([a2[:, t:t + 247] for t in _OFFS3], axis=0)  # (144, 247)
    y3 = jnp.dot(wc1_ref[...], p3, preferred_element_type=f32)        # (4, 247)
    m3 = jnp.maximum(jnp.maximum(y3[:, 0:221], y3[:, 1:222]),
                     jnp.maximum(y3[:, 25:246], y3[:, 26:247]))       # 2x2 max-pool
    q3 = jnp.maximum(m3 + bc1_ref[...], 0.0)      # (4, 221); valid at lane 50*ph+2*pw

    # conv2 (Conv2d 4->2, k=2) + ReLU + MaxPool2d(2) on the sparse-lane layout.
    p4 = jnp.concatenate([q3[:, t:t + 169] for t in _OFFS4], axis=0)  # (16, 169)
    y4 = jnp.dot(wc2_ref[...], p4, preferred_element_type=f32)        # (2, 169)
    m4 = jnp.maximum(jnp.maximum(y4[:, 0:117], y4[:, 2:119]),
                     jnp.maximum(y4[:, 50:167], y4[:, 52:169]))       # 2x2 max-pool
    q4 = jnp.maximum(m4 + bc2_ref[...], 0.0)      # (2, 117); valid at lane 100*qh+4*qw

    # fc1 (flatten + per-channel selection folded into wf1a / wf1b) + ReLU, fc2.
    h = jnp.dot(q4[0:1, :], wf1a_ref[...], preferred_element_type=f32)
    h = h + jnp.dot(q4[1:2, :], wf1b_ref[...], preferred_element_type=f32)
    h = jnp.maximum(h + bf1_ref[...], 0.0)                            # (1, 20)
    out = jnp.dot(h, wf2_ref[...], preferred_element_type=f32) + bf2_ref[...]
    o_ref[...] = out.astype(o_ref.dtype)


# ----------------------------------------------------------------------------
# Weight repacking (tiny plain-JAX glue, a few KB of work per call).
# ----------------------------------------------------------------------------
def _pack_params(params):
    (w1, b1, w2, b2, wc1, bc1, wc2, bc2, wf1, bf1, wf2, bf2) = params
    f32 = jnp.float32

    # Banded matrix for conv3d_1 + its two pool taps.
    w1f = w1.reshape(4, 4, 11).astype(f32)
    w1b = jnp.zeros((224, 4 * D_IN), f32).at[_ROWS1, _COLS1].set(w1f[_O1F, _I1F, _K1F])
    b1r = jnp.repeat(b1.astype(f32), 28).reshape(112, 1)

    # Banded matrix for conv3d_2 + its two pool taps.
    w2f = w2.reshape(4, 11).astype(f32)
    w2b = jnp.zeros((18, 112), f32).at[_ROWS2, _COLS2].set(w2f[_I2F, _K2F])
    b2r = b2.reshape(1, 1).astype(f32)

    # 2-D conv weights reordered to (o, (kh,kw)-tap * Cin + i).
    wc1m = jnp.transpose(wc1, (0, 2, 3, 1)).reshape(4, 144).astype(f32)
    bc1r = bc1.reshape(4, 1).astype(f32)
    wc2m = jnp.transpose(wc2, (0, 2, 3, 1)).reshape(2, 16).astype(f32)
    bc2r = bc2.reshape(2, 1).astype(f32)

    # fc1 with the flatten of the sparse-lane pooled layout folded in.
    wf1a = jnp.zeros((117, 20), f32).at[_JLANE, :].set(wf1[:, 0:10].T.astype(f32))
    wf1b = jnp.zeros((117, 20), f32).at[_JLANE, :].set(wf1[:, 10:20].T.astype(f32))
    bf1r = bf1.reshape(1, 20).astype(f32)
    wf2t = wf2.T.astype(f32)                       # (20, 1)
    bf2r = bf2.reshape(1, 1).astype(f32)

    return (w1b, b1r, w2b, b2r, wc1m, bc1r, wc2m, bc2r,
            wf1a, wf1b, bf1r, wf2t, bf2r)


# ----------------------------------------------------------------------------
# Full forward pass: one pallas_call, grid=() (whole net is one VMEM block,
# ~2.6 MB of inputs -> far under the scoped VMEM limit, no pipelining needed).
# ----------------------------------------------------------------------------
def net_forward(x, params):
    packed = _pack_params(params)
    x_flat = x.reshape(4 * D_IN, HW).astype(jnp.float32)   # free row-major merge
    vmem = pl.BlockSpec(memory_space=pltpu.MemorySpace.VMEM)
    out = pl.pallas_call(
        _net_kernel,
        out_shape=jax.ShapeDtypeStruct((1, 1), jnp.float32),
        in_specs=[vmem] * (1 + len(packed)),
        out_specs=vmem,
    )(x_flat, *packed)
    return out


# ----------------------------------------------------------------------------
# Deterministic parameter init (PyTorch-style U(-1/sqrt(fan_in), +1/sqrt(fan_in)))
# ----------------------------------------------------------------------------
def init_params(key):
    def layer(k, shape, fan_in):
        kw, kb = jax.random.split(k)
        bound = float(1.0 / np.sqrt(fan_in))
        w = jax.random.uniform(kw, shape, jnp.float32, -bound, bound)
        b = jax.random.uniform(kb, (shape[0],), jnp.float32, -bound, bound)
        return w, b

    ks = jax.random.split(key, 6)
    w1, b1 = layer(ks[0], (4, 4, 11, 1, 1), 4 * 11)
    w2, b2 = layer(ks[1], (1, 4, 11, 1, 1), 4 * 11)
    wc1, bc1 = layer(ks[2], (4, 9, 4, 4), 9 * 4 * 4)
    wc2, bc2 = layer(ks[3], (2, 4, 2, 2), 4 * 2 * 2)
    wf1, bf1 = layer(ks[4], (20, 20), 20)
    wf2, bf2 = layer(ks[5], (1, 20), 20)
    return (w1, b1, w2, b2, wc1, bc1, wc2, bc2, wf1, bf1, wf2, bf2)


# ----------------------------------------------------------------------------
# Pure numpy reference (mirrors the PyTorch forward exactly)
# ----------------------------------------------------------------------------
def reference_forward(x, params):
    (w1, b1, w2, b2, wc1, bc1, wc2, bc2, wf1, bf1, wf2, bf2) = [
        np.asarray(p, np.float64) for p in params]
    x = np.asarray(x, np.float64)[0]                   # (4, 286, 13, 25)

    y1 = np.zeros((4, 56, 13, 25))
    for d in range(56):
        patch = x[:, 5 * d:5 * d + 11]
        y1[:, d] = np.einsum('oik,ikhw->ohw', w1[:, :, :, 0, 0], patch) + b1[:, None, None]
    y1 = np.maximum(y1, 0.0)
    p1 = np.maximum(y1[:, 0::2], y1[:, 1::2])          # (4, 28, 13, 25)

    y2 = np.zeros((1, 18, 13, 25))
    for d in range(18):
        patch = p1[:, d:d + 11]
        y2[:, d] = np.einsum('oik,ikhw->ohw', w2[:, :, :, 0, 0], patch) + b2[:, None, None]
    y2 = np.maximum(y2, 0.0)
    p2 = np.maximum(y2[:, 0::2], y2[:, 1::2])          # (1, 9, 13, 25)
    a = p2.reshape(9, 13, 25)

    y3 = np.zeros((4, 10, 22))
    for oh in range(10):
        for ow in range(22):
            y3[:, oh, ow] = np.einsum('oihw,ihw->o', wc1, a[:, oh:oh + 4, ow:ow + 4]) + bc1
    y3 = np.maximum(y3, 0.0)
    p3 = y3.reshape(4, 5, 2, 11, 2).max(axis=(2, 4))   # (4, 5, 11)

    y4 = np.zeros((2, 4, 10))
    for oh in range(4):
        for ow in range(10):
            y4[:, oh, ow] = np.einsum('oihw,ihw->o', wc2, p3[:, oh:oh + 2, ow:ow + 2]) + bc2
    y4 = np.maximum(y4, 0.0)
    p4 = y4.reshape(2, 2, 2, 5, 2).max(axis=(2, 4))    # (2, 2, 5)

    v = p4.reshape(1, 20)
    h = np.maximum(v @ wf1.T + bf1, 0.0)
    return h @ wf2.T + bf2                             # (1, 1)


if __name__ == "__main__":
    key = jax.random.PRNGKey(0)
    kx, kp = jax.random.split(key)
    x = jax.random.normal(kx, (1, 4, D_IN, H_IN, W_IN), jnp.float32)
    params = init_params(kp)

    out = jax.jit(net_forward)(x, params)
    out = jax.block_until_ready(out)

    assert out.shape == (1, 1)
    ref = reference_forward(np.asarray(x), [np.asarray(p) for p in params])
    np.testing.assert_allclose(np.asarray(out), ref, rtol=1e-3, atol=5e-4)
    print("KERNEL_OK")
</pallas_src>

<mosaic_0001>
module attributes {stable_mosaic.version = 11 : i64} {
  func.func @_net_kernel(%arg0: memref<1144x325xf32, #tpu.memory_space<vmem>>, %arg1: memref<224x1144xf32, #tpu.memory_space<vmem>>, %arg2: memref<112x1xf32, #tpu.memory_space<vmem>>, %arg3: memref<18x112xf32, #tpu.memory_space<vmem>>, %arg4: memref<1x1xf32, #tpu.memory_space<vmem>>, %arg5: memref<4x144xf32, #tpu.memory_space<vmem>>, %arg6: memref<4x1xf32, #tpu.memory_space<vmem>>, %arg7: memref<2x16xf32, #tpu.memory_space<vmem>>, %arg8: memref<2x1xf32, #tpu.memory_space<vmem>>, %arg9: memref<117x20xf32, #tpu.memory_space<vmem>>, %arg10: memref<117x20xf32, #tpu.memory_space<vmem>>, %arg11: memref<1x20xf32, #tpu.memory_space<vmem>>, %arg12: memref<20x1xf32, #tpu.memory_space<vmem>>, %arg13: memref<1x1xf32, #tpu.memory_space<vmem>>, %arg14: memref<1x1xf32, #tpu.memory_space<vmem>>) attributes {dimension_semantics = [], scalar_prefetch = 0 : i64, scratch_operands = 0 : i64, tpu.core_type = #tpu.core_type<tc>} {
    %c0 = arith.constant 0 : index
    %c0_0 = arith.constant 0 : index
    %0 = vector.load %arg0[%c0, %c0_0] : memref<1144x325xf32, #tpu.memory_space<vmem>>, vector<1144x325xf32>
    %c0_1 = arith.constant 0 : index
    %c0_2 = arith.constant 0 : index
    %1 = vector.load %arg1[%c0_1, %c0_2] : memref<224x1144xf32, #tpu.memory_space<vmem>>, vector<224x1144xf32>
    %cst = arith.constant dense<0.000000e+00> : vector<224x325xf32>
    %2 = tpu.matmul %1, %0, %cst {dimension_numbers = #tpu.dot_dimension_numbers<[1], [0], [0], [1], [0, 0, 1, 1], [], []>} : vector<224x1144xf32>, vector<1144x325xf32>, vector<224x325xf32> -> vector<224x325xf32>
    %3 = vector.extract_strided_slice %2 {offsets = [0, 0], sizes = [112, 325], strides = [1, 1]} : vector<224x325xf32> to vector<112x325xf32>
    %4 = vector.extract_strided_slice %2 {offsets = [112, 0], sizes = [112, 325], strides = [1, 1]} : vector<224x325xf32> to vector<112x325xf32>
    %5 = arith.maximumf %3, %4 : vector<112x325xf32>
    %c0_3 = arith.constant 0 : index
    %c0_4 = arith.constant 0 : index
    %6 = vector.load %arg2[%c0_3, %c0_4] : memref<112x1xf32, #tpu.memory_space<vmem>>, vector<112x1xf32>
    %7 = vector.broadcast %6 : vector<112x1xf32> to vector<112x325xf32>
    %8 = arith.addf %5, %7 : vector<112x325xf32>
    %cst_5 = arith.constant 0.000000e+00 : f32
    %9 = vector.broadcast %cst_5 : f32 to vector<112x325xf32>
    %10 = arith.maximumf %8, %9 : vector<112x325xf32>
    %c0_6 = arith.constant 0 : index
    %c0_7 = arith.constant 0 : index
    %11 = vector.load %arg3[%c0_6, %c0_7] : memref<18x112xf32, #tpu.memory_space<vmem>>, vector<18x112xf32>
    %cst_8 = arith.constant dense<0.000000e+00> : vector<18x325xf32>
    %12 = tpu.matmul %11, %10, %cst_8 {dimension_numbers = #tpu.dot_dimension_numbers<[1], [0], [0], [1], [0, 0, 1, 1], [], []>} : vector<18x112xf32>, vector<112x325xf32>, vector<18x325xf32> -> vector<18x325xf32>
    %13 = vector.extract_strided_slice %12 {offsets = [0, 0], sizes = [9, 325], strides = [1, 1]} : vector<18x325xf32> to vector<9x325xf32>
    %14 = vector.extract_strided_slice %12 {offsets = [9, 0], sizes = [9, 325], strides = [1, 1]} : vector<18x325xf32> to vector<9x325xf32>
    %15 = arith.maximumf %13, %14 : vector<9x325xf32>
    %c0_9 = arith.constant 0 : index
    %c0_10 = arith.constant 0 : index
    %16 = vector.load %arg4[%c0_9, %c0_10] : memref<1x1xf32, #tpu.memory_space<vmem>>, vector<1x1xf32>
    %17 = vector.broadcast %16 : vector<1x1xf32> to vector<9x325xf32>
    %18 = arith.addf %15, %17 : vector<9x325xf32>
    %cst_11 = arith.constant 0.000000e+00 : f32
    %19 = vector.broadcast %cst_11 : f32 to vector<9x325xf32>
    %20 = arith.maximumf %18, %19 : vector<9x325xf32>
    %21 = vector.extract_strided_slice %20 {offsets = [0, 0], sizes = [9, 247], strides = [1, 1]} : vector<9x325xf32> to vector<9x247xf32>
    %22 = vector.extract_strided_slice %20 {offsets = [0, 1], sizes = [9, 247], strides = [1, 1]} : vector<9x325xf32> to vector<9x247xf32>
    %23 = vector.extract_strided_slice %20 {offsets = [0, 2], sizes = [9, 247], strides = [1, 1]} : vector<9x325xf32> to vector<9x247xf32>
    %24 = vector.extract_strided_slice %20 {offsets = [0, 3], sizes = [9, 247], strides = [1, 1]} : vector<9x325xf32> to vector<9x247xf32>
    %25 = vector.extract_strided_slice %20 {offsets = [0, 25], sizes = [9, 247], strides = [1, 1]} : vector<9x325xf32> to vector<9x247xf32>
    %26 = vector.extract_strided_slice %20 {offsets = [0, 26], sizes = [9, 247], strides = [1, 1]} : vector<9x325xf32> to vector<9x247xf32>
    %27 = vector.extract_strided_slice %20 {offsets = [0, 27], sizes = [9, 247], strides = [1, 1]} : vector<9x325xf32> to vector<9x247xf32>
    %28 = vector.extract_strided_slice %20 {offsets = [0, 28], sizes = [9, 247], strides = [1, 1]} : vector<9x325xf32> to vector<9x247xf32>
    %29 = vector.extract_strided_slice %20 {offsets = [0, 50], sizes = [9, 247], strides = [1, 1]} : vector<9x325xf32> to vector<9x247xf32>
    %30 = vector.extract_strided_slice %20 {offsets = [0, 51], sizes = [9, 247], strides = [1, 1]} : vector<9x325xf32> to vector<9x247xf32>
    %31 = vector.extract_strided_slice %20 {offsets = [0, 52], sizes = [9, 247], strides = [1, 1]} : vector<9x325xf32> to vector<9x247xf32>
    %32 = vector.extract_strided_slice %20 {offsets = [0, 53], sizes = [9, 247], strides = [1, 1]} : vector<9x325xf32> to vector<9x247xf32>
    %33 = vector.extract_strided_slice %20 {offsets = [0, 75], sizes = [9, 247], strides = [1, 1]} : vector<9x325xf32> to vector<9x247xf32>
    %34 = vector.extract_strided_slice %20 {offsets = [0, 76], sizes = [9, 247], strides = [1, 1]} : vector<9x325xf32> to vector<9x247xf32>
    %35 = vector.extract_strided_slice %20 {offsets = [0, 77], sizes = [9, 247], strides = [1, 1]} : vector<9x325xf32> to vector<9x247xf32>
    %36 = vector.extract_strided_slice %20 {offsets = [0, 78], sizes = [9, 247], strides = [1, 1]} : vector<9x325xf32> to vector<9x247xf32>
    %37 = tpu.concatenate %21, %22, %23, %24, %25, %26, %27, %28, %29, %30, %31, %32, %33, %34, %35, %36 in 0 : vector<9x247xf32>, vector<9x247xf32>, vector<9x247xf32>, vector<9x247xf32>, vector<9x247xf32>, vector<9x247xf32>, vector<9x247xf32>, vector<9x247xf32>, vector<9x247xf32>, vector<9x247xf32>, vector<9x247xf32>, vector<9x247xf32>, vector<9x247xf32>, vector<9x247xf32>, vector<9x247xf32>, vector<9x247xf32> -> vector<144x247xf32>
    %c0_12 = arith.constant 0 : index
    %c0_13 = arith.constant 0 : index
    %38 = vector.load %arg5[%c0_12, %c0_13] : memref<4x144xf32, #tpu.memory_space<vmem>>, vector<4x144xf32>
    %cst_14 = arith.constant dense<0.000000e+00> : vector<4x247xf32>
    %39 = tpu.matmul %38, %37, %cst_14 {dimension_numbers = #tpu.dot_dimension_numbers<[1], [0], [0], [1], [0, 0, 1, 1], [], []>} : vector<4x144xf32>, vector<144x247xf32>, vector<4x247xf32> -> vector<4x247xf32>
    %40 = vector.extract_strided_slice %39 {offsets = [0, 0], sizes = [4, 221], strides = [1, 1]} : vector<4x247xf32> to vector<4x221xf32>
    %41 = vector.extract_strided_slice %39 {offsets = [0, 1], sizes = [4, 221], strides = [1, 1]} : vector<4x247xf32> to vector<4x221xf32>
    %42 = arith.maximumf %40, %41 : vector<4x221xf32>
    %43 = vector.extract_strided_slice %39 {offsets = [0, 25], sizes = [4, 221], strides = [1, 1]} : vector<4x247xf32> to vector<4x221xf32>
    %44 = vector.extract_strided_slice %39 {offsets = [0, 26], sizes = [4, 221], strides = [1, 1]} : vector<4x247xf32> to vector<4x221xf32>
    %45 = arith.maximumf %43, %44 : vector<4x221xf32>
    %46 = arith.maximumf %42, %45 : vector<4x221xf32>
    %c0_15 = arith.constant 0 : index
    %c0_16 = arith.constant 0 : index
    %47 = vector.load %arg6[%c0_15, %c0_16] : memref<4x1xf32, #tpu.memory_space<vmem>>, vector<4x1xf32>
    %48 = vector.broadcast %47 : vector<4x1xf32> to vector<4x221xf32>
    %49 = arith.addf %46, %48 : vector<4x221xf32>
    %cst_17 = arith.constant 0.000000e+00 : f32
    %50 = vector.broadcast %cst_17 : f32 to vector<4x221xf32>
    %51 = arith.maximumf %49, %50 : vector<4x221xf32>
    %52 = vector.extract_strided_slice %51 {offsets = [0, 0], sizes = [4, 169], strides = [1, 1]} : vector<4x221xf32> to vector<4x169xf32>
    %53 = vector.extract_strided_slice %51 {offsets = [0, 2], sizes = [4, 169], strides = [1, 1]} : vector<4x221xf32> to vector<4x169xf32>
    %54 = vector.extract_strided_slice %51 {offsets = [0, 50], sizes = [4, 169], strides = [1, 1]} : vector<4x221xf32> to vector<4x169xf32>
    %55 = vector.extract_strided_slice %51 {offsets = [0, 52], sizes = [4, 169], strides = [1, 1]} : vector<4x221xf32> to vector<4x169xf32>
    %56 = tpu.concatenate %52, %53, %54, %55 in 0 : vector<4x169xf32>, vector<4x169xf32>, vector<4x169xf32>, vector<4x169xf32> -> vector<16x169xf32>
    %c0_18 = arith.constant 0 : index
    %c0_19 = arith.constant 0 : index
    %57 = vector.load %arg7[%c0_18, %c0_19] : memref<2x16xf32, #tpu.memory_space<vmem>>, vector<2x16xf32>
    %cst_20 = arith.constant dense<0.000000e+00> : vector<2x169xf32>
    %58 = tpu.matmul %57, %56, %cst_20 {dimension_numbers = #tpu.dot_dimension_numbers<[1], [0], [0], [1], [0, 0, 1, 1], [], []>} : vector<2x16xf32>, vector<16x169xf32>, vector<2x169xf32> -> vector<2x169xf32>
    %59 = vector.extract_strided_slice %58 {offsets = [0, 0], sizes = [2, 117], strides = [1, 1]} : vector<2x169xf32> to vector<2x117xf32>
    %60 = vector.extract_strided_slice %58 {offsets = [0, 2], sizes = [2, 117], strides = [1, 1]} : vector<2x169xf32> to vector<2x117xf32>
    %61 = arith.maximumf %59, %60 : vector<2x117xf32>
    %62 = vector.extract_strided_slice %58 {offsets = [0, 50], sizes = [2, 117], strides = [1, 1]} : vector<2x169xf32> to vector<2x117xf32>
    %63 = vector.extract_strided_slice %58 {offsets = [0, 52], sizes = [2, 117], strides = [1, 1]} : vector<2x169xf32> to vector<2x117xf32>
    %64 = arith.maximumf %62, %63 : vector<2x117xf32>
    %65 = arith.maximumf %61, %64 : vector<2x117xf32>
    %c0_21 = arith.constant 0 : index
    %c0_22 = arith.constant 0 : index
    %66 = vector.load %arg8[%c0_21, %c0_22] : memref<2x1xf32, #tpu.memory_space<vmem>>, vector<2x1xf32>
    %67 = vector.broadcast %66 : vector<2x1xf32> to vector<2x117xf32>
    %68 = arith.addf %65, %67 : vector<2x117xf32>
    %cst_23 = arith.constant 0.000000e+00 : f32
    %69 = vector.broadcast %cst_23 : f32 to vector<2x117xf32>
    %70 = arith.maximumf %68, %69 : vector<2x117xf32>
    %71 = vector.extract_strided_slice %70 {offsets = [0, 0], sizes = [1, 117], strides = [1, 1]} : vector<2x117xf32> to vector<1x117xf32>
    %c0_24 = arith.constant 0 : index
    %c0_25 = arith.constant 0 : index
    %72 = vector.load %arg9[%c0_24, %c0_25] : memref<117x20xf32, #tpu.memory_space<vmem>>, vector<117x20xf32>
    %cst_26 = arith.constant dense<0.000000e+00> : vector<1x20xf32>
    %73 = tpu.matmul %71, %72, %cst_26 {dimension_numbers = #tpu.dot_dimension_numbers<[1], [0], [0], [1], [0, 0, 1, 1], [], []>} : vector<1x117xf32>, vector<117x20xf32>, vector<1x20xf32> -> vector<1x20xf32>
    %74 = vector.extract_strided_slice %70 {offsets = [1, 0], sizes = [1, 117], strides = [1, 1]} : vector<2x117xf32> to vector<1x117xf32>
    %c0_27 = arith.constant 0 : index
    %c0_28 = arith.constant 0 : index
    %75 = vector.load %arg10[%c0_27, %c0_28] : memref<117x20xf32, #tpu.memory_space<vmem>>, vector<117x20xf32>
    %cst_29 = arith.constant dense<0.000000e+00> : vector<1x20xf32>
    %76 = tpu.matmul %74, %75, %cst_29 {dimension_numbers = #tpu.dot_dimension_numbers<[1], [0], [0], [1], [0, 0, 1, 1], [], []>} : vector<1x117xf32>, vector<117x20xf32>, vector<1x20xf32> -> vector<1x20xf32>
    %77 = arith.addf %73, %76 : vector<1x20xf32>
    %c0_30 = arith.constant 0 : index
    %c0_31 = arith.constant 0 : index
    %78 = vector.load %arg11[%c0_30, %c0_31] : memref<1x20xf32, #tpu.memory_space<vmem>>, vector<1x20xf32>
    %79 = arith.addf %77, %78 : vector<1x20xf32>
    %cst_32 = arith.constant 0.000000e+00 : f32
    %80 = vector.broadcast %cst_32 : f32 to vector<1x20xf32>
    %81 = arith.maximumf %79, %80 : vector<1x20xf32>
    %c0_33 = arith.constant 0 : index
    %c0_34 = arith.constant 0 : index
    %82 = vector.load %arg12[%c0_33, %c0_34] : memref<20x1xf32, #tpu.memory_space<vmem>>, vector<20x1xf32>
    %cst_35 = arith.constant dense<0.000000e+00> : vector<1x1xf32>
    %83 = tpu.matmul %81, %82, %cst_35 {dimension_numbers = #tpu.dot_dimension_numbers<[1], [0], [0], [1], [0, 0, 1, 1], [], []>} : vector<1x20xf32>, vector<20x1xf32>, vector<1x1xf32> -> vector<1x1xf32>
    %c0_36 = arith.constant 0 : index
    %c0_37 = arith.constant 0 : index
    %84 = vector.load %arg13[%c0_36, %c0_37] : memref<1x1xf32, #tpu.memory_space<vmem>>, vector<1x1xf32>
    %85 = arith.addf %83, %84 : vector<1x1xf32>
    %c0_38 = arith.constant 0 : index
    %c0_39 = arith.constant 0 : index
    %86 = vector.load %arg14[%c0_38, %c0_39] : memref<1x1xf32, #tpu.memory_space<vmem>>, vector<1x1xf32>
    tpu.vector_store %arg14[%c0_38, %c0_39], %85 {strides = array<i32>} : memref<1x1xf32, #tpu.memory_space<vmem>>, vector<1x1xf32>,
    return
  }
}

</mosaic_0001>

<llo_original>
// kernel: net_forward.1
$region0: #{net_forward.1}
  #allocation0 [shape = 'u32[]', space=smem, size = 0x4, offset = 0x4, fixed_abs, tag = 'smem constant byte address 0x4 - core index']
  #allocation1 [shape = 'u32[144,128]{1,0:T(1,128)}', space=vmem, size = 0x12000, scoped, tag = 'internal scratch']
  #allocation2 [shape = 'f32[1,1]{1,0:T(1,128)S(1)}', space=vmem, size = 0x200, scoped, tag = 'scoped memory for net_forward.1']
  #allocation3 [shape = 'f32[1,1]{1,0:T(1,128)S(1)}', space=vmem, size = 0x200, scoped, tag = 'scoped memory for net_forward.1']
  %s0 = inlined_call_operand.vmem [shape: f32[1144,325], index: 0, kind: input, shape index: {}]
  %s1 = inlined_call_operand.vmem [shape: f32[224,1144], index: 1, kind: input, shape index: {}]
  %s2 = inlined_call_operand.vmem [shape: f32[112,1], index: 2, kind: input, shape index: {}]
  %s3 = inlined_call_operand.vmem [shape: f32[18,112], index: 3, kind: input, shape index: {}]
  %s4 = inlined_call_operand.<no memory space> [shape: f32[1,1], index: 4, kind: input, shape index: {}]
  %s5 = inlined_call_operand.vmem [shape: f32[4,144], index: 5, kind: input, shape index: {}]
  %s6 = inlined_call_operand.vmem [shape: f32[4,1], index: 6, kind: input, shape index: {}]
  %s7 = inlined_call_operand.vmem [shape: f32[2,16], index: 7, kind: input, shape index: {}]
  %s8 = inlined_call_operand.vmem [shape: f32[2,1], index: 8, kind: input, shape index: {}]
  %s9 = inlined_call_operand.vmem [shape: f32[117,20], index: 9, kind: input, shape index: {}]
  %s10 = inlined_call_operand.vmem [shape: f32[117,20], index: 10, kind: input, shape index: {}]
  %s11 = inlined_call_operand.vmem [shape: f32[1,20], index: 11, kind: input, shape index: {}]
  %s12 = inlined_call_operand.vmem [shape: f32[20,1], index: 12, kind: input, shape index: {}]
  %s13 = inlined_call_operand.<no memory space> [shape: f32[1,1], index: 13, kind: input, shape index: {}]
  %s14 = inlined_call_operand.hbm [shape: f32[1,1], index: 14, kind: output, shape index: {}]
  %s15 = sld [smem:[#allocation0]]
  $region66: #{net_forward.1} parent=0
    _
  %s17 = ssub.s32 1, %s15
  %s18 = scalar_select 0, %s17, %s15
  %v19 = vstv %s4
  %20 = vst [vmem:[#allocation2] sm:$0x1] %v19
  %v21 = vstv %s13
  %22 = vst [vmem:[#allocation3] sm:$0x1] %v21
  $region1: #{net_forward.1} parent=0
    #allocation4 [shape = 'u8[512]{0}', space=vmem, size = 0x400, scoped, tag = 'output window, operand 0, single buffered']
    #allocation5 [shape = 's32[1]{0}', space=sflag, size = 0x4, scoped, tag = 'scoped memory for net_forward.1']
    %23 = vsyncpa [#allocation5], 0
    // Predicated region
    $region2: #{net_forward.1} parent=1 // pred_check
      _
    $region3: #{net_forward.1} parent=1 // pred_check_branch
      %25 = sbr.rel (0) target = $region5
    $region4: #{net_forward.1} parent=1 // pred_region
      _
    $region5: #{net_forward.1} parent=1 // pred_fallthru
      _
    // Predicated region
    $region6: #{net_forward.1} parent=1 // pred_check
      _
    $region7: #{net_forward.1} parent=1 // pred_check_branch
      %27 = sbr.rel (0) target = $region9
    $region8: #{net_forward.1} parent=1 // pred_region
      _
    $region9: #{net_forward.1} parent=1 // pred_fallthru
      _
    // Predicated region
    $region10: #{net_forward.1} parent=1 // pred_check
      _
    $region11: #{net_forward.1} parent=1 // pred_check_branch
      %29 = sbr.rel (0) target = $region13
    $region12: #{net_forward.1} parent=1 // pred_region
      _
    $region13: #{net_forward.1} parent=1 // pred_fallthru
      _
    // Predicated region
    $region14: #{net_forward.1} parent=1 // pred_check
      _
    $region15: #{net_forward.1} parent=1 // pred_check_branch
      %31 = sbr.rel (0) target = $region17
    $region16: #{net_forward.1} parent=1 // pred_region
      _
    $region17: #{net_forward.1} parent=1 // pred_fallthru
      _
    // Predicated region
    $region18: #{net_forward.1} parent=1 // pred_check
      _
    $region19: #{net_forward.1} parent=1 // pred_check_branch
      %33 = sbr.rel (0) target = $region21
    $region20: #{net_forward.1} parent=1 // pred_region
      _
    $region21: #{net_forward.1} parent=1 // pred_fallthru
      _
    // Predicated region
    $region22: #{net_forward.1} parent=1 // pred_check
      _
    $region23: #{net_forward.1} parent=1 // pred_check_branch
      %35 = sbr.rel (0) target = $region25
    $region24: #{net_forward.1} parent=1 // pred_region
      _
    $region25: #{net_forward.1} parent=1 // pred_fallthru
      _
    // Predicated region
    $region26: #{net_forward.1} parent=1 // pred_check
      _
    $region27: #{net_forward.1} parent=1 // pred_check_branch
      %37 = sbr.rel (0) target = $region29
    $region28: #{net_forward.1} parent=1 // pred_region
      _
    $region29: #{net_forward.1} parent=1 // pred_fallthru
      _
    // Predicated region
    $region30: #{net_forward.1} parent=1 // pred_check
      _
    $region31: #{net_forward.1} parent=1 // pred_check_branch
      %39 = sbr.rel (0) target = $region33
    $region32: #{net_forward.1} parent=1 // pred_region
      _
    $region33: #{net_forward.1} parent=1 // pred_fallthru
      _
    // Predicated region
    $region34: #{net_forward.1} parent=1 // pred_check
      _
    $region35: #{net_forward.1} parent=1 // pred_check_branch
      %41 = sbr.rel (0) target = $region37
    $region36: #{net_forward.1} parent=1 // pred_region
      _
    $region37: #{net_forward.1} parent=1 // pred_fallthru
      _
    // Predicated region
    $region38: #{net_forward.1} parent=1 // pred_check
      _
    $region39: #{net_forward.1} parent=1 // pred_check_branch
      %43 = sbr.rel (0) target = $region41
    $region40: #{net_forward.1} parent=1 // pred_region
      _
    $region41: #{net_forward.1} parent=1 // pred_fallthru
      _
    // Predicated region
    $region42: #{net_forward.1} parent=1 // pred_check
      _
    $region43: #{net_forward.1} parent=1 // pred_check_branch
      %45 = sbr.rel (0) target = $region45
    $region44: #{net_forward.1} parent=1 // pred_region
      _
    $region45: #{net_forward.1} parent=1 // pred_fallthru
      _
    // Predicated region
    $region46: #{net_forward.1} parent=1 // pred_check
      _
    $region47: #{net_forward.1} parent=1 // pred_check_branch
      %47 = sbr.rel (0) target = $region49
    $region48: #{net_forward.1} parent=1 // pred_region
      _
    $region49: #{net_forward.1} parent=1 // pred_fallthru
      _
    // Predicated region
    $region50: #{net_forward.1} parent=1 // pred_check
      _
    $region51: #{net_forward.1} parent=1 // pred_check_branch
      %49 = sbr.rel (0) target = $region53
    $region52: #{net_forward.1} parent=1 // pred_region
      _
    $region53: #{net_forward.1} parent=1 // pred_fallthru
      _
    // Predicated region
    $region54: #{net_forward.1} parent=1 // pred_check
      _
    $region55: #{net_forward.1} parent=1 // pred_check_branch
      %51 = sbr.rel (0) target = $region57
    $region56: #{net_forward.1} parent=1 // pred_region
      _
    $region57: #{net_forward.1} parent=1 // pred_fallthru
      _
    %v52 = vld [vmem:[%s0] sm:$0xff]
    %v53 = vld [vmem:[%s0 + $0x8] sm:$0xff]
    %v54 = vld [vmem:[%s0 + $0x10] sm:$0xff]
    %v55 = vld [vmem:[%s0 + $0x18] sm:$0xff]
    %v56 = vld [vmem:[%s0 + $0x20] sm:$0xff]
    %v57 = vld [vmem:[%s0 + $0x28] sm:$0xff]
    %v58 = vld [vmem:[%s0 + $0x30] sm:$0xff]
    %v59 = vld [vmem:[%s0 + $0x38] sm:$0xff]
    %v60 = vld [vmem:[%s0 + $0x40] sm:$0xff]
    %v61 = vld [vmem:[%s0 + $0x48] sm:$0xff]
    %v62 = vld [vmem:[%s0 + $0x50] sm:$0xff]
    %v63 = vld [vmem:[%s0 + $0x58] sm:$0xff]
    %v64 = vld [vmem:[%s0 + $0x60] sm:$0xff]
    %v65 = vld [vmem:[%s0 + $0x68] sm:$0xff]
    %v66 = vld [vmem:[%s0 + $0x70] sm:$0xff]
    %v67 = vld [vmem:[%s0 + $0x78] sm:$0xff]
    %v68 = vld [vmem:[%s0 + $0x80] sm:$0xff]
    %v69 = vld [vmem:[%s0 + $0x88] sm:$0xff]
    %v70 = vld [vmem:[%s0 + $0x90] sm:$0xff]
    %v71 = vld [vmem:[%s0 + $0x98] sm:$0xff]
    %v72 = vld [vmem:[%s0 + $0xa0] sm:$0xff]
    %v73 = vld [vmem:[%s0 + $0xa8] sm:$0xff]
    %v74 = vld [vmem:[%s0 + $0xb0] sm:$0xff]
    %v75 = vld [vmem:[%s0 + $0xb8] sm:$0xff]
    %v76 = vld [vmem:[%s0 + $0xc0] sm:$0xff]
    %v77 = vld [vmem:[%s0 + $0xc8] sm:$0xff]
    %v78 = vld [vmem:[%s0 + $0xd0] sm:$0xff]
    %v79 = vld [vmem:[%s0 + $0xd8] sm:$0xff]
    %v80 = vld [vmem:[%s0 + $0xe0] sm:$0xff]
    %v81 = vld [vmem:[%s0 + $0xe8] sm:$0xff]
    %v82 = vld [vmem:[%s0 + $0xf0] sm:$0xff]
    %v83 = vld [vmem:[%s0 + $0xf8] sm:$0xff]
    %v84 = vld [vmem:[%s0 + $0x100] sm:$0xff]
    %v85 = vld [vmem:[%s0 + $0x108] sm:$0xff]
    %v86 = vld [vmem:[%s0 + $0x110] sm:$0xff]
    %v87 = vld [vmem:[%s0 + $0x118] sm:$0xff]
    %v88 = vld [vmem:[%s0 + $0x120] sm:$0xff]
    %v89 = vld [vmem:[%s0 + $0x128] sm:$0xff]
    %v90 = vld [vmem:[%s0 + $0x130] sm:$0xff]
    %v91 = vld [vmem:[%s0 + $0x138] sm:$0xff]
    %v92 = vld [vmem:[%s0 + $0x140] sm:$0xff]
    %v93 = vld [vmem:[%s0 + $0x148] sm:$0xff]
    %v94 = vld [vmem:[%s0 + $0x150] sm:$0xff]
    %v95 = vld [vmem:[%s0 + $0x158] sm:$0xff]
    %v96 = vld [vmem:[%s0 + $0x160] sm:$0xff]
    %v97 = vld [vmem:[%s0 + $0x168] sm:$0xff]
    %v98 = vld [vmem:[%s0 + $0x170] sm:$0xff]
    %v99 = vld [vmem:[%s0 + $0x178] sm:$0xff]
    %v100 = vld [vmem:[%s0 + $0x180] sm:$0xff]
    %v101 = vld [vmem:[%s0 + $0x188] sm:$0xff]
    %v102 = vld [vmem:[%s0 + $0x190] sm:$0xff]
    %v103 = vld [vmem:[%s0 + $0x198] sm:$0xff]
    %v104 = vld [vmem:[%s0 + $0x1a0] sm:$0xff]
    %v105 = vld [vmem:[%s0 + $0x1a8] sm:$0xff]
    %v106 = vld [vmem:[%s0 + $0x1b0] sm:$0xff]
    %v107 = vld [vmem:[%s0 + $0x1b8] sm:$0xff]
    %v108 = vld [vmem:[%s0 + $0x1c0] sm:$0xff]
    %v109 = vld [vmem:[%s0 + $0x1c8] sm:$0xff]
    %v110 = vld [vmem:[%s0 + $0x1d0] sm:$0xff]
    %v111 = vld [vmem:[%s0 + $0x1d8] sm:$0xff]
    %v112 = vld [vmem:[%s0 + $0x1e0] sm:$0xff]
    %v113 = vld [vmem:[%s0 + $0x1e8] sm:$0xff]
    %v114 = vld [vmem:[%s0 + $0x1f0] sm:$0xff]
    %v115 = vld [vmem:[%s0 + $0x1f8] sm:$0xff]
    %v116 = vld [vmem:[%s0 + $0x200] sm:$0xff]
    %v117 = vld [vmem:[%s0 + $0x208] sm:$0xff]
    %v118 = vld [vmem:[%s0 + $0x210] sm:$0xff]
    %v119 = vld [vmem:[%s0 + $0x218] sm:$0xff]
    %v120 = vld [vmem:[%s0 + $0x220] sm:$0xff]
    %v121 = vld [vmem:[%s0 + $0x228] sm:$0xff]
    %v122 = vld [vmem:[%s0 + $0x230] sm:$0xff]
    %v123 = vld [vmem:[%s0 + $0x238] sm:$0xff]
    %v124 = vld [vmem:[%s0 + $0x240] sm:$0xff]
    %v125 = vld [vmem:[%s0 + $0x248] sm:$0xff]
    %v126 = vld [vmem:[%s0 + $0x250] sm:$0xff]
    %v127 = vld [vmem:[%s0 + $0x258] sm:$0xff]
    %v128 = vld [vmem:[%s0 + $0x260] sm:$0xff]
    %v129 = vld [vmem:[%s0 + $0x268] sm:$0xff]
    %v130 = vld [vmem:[%s0 + $0x270] sm:$0xff]
    %v131 = vld [vmem:[%s0 + $0x278] sm:$0xff]
    %v132 = vld [vmem:[%s0 + $0x280] sm:$0xff]
    %v133 = vld [vmem:[%s0 + $0x288] sm:$0xff]
    %v134 = vld [vmem:[%s0 + $0x290] sm:$0xff]
    %v135 = vld [vmem:[%s0 + $0x298] sm:$0xff]
    %v136 = vld [vmem:[%s0 + $0x2a0] sm:$0xff]
    %v137 = vld [vmem:[%s0 + $0x2a8] sm:$0xff]
    %v138 = vld [vmem:[%s0 + $0x2b0] sm:$0xff]
    %v139 = vld [vmem:[%s0 + $0x2b8] sm:$0xff]
    %v140 = vld [vmem:[%s0 + $0x2c0] sm:$0xff]
    %v141 = vld [vmem:[%s0 + $0x2c8] sm:$0xff]
    %v142 = vld [vmem:[%s0 + $0x2d0] sm:$0xff]
    %v143 = vld [vmem:[%s0 + $0x2d8] sm:$0xff]
    %v144 = vld [vmem:[%s0 + $0x2e0] sm:$0xff]
    %v145 = vld [vmem:[%s0 + $0x2e8] sm:$0xff]
    %v146 = vld [vmem:[%s0 + $0x2f0] sm:$0xff]
    %v147 = vld [vmem:[%s0 + $0x2f8] sm:$0xff]
    %v148 = vld [vmem:[%s0 + $0x300] sm:$0xff]
    %v149 = vld [vmem:[%s0 + $0x308] sm:$0xff]
    %v150 = vld [vmem:[%s0 + $0x310] sm:$0xff]
    %v151 = vld [vmem:[%s0 + $0x318] sm:$0xff]
    %v152 = vld [vmem:[%s0 + $0x320] sm:$0xff]
    %v153 = vld [vmem:[%s0 + $0x328] sm:$0xff]
    %v154 = vld [vmem:[%s0 + $0x330] sm:$0xff]
    %v155 = vld [vmem:[%s0 + $0x338] sm:$0xff]
    %v156 = vld [vmem:[%s0 + $0x340] sm:$0xff]
    %v157 = vld [vmem:[%s0 + $0x348] sm:$0xff]
    %v158 = vld [vmem:[%s0 + $0x350] sm:$0xff]
    %v159 = vld [vmem:[%s0 + $0x358] sm:$0xff]
    %v160 = vld [vmem:[%s0 + $0x360] sm:$0xff]
    %v161 = vld [vmem:[%s0 + $0x368] sm:$0xff]
    %v162 = vld [vmem:[%s0 + $0x370] sm:$0xff]
    %v163 = vld [vmem:[%s0 + $0x378] sm:$0xff]
    %v164 = vld [vmem:[%s0 + $0x380] sm:$0xff]
    %v165 = vld [vmem:[%s0 + $0x388] sm:$0xff]
    %v166 = vld [vmem:[%s0 + $0x390] sm:$0xff]
    %v167 = vld [vmem:[%s0 + $0x398] sm:$0xff]
    %v168 = vld [vmem:[%s0 + $0x3a0] sm:$0xff]
    %v169 = vld [vmem:[%s0 + $0x3a8] sm:$0xff]
    %v170 = vld [vmem:[%s0 + $0x3b0] sm:$0xff]
    %v171 = vld [vmem:[%s0 + $0x3b8] sm:$0xff]
    %v172 = vld [vmem:[%s0 + $0x3c0] sm:$0xff]
    %v173 = vld [vmem:[%s0 + $0x3c8] sm:$0xff]
    %v174 = vld [vmem:[%s0 + $0x3d0] sm:$0xff]
    %v175 = vld [vmem:[%s0 + $0x3d8] sm:$0xff]
    %v176 = vld [vmem:[%s0 + $0x3e0] sm:$0xff]
    %v177 = vld [vmem:[%s0 + $0x3e8] sm:$0xff]
    %v178 = vld [vmem:[%s0 + $0x3f0] sm:$0xff]
    %v179 = vld [vmem:[%s0 + $0x3f8] sm:$0xff]
    %v180 = vld [vmem:[%s0 + $0x400] sm:$0xff]
    %v181 = vld [vmem:[%s0 + $0x408] sm:$0xff]
    %v182 = vld [vmem:[%s0 + $0x410] sm:$0xff]
    %v183 = vld [vmem:[%s0 + $0x418] sm:$0xff]
    %v184 = vld [vmem:[%s0 + $0x420] sm:$0xff]
    %v185 = vld [vmem:[%s0 + $0x428] sm:$0xff]
    %v186 = vld [vmem:[%s0 + $0x430] sm:$0xff]
    %v187 = vld [vmem:[%s0 + $0x438] sm:$0xff]
    %v188 = vld [vmem:[%s0 + $0x440] sm:$0xff]
    %v189 = vld [vmem:[%s0 + $0x448] sm:$0xff]
    %v190 = vld [vmem:[%s0 + $0x450] sm:$0xff]
    %v191 = vld [vmem:[%s0 + $0x458] sm:$0xff]
    %v192 = vld [vmem:[%s0 + $0x460] sm:$0xff]
    %v193 = vld [vmem:[%s0 + $0x468] sm:$0xff]
    %v194 = vld [vmem:[%s0 + $0x470] sm:$0xff]
    %v195 = vld [vmem:[%s0 + $0x478] sm:$0xff]
    %v196 = vld [vmem:[%s0 + $0x480] sm:$0xff]
    %v197 = vld [vmem:[%s0 + $0x488] sm:$0xff]
    %v198 = vld [vmem:[%s0 + $0x490] sm:$0xff]
    %v199 = vld [vmem:[%s0 + $0x498] sm:$0xff]
    %v200 = vld [vmem:[%s0 + $0x4a0] sm:$0xff]
    %v201 = vld [vmem:[%s0 + $0x4a8] sm:$0xff]
    %v202 = vld [vmem:[%s0 + $0x4b0] sm:$0xff]
    %v203 = vld [vmem:[%s0 + $0x4b8] sm:$0xff]
    %v204 = vld [vmem:[%s0 + $0x4c0] sm:$0xff]
    %v205 = vld [vmem:[%s0 + $0x4c8] sm:$0xff]
    %v206 = vld [vmem:[%s0 + $0x4d0] sm:$0xff]
    %v207 = vld [vmem:[%s0 + $0x4d8] sm:$0xff]
    %v208 = vld [vmem:[%s0 + $0x4e0] sm:$0xff]
    %v209 = vld [vmem:[%s0 + $0x4e8] sm:$0xff]
    %v210 = vld [vmem:[%s0 + $0x4f0] sm:$0xff]
    %v211 = vld [vmem:[%s0 + $0x4f8] sm:$0xff]
    %v212 = vld [vmem:[%s0 + $0x500] sm:$0xff]
    %v213 = vld [vmem:[%s0 + $0x508] sm:$0xff]
    %v214 = vld [vmem:[%s0 + $0x510] sm:$0xff]
    %v215 = vld [vmem:[%s0 + $0x518] sm:$0xff]
    %v216 = vld [vmem:[%s0 + $0x520] sm:$0xff]
    %v217 = vld [vmem:[%s0 + $0x528] sm:$0xff]
    %v218 = vld [vmem:[%s0 + $0x530] sm:$0xff]
    %v219 = vld [vmem:[%s0 + $0x538] sm:$0xff]
    %v220 = vld [vmem:[%s0 + $0x540] sm:$0xff]
    %v221 = vld [vmem:[%s0 + $0x548] sm:$0xff]
    %v222 = vld [vmem:[%s0 + $0x550] sm:$0xff]
    %v223 = vld [vmem:[%s0 + $0x558] sm:$0xff]
    %v224 = vld [vmem:[%s0 + $0x560] sm:$0xff]
    %v225 = vld [vmem:[%s0 + $0x568] sm:$0xff]
    %v226 = vld [vmem:[%s0 + $0x570] sm:$0xff]
    %v227 = vld [vmem:[%s0 + $0x578] sm:$0xff]
    %v228 = vld [vmem:[%s0 + $0x580] sm:$0xff]
    %v229 = vld [vmem:[%s0 + $0x588] sm:$0xff]
    %v230 = vld [vmem:[%s0 + $0x590] sm:$0xff]
    %v231 = vld [vmem:[%s0 + $0x598] sm:$0xff]
    %v232 = vld [vmem:[%s0 + $0x5a0] sm:$0xff]
    %v233 = vld [vmem:[%s0 + $0x5a8] sm:$0xff]
    %v234 = vld [vmem:[%s0 + $0x5b0] sm:$0xff]
    %v235 = vld [vmem:[%s0 + $0x5b8] sm:$0xff]
    %v236 = vld [vmem:[%s0 + $0x5c0] sm:$0xff]
    %v237 = vld [vmem:[%s0 + $0x5c8] sm:$0xff]
    %v238 = vld [vmem:[%s0 + $0x5d0] sm:$0xff]
    %v239 = vld [vmem:[%s0 + $0x5d8] sm:$0xff]
    %v240 = vld [vmem:[%s0 + $0x5e0] sm:$0xff]
    %v241 = vld [vmem:[%s0 + $0x5e8] sm:$0xff]
    %v242 = vld [vmem:[%s0 + $0x5f0] sm:$0xff]
    %v243 = vld [vmem:[%s0 + $0x5f8] sm:$0xff]
    %v244 = vld [vmem:[%s0 + $0x600] sm:$0xff]
    %v245 = vld [vmem:[%s0 + $0x608] sm:$0xff]
    %v246 = vld [vmem:[%s0 + $0x610] sm:$0xff]
    %v247 = vld [vmem:[%s0 + $0x618] sm:$0xff]
    %v248 = vld [vmem:[%s0 + $0x620] sm:$0xff]
    %v249 = vld [vmem:[%s0 + $0x628] sm:$0xff]
    %v250 = vld [vmem:[%s0 + $0x630] sm:$0xff]
    %v251 = vld [vmem:[%s0 + $0x638] sm:$0xff]
    %v252 = vld [vmem:[%s0 + $0x640] sm:$0xff]
    %v253 = vld [vmem:[%s0 + $0x648] sm:$0xff]
    %v254 = vld [vmem:[%s0 + $0x650] sm:$0xff]
    %v255 = vld [vmem:[%s0 + $0x658] sm:$0xff]
    %v256 = vld [vmem:[%s0 + $0x660] sm:$0xff]
    %v257 = vld [vmem:[%s0 + $0x668] sm:$0xff]
    %v258 = vld [vmem:[%s0 + $0x670] sm:$0xff]
    %v259 = vld [vmem:[%s0 + $0x678] sm:$0xff]
    %v260 = vld [vmem:[%s0 + $0x680] sm:$0xff]
    %v261 = vld [vmem:[%s0 + $0x688] sm:$0xff]
    %v262 = vld [vmem:[%s0 + $0x690] sm:$0xff]
    %v263 = vld [vmem:[%s0 + $0x698] sm:$0xff]
    %v264 = vld [vmem:[%s0 + $0x6a0] sm:$0xff]
    %v265 = vld [vmem:[%s0 + $0x6a8] sm:$0xff]
    %v266 = vld [vmem:[%s0 + $0x6b0] sm:$0xff]
    %v267 = vld [vmem:[%s0 + $0x6b8] sm:$0xff]
    %v268 = vld [vmem:[%s0 + $0x6c0] sm:$0xff]
    %v269 = vld [vmem:[%s0 + $0x6c8] sm:$0xff]
    %v270 = vld [vmem:[%s0 + $0x6d0] sm:$0xff]
    %v271 = vld [vmem:[%s0 + $0x6d8] sm:$0xff]
    %v272 = vld [vmem:[%s0 + $0x6e0] sm:$0xff]
    %v273 = vld [vmem:[%s0 + $0x6e8] sm:$0xff]
    %v274 = vld [vmem:[%s0 + $0x6f0] sm:$0xff]
    %v275 = vld [vmem:[%s0 + $0x6f8] sm:$0xff]
    %v276 = vld [vmem:[%s0 + $0x700] sm:$0xff]
    %v277 = vld [vmem:[%s0 + $0x708] sm:$0xff]
    %v278 = vld [vmem:[%s0 + $0x710] sm:$0xff]
    %v279 = vld [vmem:[%s0 + $0x718] sm:$0xff]
    %v280 = vld [vmem:[%s0 + $0x720] sm:$0xff]
    %v281 = vld [vmem:[%s0 + $0x728] sm:$0xff]
    %v282 = vld [vmem:[%s0 + $0x730] sm:$0xff]
    %v283 = vld [vmem:[%s0 + $0x738] sm:$0xff]
    %v284 = vld [vmem:[%s0 + $0x740] sm:$0xff]
    %v285 = vld [vmem:[%s0 + $0x748] sm:$0xff]
    %v286 = vld [vmem:[%s0 + $0x750] sm:$0xff]
    %v287 = vld [vmem:[%s0 + $0x758] sm:$0xff]
    %v288 = vld [vmem:[%s0 + $0x760] sm:$0xff]
    %v289 = vld [vmem:[%s0 + $0x768] sm:$0xff]
    %v290 = vld [vmem:[%s0 + $0x770] sm:$0xff]
    %v291 = vld [vmem:[%s0 + $0x778] sm:$0xff]
    %v292 = vld [vmem:[%s0 + $0x780] sm:$0xff]
    %v293 = vld [vmem:[%s0 + $0x788] sm:$0xff]
    %v294 = vld [vmem:[%s0 + $0x790] sm:$0xff]
    %v295 = vld [vmem:[%s0 + $0x798] sm:$0xff]
    %v296 = vld [vmem:[%s0 + $0x7a0] sm:$0xff]
    %v297 = vld [vmem:[%s0 + $0x7a8] sm:$0xff]
    %v298 = vld [vmem:[%s0 + $0x7b0] sm:$0xff]
    %v299 = vld [vmem:[%s0 + $0x7b8] sm:$0xff]
    %v300 = vld [vmem:[%s0 + $0x7c0] sm:$0xff]
    %v301 = vld [vmem:[%s0 + $0x7c8] sm:$0xff]
    %v302 = vld [vmem:[%s0 + $0x7d0] sm:$0xff]
    %v303 = vld [vmem:[%s0 + $0x7d8] sm:$0xff]
    %v304 = vld [vmem:[%s0 + $0x7e0] sm:$0xff]
    %v305 = vld [vmem:[%s0 + $0x7e8] sm:$0xff]
    %v306 = vld [vmem:[%s0 + $0x7f0] sm:$0xff]
    %v307 = vld [vmem:[%s0 + $0x7f8] sm:$0xff]
    %v308 = vld [vmem:[%s0 + $0x800] sm:$0xff]
    %v309 = vld [vmem:[%s0 + $0x808] sm:$0xff]
    %v310 = vld [vmem:[%s0 + $0x810] sm:$0xff]
    %v311 = vld [vmem:[%s0 + $0x818] sm:$0xff]
    %v312 = vld [vmem:[%s0 + $0x820] sm:$0xff]
    %v313 = vld [vmem:[%s0 + $0x828] sm:$0xff]
    %v314 = vld [vmem:[%s0 + $0x830] sm:$0xff]
    %v315 = vld [vmem:[%s0 + $0x838] sm:$0xff]
    %v316 = vld [vmem:[%s0 + $0x840] sm:$0xff]
    %v317 = vld [vmem:[%s0 + $0x848] sm:$0xff]
    %v318 = vld [vmem:[%s0 + $0x850] sm:$0xff]
    %v319 = vld [vmem:[%s0 + $0x858] sm:$0xff]
    %v320 = vld [vmem:[%s0 + $0x860] sm:$0xff]
    %v321 = vld [vmem:[%s0 + $0x868] sm:$0xff]
    %v322 = vld [vmem:[%s0 + $0x870] sm:$0xff]
    %v323 = vld [vmem:[%s0 + $0x878] sm:$0xff]
    %v324 = vld [vmem:[%s0 + $0x880] sm:$0xff]
    %v325 = vld [vmem:[%s0 + $0x888] sm:$0xff]
    %v326 = vld [vmem:[%s0 + $0x890] sm:$0xff]
    %v327 = vld [vmem:[%s0 + $0x898] sm:$0xff]
    %v328 = vld [vmem:[%s0 + $0x8a0] sm:$0xff]
    %v329 = vld [vmem:[%s0 + $0x8a8] sm:$0xff]
    %v330 = vld [vmem:[%s0 + $0x8b0] sm:$0xff]
    %v331 = vld [vmem:[%s0 + $0x8b8] sm:$0xff]
    %v332 = vld [vmem:[%s0 + $0x8c0] sm:$0xff]
    %v333 = vld [vmem:[%s0 + $0x8c8] sm:$0xff]
    %v334 = vld [vmem:[%s0 + $0x8d0] sm:$0xff]
    %v335 = vld [vmem:[%s0 + $0x8d8] sm:$0xff]
    %v336 = vld [vmem:[%s0 + $0x8e0] sm:$0xff]
    %v337 = vld [vmem:[%s0 + $0x8e8] sm:$0xff]
    %v338 = vld [vmem:[%s0 + $0x8f0] sm:$0xff]
    %v339 = vld [vmem:[%s0 + $0x8f8] sm:$0xff]
    %v340 = vld [vmem:[%s0 + $0x900] sm:$0xff]
    %v341 = vld [vmem:[%s0 + $0x908] sm:$0xff]
    %v342 = vld [vmem:[%s0 + $0x910] sm:$0xff]
    %v343 = vld [vmem:[%s0 + $0x918] sm:$0xff]
    %v344 = vld [vmem:[%s0 + $0x920] sm:$0xff]
    %v345 = vld [vmem:[%s0 + $0x928] sm:$0xff]
    %v346 = vld [vmem:[%s0 + $0x930] sm:$0xff]
    %v347 = vld [vmem:[%s0 + $0x938] sm:$0xff]
    %v348 = vld [vmem:[%s0 + $0x940] sm:$0xff]
    %v349 = vld [vmem:[%s0 + $0x948] sm:$0xff]
    %v350 = vld [vmem:[%s0 + $0x950] sm:$0xff]
    %v351 = vld [vmem:[%s0 + $0x958] sm:$0xff]
    %v352 = vld [vmem:[%s0 + $0x960] sm:$0xff]
    %v353 = vld [vmem:[%s0 + $0x968] sm:$0xff]
    %v354 = vld [vmem:[%s0 + $0x970] sm:$0xff]
    %v355 = vld [vmem:[%s0 + $0x978] sm:$0xff]
    %v356 = vld [vmem:[%s0 + $0x980] sm:$0xff]
    %v357 = vld [vmem:[%s0 + $0x988] sm:$0xff]
    %v358 = vld [vmem:[%s0 + $0x990] sm:$0xff]
    %v359 = vld [vmem:[%s0 + $0x998] sm:$0xff]
    %v360 = vld [vmem:[%s0 + $0x9a0] sm:$0xff]
    %v361 = vld [vmem:[%s0 + $0x9a8] sm:$0xff]
    %v362 = vld [vmem:[%s0 + $0x9b0] sm:$0xff]
    %v363 = vld [vmem:[%s0 + $0x9b8] sm:$0xff]
    %v364 = vld [vmem:[%s0 + $0x9c0] sm:$0xff]
    %v365 = vld [vmem:[%s0 + $0x9c8] sm:$0xff]
    %v366 = vld [vmem:[%s0 + $0x9d0] sm:$0xff]
    %v367 = vld [vmem:[%s0 + $0x9d8] sm:$0xff]
    %v368 = vld [vmem:[%s0 + $0x9e0] sm:$0xff]
    %v369 = vld [vmem:[%s0 + $0x9e8] sm:$0xff]
    %v370 = vld [vmem:[%s0 + $0x9f0] sm:$0xff]
    %v371 = vld [vmem:[%s0 + $0x9f8] sm:$0xff]
    %v372 = vld [vmem:[%s0 + $0xa00] sm:$0xff]
    %v373 = vld [vmem:[%s0 + $0xa08] sm:$0xff]
    %v374 = vld [vmem:[%s0 + $0xa10] sm:$0xff]
    %v375 = vld [vmem:[%s0 + $0xa18] sm:$0xff]
    %v376 = vld [vmem:[%s0 + $0xa20] sm:$0xff]
    %v377 = vld [vmem:[%s0 + $0xa28] sm:$0xff]
    %v378 = vld [vmem:[%s0 + $0xa30] sm:$0xff]
    %v379 = vld [vmem:[%s0 + $0xa38] sm:$0xff]
    %v380 = vld [vmem:[%s0 + $0xa40] sm:$0xff]
    %v381 = vld [vmem:[%s0 + $0xa48] sm:$0xff]
    %v382 = vld [vmem:[%s0 + $0xa50] sm:$0xff]
    %v383 = vld [vmem:[%s0 + $0xa58] sm:$0xff]
    %v384 = vld [vmem:[%s0 + $0xa60] sm:$0xff]
    %v385 = vld [vmem:[%s0 + $0xa68] sm:$0xff]
    %v386 = vld [vmem:[%s0 + $0xa70] sm:$0xff]
    %v387 = vld [vmem:[%s0 + $0xa78] sm:$0xff]
    %v388 = vld [vmem:[%s0 + $0xa80] sm:$0xff]
    %v389 = vld [vmem:[%s0 + $0xa88] sm:$0xff]
    %v390 = vld [vmem:[%s0 + $0xa90] sm:$0xff]
    %v391 = vld [vmem:[%s0 + $0xa98] sm:$0xff]
    %v392 = vld [vmem:[%s0 + $0xaa0] sm:$0xff]
    %v393 = vld [vmem:[%s0 + $0xaa8] sm:$0xff]
    %v394 = vld [vmem:[%s0 + $0xab0] sm:$0xff]
    %v395 = vld [vmem:[%s0 + $0xab8] sm:$0xff]
    %v396 = vld [vmem:[%s0 + $0xac0] sm:$0xff]
    %v397 = vld [vmem:[%s0 + $0xac8] sm:$0xff]
    %v398 = vld [vmem:[%s0 + $0xad0] sm:$0xff]
    %v399 = vld [vmem:[%s0 + $0xad8] sm:$0xff]
    %v400 = vld [vmem:[%s0 + $0xae0] sm:$0xff]
    %v401 = vld [vmem:[%s0 + $0xae8] sm:$0xff]
    %v402 = vld [vmem:[%s0 + $0xaf0] sm:$0xff]
    %v403 = vld [vmem:[%s0 + $0xaf8] sm:$0xff]
    %v404 = vld [vmem:[%s0 + $0xb00] sm:$0xff]
    %v405 = vld [vmem:[%s0 + $0xb08] sm:$0xff]
    %v406 = vld [vmem:[%s0 + $0xb10] sm:$0xff]
    %v407 = vld [vmem:[%s0 + $0xb18] sm:$0xff]
    %v408 = vld [vmem:[%s0 + $0xb20] sm:$0xff]
    %v409 = vld [vmem:[%s0 + $0xb28] sm:$0xff]
    %v410 = vld [vmem:[%s0 + $0xb30] sm:$0xff]
    %v411 = vld [vmem:[%s0 + $0xb38] sm:$0xff]
    %v412 = vld [vmem:[%s0 + $0xb40] sm:$0xff]
    %v413 = vld [vmem:[%s0 + $0xb48] sm:$0xff]
    %v414 = vld [vmem:[%s0 + $0xb50] sm:$0xff]
    %v415 = vld [vmem:[%s0 + $0xb58] sm:$0xff]
    %v416 = vld [vmem:[%s0 + $0xb60] sm:$0xff]
    %v417 = vld [vmem:[%s0 + $0xb68] sm:$0xff]
    %v418 = vld [vmem:[%s0 + $0xb70] sm:$0xff]
    %v419 = vld [vmem:[%s0 + $0xb78] sm:$0xff]
    %v420 = vld [vmem:[%s0 + $0xb80] sm:$0xff]
    %v421 = vld [vmem:[%s0 + $0xb88] sm:$0xff]
    %v422 = vld [vmem:[%s0 + $0xb90] sm:$0xff]
    %v423 = vld [vmem:[%s0 + $0xb98] sm:$0xff]
    %v424 = vld [vmem:[%s0 + $0xba0] sm:$0xff]
    %v425 = vld [vmem:[%s0 + $0xba8] sm:$0xff]
    %v426 = vld [vmem:[%s0 + $0xbb0] sm:$0xff]
    %v427 = vld [vmem:[%s0 + $0xbb8] sm:$0xff]
    %v428 = vld [vmem:[%s0 + $0xbc0] sm:$0xff]
    %v429 = vld [vmem:[%s0 + $0xbc8] sm:$0xff]
    %v430 = vld [vmem:[%s0 + $0xbd0] sm:$0xff]
    %v431 = vld [vmem:[%s0 + $0xbd8] sm:$0xff]
    %v432 = vld [vmem:[%s0 + $0xbe0] sm:$0xff]
    %v433 = vld [vmem:[%s0 + $0xbe8] sm:$0xff]
    %v434 = vld [vmem:[%s0 + $0xbf0] sm:$0xff]
    %v435 = vld [vmem:[%s0 + $0xbf8] sm:$0xff]
    %v436 = vld [vmem:[%s0 + $0xc00] sm:$0xff]
    %v437 = vld [vmem:[%s0 + $0xc08] sm:$0xff]
    %v438 = vld [vmem:[%s0 + $0xc10] sm:$0xff]
    %v439 = vld [vmem:[%s0 + $0xc18] sm:$0xff]
    %v440 = vld [vmem:[%s0 + $0xc20] sm:$0xff]
    %v441 = vld [vmem:[%s0 + $0xc28] sm:$0xff]
    %v442 = vld [vmem:[%s0 + $0xc30] sm:$0xff]
    %v443 = vld [vmem:[%s0 + $0xc38] sm:$0xff]
    %v444 = vld [vmem:[%s0 + $0xc40] sm:$0xff]
    %v445 = vld [vmem:[%s0 + $0xc48] sm:$0xff]
    %v446 = vld [vmem:[%s0 + $0xc50] sm:$0xff]
    %v447 = vld [vmem:[%s0 + $0xc58] sm:$0xff]
    %v448 = vld [vmem:[%s0 + $0xc60] sm:$0xff]
    %v449 = vld [vmem:[%s0 + $0xc68] sm:$0xff]
    %v450 = vld [vmem:[%s0 + $0xc70] sm:$0xff]
    %v451 = vld [vmem:[%s0 + $0xc78] sm:$0xff]
    %v452 = vld [vmem:[%s0 + $0xc80] sm:$0xff]
    %v453 = vld [vmem:[%s0 + $0xc88] sm:$0xff]
    %v454 = vld [vmem:[%s0 + $0xc90] sm:$0xff]
    %v455 = vld [vmem:[%s0 + $0xc98] sm:$0xff]
    %v456 = vld [vmem:[%s0 + $0xca0] sm:$0xff]
    %v457 = vld [vmem:[%s0 + $0xca8] sm:$0xff]
    %v458 = vld [vmem:[%s0 + $0xcb0] sm:$0xff]
    %v459 = vld [vmem:[%s0 + $0xcb8] sm:$0xff]
    %v460 = vld [vmem:[%s0 + $0xcc0] sm:$0xff]
    %v461 = vld [vmem:[%s0 + $0xcc8] sm:$0xff]
    %v462 = vld [vmem:[%s0 + $0xcd0] sm:$0xff]
    %v463 = vld [vmem:[%s0 + $0xcd8] sm:$0xff]
    %v464 = vld [vmem:[%s0 + $0xce0] sm:$0xff]
    %v465 = vld [vmem:[%s0 + $0xce8] sm:$0xff]
    %v466 = vld [vmem:[%s0 + $0xcf0] sm:$0xff]
    %v467 = vld [vmem:[%s0 + $0xcf8] sm:$0xff]
    %v468 = vld [vmem:[%s0 + $0xd00] sm:$0xff]
    %v469 = vld [vmem:[%s0 + $0xd08] sm:$0xff]
    %v470 = vld [vmem:[%s0 + $0xd10] sm:$0xff]
    %v471 = vld [vmem:[%s0 + $0xd18] sm:$0xff]
    %v472 = vld [vmem:[%s0 + $0xd20] sm:$0xff]
    %v473 = vld [vmem:[%s0 + $0xd28] sm:$0xff]
    %v474 = vld [vmem:[%s0 + $0xd30] sm:$0xff]
    %v475 = vld [vmem:[%s0 + $0xd38] sm:$0xff]
    %v476 = vld [vmem:[%s0 + $0xd40] sm:$0xff]
    %v477 = vld [vmem:[%s0 + $0xd48] sm:$0xff]
    %v478 = vld [vmem:[%s0 + $0xd50] sm:$0xff]
    %v479 = vld [vmem:[%s0 + $0xd58] sm:$0xff]
    %v480 = vld [vmem:[%s0 + $0xd60] sm:$0xff]
    %v481 = vld [vmem:[%s1] sm:$0xff]
    %v482 = vld [vmem:[%s1 + $0x8] sm:$0xff]
    %v483 = vld [vmem:[%s1 + $0x10] sm:$0xff]
    %v484 = vld [vmem:[%s1 + $0x18] sm:$0xff]
    %v485 = vld [vmem:[%s1 + $0x20] sm:$0xff]
    %v486 = vld [vmem:[%s1 + $0x28] sm:$0xff]
    %v487 = vld [vmem:[%s1 + $0x30] sm:$0xff]
    %v488 = vld [vmem:[%s1 + $0x38] sm:$0xff]
    %v489 = vld [vmem:[%s1 + $0x40] sm:$0xff]
    %v490 = vld [vmem:[%s1 + $0x48] sm:$0xff]
    %v491 = vld [vmem:[%s1 + $0x50] sm:$0xff]
    %v492 = vld [vmem:[%s1 + $0x58] sm:$0xff]
    %v493 = vld [vmem:[%s1 + $0x60] sm:$0xff]
    %v494 = vld [vmem:[%s1 + $0x68] sm:$0xff]
    %v495 = vld [vmem:[%s1 + $0x70] sm:$0xff]
    %v496 = vld [vmem:[%s1 + $0x78] sm:$0xff]
    %v497 = vld [vmem:[%s1 + $0x80] sm:$0xff]
    %v498 = vld [vmem:[%s1 + $0x88] sm:$0xff]
    %v499 = vld [vmem:[%s1 + $0x90] sm:$0xff]
    %v500 = vld [vmem:[%s1 + $0x98] sm:$0xff]
    %v501 = vld [vmem:[%s1 + $0xa0] sm:$0xff]
    %v502 = vld [vmem:[%s1 + $0xa8] sm:$0xff]
    %v503 = vld [vmem:[%s1 + $0xb0] sm:$0xff]
    %v504 = vld [vmem:[%s1 + $0xb8] sm:$0xff]
    %v505 = vld [vmem:[%s1 + $0xc0] sm:$0xff]
    %v506 = vld [vmem:[%s1 + $0xc8] sm:$0xff]
    %v507 = vld [vmem:[%s1 + $0xd0] sm:$0xff]
    %v508 = vld [vmem:[%s1 + $0xd8] sm:$0xff]
    %v509 = vld [vmem:[%s1 + $0xe0] sm:$0xff]
    %v510 = vld [vmem:[%s1 + $0xe8] sm:$0xff]
    %v511 = vld [vmem:[%s1 + $0xf0] sm:$0xff]
    %v512 = vld [vmem:[%s1 + $0xf8] sm:$0xff]
    %v513 = vld [vmem:[%s1 + $0x100] sm:$0xff]
    %v514 = vld [vmem:[%s1 + $0x108] sm:$0xff]
    %v515 = vld [vmem:[%s1 + $0x110] sm:$0xff]
    %v516 = vld [vmem:[%s1 + $0x118] sm:$0xff]
    %v517 = vld [vmem:[%s1 + $0x120] sm:$0xff]
    %v518 = vld [vmem:[%s1 + $0x128] sm:$0xff]
    %v519 = vld [vmem:[%s1 + $0x130] sm:$0xff]
    %v520 = vld [vmem:[%s1 + $0x138] sm:$0xff]
    %v521 = vld [vmem:[%s1 + $0x140] sm:$0xff]
    %v522 = vld [vmem:[%s1 + $0x148] sm:$0xff]
    %v523 = vld [vmem:[%s1 + $0x150] sm:$0xff]
    %v524 = vld [vmem:[%s1 + $0x158] sm:$0xff]
    %v525 = vld [vmem:[%s1 + $0x160] sm:$0xff]
    %v526 = vld [vmem:[%s1 + $0x168] sm:$0xff]
    %v527 = vld [vmem:[%s1 + $0x170] sm:$0xff]
    %v528 = vld [vmem:[%s1 + $0x178] sm:$0xff]
    %v529 = vld [vmem:[%s1 + $0x180] sm:$0xff]
    %v530 = vld [vmem:[%s1 + $0x188] sm:$0xff]
    %v531 = vld [vmem:[%s1 + $0x190] sm:$0xff]
    %v532 = vld [vmem:[%s1 + $0x198] sm:$0xff]
    %v533 = vld [vmem:[%s1 + $0x1a0] sm:$0xff]
    %v534 = vld [vmem:[%s1 + $0x1a8] sm:$0xff]
    %v535 = vld [vmem:[%s1 + $0x1b0] sm:$0xff]
    %v536 = vld [vmem:[%s1 + $0x1b8] sm:$0xff]
    %v537 = vld [vmem:[%s1 + $0x1c0] sm:$0xff]
    %v538 = vld [vmem:[%s1 + $0x1c8] sm:$0xff]
    %v539 = vld [vmem:[%s1 + $0x1d0] sm:$0xff]
    %v540 = vld [vmem:[%s1 + $0x1d8] sm:$0xff]
    %v541 = vld [vmem:[%s1 + $0x1e0] sm:$0xff]
    %v542 = vld [vmem:[%s1 + $0x1e8] sm:$0xff]
    %v543 = vld [vmem:[%s1 + $0x1f0] sm:$0xff]
    %v544 = vld [vmem:[%s1 + $0x1f8] sm:$0xff]
    %v545 = vld [vmem:[%s1 + $0x200] sm:$0xff]
    %v546 = vld [vmem:[%s1 + $0x208] sm:$0xff]
    %v547 = vld [vmem:[%s1 + $0x210] sm:$0xff]
    %v548 = vld [vmem:[%s1 + $0x218] sm:$0xff]
    %v549 = vld [vmem:[%s1 + $0x220] sm:$0xff]
    %v550 = vld [vmem:[%s1 + $0x228] sm:$0xff]
    %v551 = vld [vmem:[%s1 + $0x230] sm:$0xff]
    %v552 = vld [vmem:[%s1 + $0x238] sm:$0xff]
    %v553 = vld [vmem:[%s1 + $0x240] sm:$0xff]
    %v554 = vld [vmem:[%s1 + $0x248] sm:$0xff]
    %v555 = vld [vmem:[%s1 + $0x250] sm:$0xff]
    %v556 = vld [vmem:[%s1 + $0x258] sm:$0xff]
    %v557 = vld [vmem:[%s1 + $0x260] sm:$0xff]
    %v558 = vld [vmem:[%s1 + $0x268] sm:$0xff]
    %v559 = vld [vmem:[%s1 + $0x270] sm:$0xff]
    %v560 = vld [vmem:[%s1 + $0x278] sm:$0xff]
    %v561 = vld [vmem:[%s1 + $0x280] sm:$0xff]
    %v562 = vld [vmem:[%s1 + $0x288] sm:$0xff]
    %v563 = vld [vmem:[%s1 + $0x290] sm:$0xff]
    %v564 = vld [vmem:[%s1 + $0x298] sm:$0xff]
    %v565 = vld [vmem:[%s1 + $0x2a0] sm:$0xff]
    %v566 = vld [vmem:[%s1 + $0x2a8] sm:$0xff]
    %v567 = vld [vmem:[%s1 + $0x2b0] sm:$0xff]
    %v568 = vld [vmem:[%s1 + $0x2b8] sm:$0xff]
    %v569 = vld [vmem:[%s1 + $0x2c0] sm:$0xff]
    %v570 = vld [vmem:[%s1 + $0x2c8] sm:$0xff]
    %v571 = vld [vmem:[%s1 + $0x2d0] sm:$0xff]
    %v572 = vld [vmem:[%s1 + $0x2d8] sm:$0xff]
    %v573 = vld [vmem:[%s1 + $0x2e0] sm:$0xff]
    %v574 = vld [vmem:[%s1 + $0x2e8] sm:$0xff]
    %v575 = vld [vmem:[%s1 + $0x2f0] sm:$0xff]
    %v576 = vld [vmem:[%s1 + $0x2f8] sm:$0xff]
    %v577 = vld [vmem:[%s1 + $0x300] sm:$0xff]
    %v578 = vld [vmem:[%s1 + $0x308] sm:$0xff]
    %v579 = vld [vmem:[%s1 + $0x310] sm:$0xff]
    %v580 = vld [vmem:[%s1 + $0x318] sm:$0xff]
    %v581 = vld [vmem:[%s1 + $0x320] sm:$0xff]
    %v582 = vld [vmem:[%s1 + $0x328] sm:$0xff]
    %v583 = vld [vmem:[%s1 + $0x330] sm:$0xff]
    %v584 = vld [vmem:[%s1 + $0x338] sm:$0xff]
    %v585 = vld [vmem:[%s1 + $0x340] sm:$0xff]
    %v586 = vld [vmem:[%s1 + $0x348] sm:$0xff]
    %v587 = vld [vmem:[%s1 + $0x350] sm:$0xff]
    %v588 = vld [vmem:[%s1 + $0x358] sm:$0xff]
    %v589 = vld [vmem:[%s1 + $0x360] sm:$0xff]
    %v590 = vld [vmem:[%s1 + $0x368] sm:$0xff]
    %v591 = vld [vmem:[%s1 + $0x370] sm:$0xff]
    %v592 = vld [vmem:[%s1 + $0x378] sm:$0xff]
    %v593 = vld [vmem:[%s1 + $0x380] sm:$0xff]
    %v594 = vld [vmem:[%s1 + $0x388] sm:$0xff]
    %v595 = vld [vmem:[%s1 + $0x390] sm:$0xff]
    %v596 = vld [vmem:[%s1 + $0x398] sm:$0xff]
    %v597 = vld [vmem:[%s1 + $0x3a0] sm:$0xff]
    %v598 = vld [vmem:[%s1 + $0x3a8] sm:$0xff]
    %v599 = vld [vmem:[%s1 + $0x3b0] sm:$0xff]
    %v600 = vld [vmem:[%s1 + $0x3b8] sm:$0xff]
    %v601 = vld [vmem:[%s1 + $0x3c0] sm:$0xff]
    %v602 = vld [vmem:[%s1 + $0x3c8] sm:$0xff]
    %v603 = vld [vmem:[%s1 + $0x3d0] sm:$0xff]
    %v604 = vld [vmem:[%s1 + $0x3d8] sm:$0xff]
    %v605 = vld [vmem:[%s1 + $0x3e0] sm:$0xff]
    %v606 = vld [vmem:[%s1 + $0x3e8] sm:$0xff]
    %v607 = vld [vmem:[%s1 + $0x3f0] sm:$0xff]
    %v608 = vld [vmem:[%s1 + $0x3f8] sm:$0xff]
    %v609 = vld [vmem:[%s1 + $0x400] sm:$0xff]
    %v610 = vld [vmem:[%s1 + $0x408] sm:$0xff]
    %v611 = vld [vmem:[%s1 + $0x410] sm:$0xff]
    %v612 = vld [vmem:[%s1 + $0x418] sm:$0xff]
    %v613 = vld [vmem:[%s1 + $0x420] sm:$0xff]
    %v614 = vld [vmem:[%s1 + $0x428] sm:$0xff]
    %v615 = vld [vmem:[%s1 + $0x430] sm:$0xff]
    %v616 = vld [vmem:[%s1 + $0x438] sm:$0xff]
    %v617 = vld [vmem:[%s1 + $0x440] sm:$0xff]
    %v618 = vld [vmem:[%s1 + $0x448] sm:$0xff]
    %v619 = vld [vmem:[%s1 + $0x450] sm:$0xff]
    %v620 = vld [vmem:[%s1 + $0x458] sm:$0xff]
    %v621 = vld [vmem:[%s1 + $0x460] sm:$0xff]
    %v622 = vld [vmem:[%s1 + $0x468] sm:$0xff]
    %v623 = vld [vmem:[%s1 + $0x470] sm:$0xff]
    %v624 = vld [vmem:[%s1 + $0x478] sm:$0xff]
    %v625 = vld [vmem:[%s1 + $0x480] sm:$0xff]
    %v626 = vld [vmem:[%s1 + $0x488] sm:$0xff]
    %v627 = vld [vmem:[%s1 + $0x490] sm:$0xff]
    %v628 = vld [vmem:[%s1 + $0x498] sm:$0xff]
    %v629 = vld [vmem:[%s1 + $0x4a0] sm:$0xff]
    %v630 = vld [vmem:[%s1 + $0x4a8] sm:$0xff]
    %v631 = vld [vmem:[%s1 + $0x4b0] sm:$0xff]
    %v632 = vld [vmem:[%s1 + $0x4b8] sm:$0xff]
    %v633 = vld [vmem:[%s1 + $0x4c0] sm:$0xff]
    %v634 = vld [vmem:[%s1 + $0x4c8] sm:$0xff]
    %v635 = vld [vmem:[%s1 + $0x4d0] sm:$0xff]
    %v636 = vld [vmem:[%s1 + $0x4d8] sm:$0xff]
    %v637 = vld [vmem:[%s1 + $0x4e0] sm:$0xff]
    %v638 = vld [vmem:[%s1 + $0x4e8] sm:$0xff]
    %v639 = vld [vmem:[%s1 + $0x4f0] sm:$0xff]
    %v640 = vld [vmem:[%s1 + $0x4f8] sm:$0xff]
    %v641 = vld [vmem:[%s1 + $0x500] sm:$0xff]
    %v642 = vld [vmem:[%s1 + $0x508] sm:$0xff]
    %v643 = vld [vmem:[%s1 + $0x510] sm:$0xff]
    %v644 = vld [vmem:[%s1 + $0x518] sm:$0xff]
    %v645 = vld [vmem:[%s1 + $0x520] sm:$0xff]
    %v646 = vld [vmem:[%s1 + $0x528] sm:$0xff]
    %v647 = vld [vmem:[%s1 + $0x530] sm:$0xff]
    %v648 = vld [vmem:[%s1 + $0x538] sm:$0xff]
    %v649 = vld [vmem:[%s1 + $0x540] sm:$0xff]
    %v650 = vld [vmem:[%s1 + $0x548] sm:$0xff]
    %v651 = vld [vmem:[%s1 + $0x550] sm:$0xff]
    %v652 = vld [vmem:[%s1 + $0x558] sm:$0xff]
    %v653 = vld [vmem:[%s1 + $0x560] sm:$0xff]
    %v654 = vld [vmem:[%s1 + $0x568] sm:$0xff]
    %v655 = vld [vmem:[%s1 + $0x570] sm:$0xff]
    %v656 = vld [vmem:[%s1 + $0x578] sm:$0xff]
    %v657 = vld [vmem:[%s1 + $0x580] sm:$0xff]
    %v658 = vld [vmem:[%s1 + $0x588] sm:$0xff]
    %v659 = vld [vmem:[%s1 + $0x590] sm:$0xff]
    %v660 = vld [vmem:[%s1 + $0x598] sm:$0xff]
    %v661 = vld [vmem:[%s1 + $0x5a0] sm:$0xff]
    %v662 = vld [vmem:[%s1 + $0x5a8] sm:$0xff]
    %v663 = vld [vmem:[%s1 + $0x5b0] sm:$0xff]
    %v664 = vld [vmem:[%s1 + $0x5b8] sm:$0xff]
    %v665 = vld [vmem:[%s1 + $0x5c0] sm:$0xff]
    %v666 = vld [vmem:[%s1 + $0x5c8] sm:$0xff]
    %v667 = vld [vmem:[%s1 + $0x5d0] sm:$0xff]
    %v668 = vld [vmem:[%s1 + $0x5d8] sm:$0xff]
    %v669 = vld [vmem:[%s1 + $0x5e0] sm:$0xff]
    %v670 = vld [vmem:[%s1 + $0x5e8] sm:$0xff]
    %v671 = vld [vmem:[%s1 + $0x5f0] sm:$0xff]
    %v672 = vld [vmem:[%s1 + $0x5f8] sm:$0xff]
    %v673 = vld [vmem:[%s1 + $0x600] sm:$0xff]
    %v674 = vld [vmem:[%s1 + $0x608] sm:$0xff]
    %v675 = vld [vmem:[%s1 + $0x610] sm:$0xff]
    %v676 = vld [vmem:[%s1 + $0x618] sm:$0xff]
    %v677 = vld [vmem:[%s1 + $0x620] sm:$0xff]
    %v678 = vld [vmem:[%s1 + $0x628] sm:$0xff]
    %v679 = vld [vmem:[%s1 + $0x630] sm:$0xff]
    %v680 = vld [vmem:[%s1 + $0x638] sm:$0xff]
    %v681 = vld [vmem:[%s1 + $0x640] sm:$0xff]
    %v682 = vld [vmem:[%s1 + $0x648] sm:$0xff]
    %v683 = vld [vmem:[%s1 + $0x650] sm:$0xff]
    %v684 = vld [vmem:[%s1 + $0x658] sm:$0xff]
    %v685 = vld [vmem:[%s1 + $0x660] sm:$0xff]
    %v686 = vld [vmem:[%s1 + $0x668] sm:$0xff]
    %v687 = vld [vmem:[%s1 + $0x670] sm:$0xff]
    %v688 = vld [vmem:[%s1 + $0x678] sm:$0xff]
    %v689 = vld [vmem:[%s1 + $0x680] sm:$0xff]
    %v690 = vld [vmem:[%s1 + $0x688] sm:$0xff]
    %v691 = vld [vmem:[%s1 + $0x690] sm:$0xff]
    %v692 = vld [vmem:[%s1 + $0x698] sm:$0xff]
    %v693 = vld [vmem:[%s1 + $0x6a0] sm:$0xff]
    %v694 = vld [vmem:[%s1 + $0x6a8] sm:$0xff]
    %v695 = vld [vmem:[%s1 + $0x6b0] sm:$0xff]
    %v696 = vld [vmem:[%s1 + $0x6b8] sm:$0xff]
    %v697 = vld [vmem:[%s1 + $0x6c0] sm:$0xff]
    %v698 = vld [vmem:[%s1 + $0x6c8] sm:$0xff]
    %v699 = vld [vmem:[%s1 + $0x6d0] sm:$0xff]
    %v700 = vld [vmem:[%s1 + $0x6d8] sm:$0xff]
    %v701 = vld [vmem:[%s1 + $0x6e0] sm:$0xff]
    %v702 = vld [vmem:[%s1 + $0x6e8] sm:$0xff]
    %v703 = vld [vmem:[%s1 + $0x6f0] sm:$0xff]
    %v704 = vld [vmem:[%s1 + $0x6f8] sm:$0xff]
    %v705 = vld [vmem:[%s1 + $0x700] sm:$0xff]
    %v706 = vld [vmem:[%s1 + $0x708] sm:$0xff]
    %v707 = vld [vmem:[%s1 + $0x710] sm:$0xff]
    %v708 = vld [vmem:[%s1 + $0x718] sm:$0xff]
    %v709 = vld [vmem:[%s1 + $0x720] sm:$0xff]
    %v710 = vld [vmem:[%s1 + $0x728] sm:$0xff]
    %v711 = vld [vmem:[%s1 + $0x730] sm:$0xff]
    %v712 = vld [vmem:[%s1 + $0x738] sm:$0xff]
    %v713 = vld [vmem:[%s1 + $0x740] sm:$0xff]
    %v714 = vld [vmem:[%s1 + $0x748] sm:$0xff]
    %v715 = vld [vmem:[%s1 + $0x750] sm:$0xff]
    %v716 = vld [vmem:[%s1 + $0x758] sm:$0xff]
    %v717 = vld [vmem:[%s1 + $0x760] sm:$0xff]
    %v718 = vld [vmem:[%s1 + $0x768] sm:$0xff]
    %v719 = vld [vmem:[%s1 + $0x770] sm:$0xff]
    %v720 = vld [vmem:[%s1 + $0x778] sm:$0xff]
    %v721 = vld [vmem:[%s1 + $0x780] sm:$0xff]
    %v722 = vld [vmem:[%s1 + $0x788] sm:$0xff]
    %v723 = vld [vmem:[%s1 + $0x790] sm:$0xff]
    %v724 = vld [vmem:[%s1 + $0x798] sm:$0xff]
    %v725 = vld [vmem:[%s1 + $0x7a0] sm:$0xff]
    %v726 = vld [vmem:[%s1 + $0x7a8] sm:$0xff]
    %v727 = vld [vmem:[%s1 + $0x7b0] sm:$0xff]
    %v728 = vld [vmem:[%s1 + $0x7b8] sm:$0xff]
    %v729 = vld [vmem:[%s1 + $0x7c0] sm:$0xff]
    %v730 = vld [vmem:[%s1 + $0x7c8] sm:$0xff]
    %v731 = vld [vmem:[%s1 + $0x7d0] sm:$0xff]
    %v732 = vld [vmem:[%s1 + $0x7d8] sm:$0xff]
    %vm733 = vcmask 982016
    %v735 = vsel %vm733, %v489, 0
    %v738 = vsel %vm733, %v498, 0
    %v741 = vsel %vm733, %v507, 0
    %v744 = vsel %vm733, %v516, 0
    %v747 = vsel %vm733, %v525, 0
    %v750 = vsel %vm733, %v534, 0
    %v753 = vsel %vm733, %v543, 0
    %v756 = vsel %vm733, %v552, 0
    %v759 = vsel %vm733, %v561, 0
    %v762 = vsel %vm733, %v570, 0
    %v765 = vsel %vm733, %v579, 0
    %v768 = vsel %vm733, %v588, 0
    %v771 = vsel %vm733, %v597, 0
    %v774 = vsel %vm733, %v606, 0
    %v777 = vsel %vm733, %v615, 0
    %v780 = vsel %vm733, %v624, 0
    %v783 = vsel %vm733, %v633, 0
    %v786 = vsel %vm733, %v642, 0
    %v789 = vsel %vm733, %v651, 0
    %v792 = vsel %vm733, %v660, 0
    %v795 = vsel %vm733, %v669, 0
    %v798 = vsel %vm733, %v678, 0
    %v801 = vsel %vm733, %v687, 0
    %v804 = vsel %vm733, %v696, 0
    %v807 = vsel %vm733, %v705, 0
    %v810 = vsel %vm733, %v714, 0
    %v813 = vsel %vm733, %v723, 0
    %v816 = vsel %vm733, %v732, 0
    %818 = vmatprep.subr.mxu0 %v98
    %819 = vmatpush1.msra.mxu0 %v97
    %820 = vmatprep.subr.mxu0 %v95
    %821 = vmatpush1.msra.mxu0 %v94
    %822 = vmatprep.subr.mxu0 %v92
    %823 = vmatpush1.msra.mxu0 %v91
    %824 = vmatprep.subr.mxu0 %v89
    %825 = vmatpush1.msra.mxu0 %v88
    %826 = vmatprep.subr.mxu0 %v86
    %827 = vmatpush1.msra.mxu0 %v85
    %828 = vmatprep.subr.mxu0 %v83
    %829 = vmatpush1.msra.mxu0 %v82
    %830 = vmatprep.subr.mxu0 %v80
    %831 = vmatpush1.msra.mxu0 %v79
    %832 = vmatprep.subr.mxu0 %v77
    %833 = vmatpush1.msra.mxu0 %v76
    %834 = vmatprep.subr.mxu0 %v74
    %835 = vmatpush1.msra.mxu0 %v73
    %836 = vmatprep.subr.mxu0 %v71
    %837 = vmatpush1.msra.mxu0 %v70
    %838 = vmatprep.subr.mxu0 %v68
    %839 = vmatpush1.msra.mxu0 %v67
    %840 = vmatprep.subr.mxu0 %v65
    %841 = vmatpush1.msra.mxu0 %v64
    %842 = vmatprep.subr.mxu0 %v62
    %843 = vmatpush1.msra.mxu0 %v61
    %844 = vmatprep.subr.mxu0 %v59
    %845 = vmatpush1.msra.mxu0 %v58
    %846 = vmatprep.subr.mxu0 %v56
    %847 = vmatpush1.msra.mxu0 %v55
    %848 = vmatprep.subr.mxu0 %v53
    %849 = vmatpush1.msra.mxu0 %v52
    %850 = vmatprep.subr.mxu0 %v146
    %851 = vmatpush2.msra.mxu0 %v145
    %852 = vmatprep.subr.mxu0 %v143
    %853 = vmatpush2.msra.mxu0 %v142
    %854 = vmatprep.subr.mxu0 %v140
    %855 = vmatpush2.msra.mxu0 %v139
    %856 = vmatprep.subr.mxu0 %v137
    %857 = vmatpush2.msra.mxu0 %v136
    %858 = vmatprep.subr.mxu0 %v134
    %859 = vmatpush2.msra.mxu0 %v133
    %860 = vmatprep.subr.mxu0 %v131
    %861 = vmatpush2.msra.mxu0 %v130
    %862 = vmatprep.subr.mxu0 %v128
    %863 = vmatpush2.msra.mxu0 %v127
    %864 = vmatprep.subr.mxu0 %v125
    %865 = vmatpush2.msra.mxu0 %v124
    %866 = vmatprep.subr.mxu0 %v122
    %867 = vmatpush2.msra.mxu0 %v121
    %868 = vmatprep.subr.mxu0 %v119
    %869 = vmatpush2.msra.mxu0 %v118
    %870 = vmatprep.subr.mxu0 %v116
    %871 = vmatpush2.msra.mxu0 %v115
    %872 = vmatprep.subr.mxu0 %v113
    %873 = vmatpush2.msra.mxu0 %v112
    %874 = vmatprep.subr.mxu0 %v110
    %875 = vmatpush2.msra.mxu0 %v109
    %876 = vmatprep.subr.mxu0 %v107
    %877 = vmatpush2.msra.mxu0 %v106
    %878 = vmatprep.subr.mxu0 %v104
    %879 = vmatpush2.msra.mxu0 %v103
    %880 = vmatprep.subr.mxu0 %v101
    %881 = vmatpush2.msra.mxu0 %v100
    %882 = vmatprep.mubr.f32.mxu0 %v482
    %883 = vmatmul.mubr.f32.gmra.mxu0 %v481
    %v884 = vpop.f32.mrf.mxu0
    %v885 = vadd.f32 0.0, %v884
    %v886 = vpop.f32.mrf.mxu0
    %v887 = vadd.f32 0.0, %v886
    %888 = vmatprep.mubr.f32.mxu0 %v491
    %889 = vmatmul.mubr.f32.gmra.mxu0 %v490
    %v890 = vpop.f32.mrf.mxu0
    %v891 = vadd.f32 0.0, %v890
    %v892 = vpop.f32.mrf.mxu0
    %v893 = vadd.f32 0.0, %v892
    %894 = vmatprep.mubr.f32.mxu0 %v500
    %895 = vmatmul.mubr.f32.gmra.mxu0 %v499
    %v896 = vpop.f32.mrf.mxu0
    %v897 = vadd.f32 0.0, %v896
    %v898 = vpop.f32.mrf.mxu0
    %v899 = vadd.f32 0.0, %v898
    %900 = vmatprep.mubr.f32.mxu0 %v509
    %901 = vmatmul.mubr.f32.gmra.mxu0 %v508
    %v902 = vpop.f32.mrf.mxu0
    %v903 = vadd.f32 0.0, %v902
    %v904 = vpop.f32.mrf.mxu0
    %v905 = vadd.f32 0.0, %v904
    %906 = vmatprep.mubr.f32.mxu0 %v518
    %907 = vmatmul.mubr.f32.gmra.mxu0 %v517
    %v908 = vpop.f32.mrf.mxu0
    %v909 = vadd.f32 0.0, %v908
    %v910 = vpop.f32.mrf.mxu0
    %v911 = vadd.f32 0.0, %v910
    %912 = vmatprep.mubr.f32.mxu0 %v527
    %913 = vmatmul.mubr.f32.gmra.mxu0 %v526
    %v914 = vpop.f32.mrf.mxu0
    %v915 = vadd.f32 0.0, %v914
    %v916 = vpop.f32.mrf.mxu0
    %v917 = vadd.f32 0.0, %v916
    %918 = vmatprep.mubr.f32.mxu0 %v536
    %919 = vmatmul.mubr.f32.gmra.mxu0 %v535
    %v920 = vpop.f32.mrf.mxu0
    %v921 = vadd.f32 0.0, %v920
    %v922 = vpop.f32.mrf.mxu0
    %v923 = vadd.f32 0.0, %v922
    %924 = vmatprep.mubr.f32.mxu0 %v545
    %925 = vmatmul.mubr.f32.gmra.mxu0 %v544
    %v926 = vpop.f32.mrf.mxu0
    %v927 = vadd.f32 0.0, %v926
    %v928 = vpop.f32.mrf.mxu0
    %v929 = vadd.f32 0.0, %v928
    %930 = vmatprep.mubr.f32.mxu0 %v554
    %931 = vmatmul.mubr.f32.gmra.mxu0 %v553
    %v932 = vpop.f32.mrf.mxu0
    %v933 = vadd.f32 0.0, %v932
    %v934 = vpop.f32.mrf.mxu0
    %v935 = vadd.f32 0.0, %v934
    %936 = vmatprep.mubr.f32.mxu0 %v563
    %937 = vmatmul.mubr.f32.gmra.mxu0 %v562
    %v938 = vpop.f32.mrf.mxu0
    %v939 = vadd.f32 0.0, %v938
    %v940 = vpop.f32.mrf.mxu0
    %v941 = vadd.f32 0.0, %v940
    %942 = vmatprep.mubr.f32.mxu0 %v572
    %943 = vmatmul.mubr.f32.gmra.mxu0 %v571
    %v944 = vpop.f32.mrf.mxu0
    %v945 = vadd.f32 0.0, %v944
    %v946 = vpop.f32.mrf.mxu0
    %v947 = vadd.f32 0.0, %v946
    %948 = vmatprep.mubr.f32.mxu0 %v581
    %949 = vmatmul.mubr.f32.gmra.mxu0 %v580
    %v950 = vpop.f32.mrf.mxu0
    %v951 = vadd.f32 0.0, %v950
    %v952 = vpop.f32.mrf.mxu0
    %v953 = vadd.f32 0.0, %v952
    %954 = vmatprep.mubr.f32.mxu0 %v590
    %955 = vmatmul.mubr.f32.gmra.mxu0 %v589
    %v956 = vpop.f32.mrf.mxu0
    %v957 = vadd.f32 0.0, %v956
    %v958 = vpop.f32.mrf.mxu0
    %v959 = vadd.f32 0.0, %v958
    %960 = vmatprep.mubr.f32.mxu0 %v599
    %961 = vmatmul.mubr.f32.gmra.mxu0 %v598
    %v962 = vpop.f32.mrf.mxu0
    %v963 = vadd.f32 0.0, %v962
    %v964 = vpop.f32.mrf.mxu0
    %v965 = vadd.f32 0.0, %v964
    %966 = vmatprep.mubr.f32.mxu0 %v608
    %967 = vmatmul.mubr.f32.gmra.mxu0 %v607
    %v968 = vpop.f32.mrf.mxu0
    %v969 = vadd.f32 0.0, %v968
    %v970 = vpop.f32.mrf.mxu0
    %v971 = vadd.f32 0.0, %v970
    %972 = vmatprep.mubr.f32.mxu0 %v617
    %973 = vmatmul.mubr.f32.gmra.mxu0 %v616
    %v974 = vpop.f32.mrf.mxu0
    %v975 = vadd.f32 0.0, %v974
    %v976 = vpop.f32.mrf.mxu0
    %v977 = vadd.f32 0.0, %v976
    %978 = vmatprep.mubr.f32.mxu0 %v626
    %979 = vmatmul.mubr.f32.gmra.mxu0 %v625
    %v980 = vpop.f32.mrf.mxu0
    %v981 = vadd.f32 0.0, %v980
    %v982 = vpop.f32.mrf.mxu0
    %v983 = vadd.f32 0.0, %v982
    %984 = vmatprep.mubr.f32.mxu0 %v635
    %985 = vmatmul.mubr.f32.gmra.mxu0 %v634
    %v986 = vpop.f32.mrf.mxu0
    %v987 = vadd.f32 0.0, %v986
    %v988 = vpop.f32.mrf.mxu0
    %v989 = vadd.f32 0.0, %v988
    %990 = vmatprep.mubr.f32.mxu0 %v644
    %991 = vmatmul.mubr.f32.gmra.mxu0 %v643
    %v992 = vpop.f32.mrf.mxu0
    %v993 = vadd.f32 0.0, %v992
    %v994 = vpop.f32.mrf.mxu0
    %v995 = vadd.f32 0.0, %v994
    %996 = vmatprep.mubr.f32.mxu0 %v653
    %997 = vmatmul.mubr.f32.gmra.mxu0 %v652
    %v998 = vpop.f32.mrf.mxu0
    %v999 = vadd.f32 0.0, %v998
    %v1000 = vpop.f32.mrf.mxu0
    %v1001 = vadd.f32 0.0, %v1000
    %1002 = vmatprep.mubr.f32.mxu0 %v662
    %1003 = vmatmul.mubr.f32.gmra.mxu0 %v661
    %v1004 = vpop.f32.mrf.mxu0
    %v1005 = vadd.f32 0.0, %v1004
    %v1006 = vpop.f32.mrf.mxu0
    %v1007 = vadd.f32 0.0, %v1006
    %1008 = vmatprep.mubr.f32.mxu0 %v671
    %1009 = vmatmul.mubr.f32.gmra.mxu0 %v670
    %v1010 = vpop.f32.mrf.mxu0
    %v1011 = vadd.f32 0.0, %v1010
    %v1012 = vpop.f32.mrf.mxu0
    %v1013 = vadd.f32 0.0, %v1012
    %1014 = vmatprep.mubr.f32.mxu0 %v680
    %1015 = vmatmul.mubr.f32.gmra.mxu0 %v679
    %v1016 = vpop.f32.mrf.mxu0
    %v1017 = vadd.f32 0.0, %v1016
    %v1018 = vpop.f32.mrf.mxu0
    %v1019 = vadd.f32 0.0, %v1018
    %1020 = vmatprep.mubr.f32.mxu0 %v689
    %1021 = vmatmul.mubr.f32.gmra.mxu0 %v688
    %v1022 = vpop.f32.mrf.mxu0
    %v1023 = vadd.f32 0.0, %v1022
    %v1024 = vpop.f32.mrf.mxu0
    %v1025 = vadd.f32 0.0, %v1024
    %1026 = vmatprep.mubr.f32.mxu0 %v698
    %1027 = vmatmul.mubr.f32.gmra.mxu0 %v697
    %v1028 = vpop.f32.mrf.mxu0
    %v1029 = vadd.f32 0.0, %v1028
    %v1030 = vpop.f32.mrf.mxu0
    %v1031 = vadd.f32 0.0, %v1030
    %1032 = vmatprep.mubr.f32.mxu0 %v707
    %1033 = vmatmul.mubr.f32.gmra.mxu0 %v706
    %v1034 = vpop.f32.mrf.mxu0
    %v1035 = vadd.f32 0.0, %v1034
    %v1036 = vpop.f32.mrf.mxu0
    %v1037 = vadd.f32 0.0, %v1036
    %1038 = vmatprep.mubr.f32.mxu0 %v716
    %1039 = vmatmul.mubr.f32.gmra.mxu0 %v715
    %v1040 = vpop.f32.mrf.mxu0
    %v1041 = vadd.f32 0.0, %v1040
    %v1042 = vpop.f32.mrf.mxu0
    %v1043 = vadd.f32 0.0, %v1042
    %1044 = vmatprep.mubr.f32.mxu0 %v725
    %1045 = vmatmul.mubr.f32.gmra.mxu0 %v724
    %v1046 = vpop.f32.mrf.mxu0
    %v1047 = vadd.f32 0.0, %v1046
    %v1048 = vpop.f32.mrf.mxu0
    %v1049 = vadd.f32 0.0, %v1048
    %1050 = vdwg.mxu0
    %1051 = vmatprep.subr.mxu0 %v194
    %1052 = vmatpush1.msra.mxu0 %v193
    %1053 = vmatprep.subr.mxu0 %v191
    %1054 = vmatpush1.msra.mxu0 %v190
    %1055 = vmatprep.subr.mxu0 %v188
    %1056 = vmatpush1.msra.mxu0 %v187
    %1057 = vmatprep.subr.mxu0 %v185
    %1058 = vmatpush1.msra.mxu0 %v184
    %1059 = vmatprep.subr.mxu0 %v182
    %1060 = vmatpush1.msra.mxu0 %v181
    %1061 = vmatprep.subr.mxu0 %v179
    %1062 = vmatpush1.msra.mxu0 %v178
    %1063 = vmatprep.subr.mxu0 %v176
    %1064 = vmatpush1.msra.mxu0 %v175
    %1065 = vmatprep.subr.mxu0 %v173
    %1066 = vmatpush1.msra.mxu0 %v172
    %1067 = vmatprep.subr.mxu0 %v170
    %1068 = vmatpush1.msra.mxu0 %v169
    %1069 = vmatprep.subr.mxu0 %v167
    %1070 = vmatpush1.msra.mxu0 %v166
    %1071 = vmatprep.subr.mxu0 %v164
    %1072 = vmatpush1.msra.mxu0 %v163
    %1073 = vmatprep.subr.mxu0 %v161
    %1074 = vmatpush1.msra.mxu0 %v160
    %1075 = vmatprep.subr.mxu0 %v158
    %1076 = vmatpush1.msra.mxu0 %v157
    %1077 = vmatprep.subr.mxu0 %v155
    %1078 = vmatpush1.msra.mxu0 %v154
    %1079 = vmatprep.subr.mxu0 %v152
    %1080 = vmatpush1.msra.mxu0 %v151
    %1081 = vmatprep.subr.mxu0 %v149
    %1082 = vmatpush1.msra.mxu0 %v148
    %1083 = vmatprep.subr.mxu0 %v242
    %1084 = vmatpush2.msra.mxu0 %v241
    %1085 = vmatprep.subr.mxu0 %v239
    %1086 = vmatpush2.msra.mxu0 %v238
    %1087 = vmatprep.subr.mxu0 %v236
    %1088 = vmatpush2.msra.mxu0 %v235
    %1089 = vmatprep.subr.mxu0 %v233
    %1090 = vmatpush2.msra.mxu0 %v232
    %1091 = vmatprep.subr.mxu0 %v230
    %1092 = vmatpush2.msra.mxu0 %v229
    %1093 = vmatprep.subr.mxu0 %v227
    %1094 = vmatpush2.msra.mxu0 %v226
    %1095 = vmatprep.subr.mxu0 %v224
    %1096 = vmatpush2.msra.mxu0 %v223
    %1097 = vmatprep.subr.mxu0 %v221
    %1098 = vmatpush2.msra.mxu0 %v220
    %1099 = vmatprep.subr.mxu0 %v218
    %1100 = vmatpush2.msra.mxu0 %v217
    %1101 = vmatprep.subr.mxu0 %v215
    %1102 = vmatpush2.msra.mxu0 %v214
    %1103 = vmatprep.subr.mxu0 %v212
    %1104 = vmatpush2.msra.mxu0 %v211
    %1105 = vmatprep.subr.mxu0 %v209
    %1106 = vmatpush2.msra.mxu0 %v208
    %1107 = vmatprep.subr.mxu0 %v206
    %1108 = vmatpush2.msra.mxu0 %v205
    %1109 = vmatprep.subr.mxu0 %v203
    %1110 = vmatpush2.msra.mxu0 %v202
    %1111 = vmatprep.subr.mxu0 %v200
    %1112 = vmatpush2.msra.mxu0 %v199
    %1113 = vmatprep.subr.mxu0 %v197
    %1114 = vmatpush2.msra.mxu0 %v196
    %1115 = vmatprep.mubr.f32.mxu0 %v484
    %1116 = vmatmul.mubr.f32.gmra.mxu0 %v483
    %v1117 = vpop.f32.mrf.mxu0
    %v1118 = vadd.f32 %v885, %v1117
    %v1119 = vpop.f32.mrf.mxu0
    %v1120 = vadd.f32 %v887, %v1119
    %1121 = vmatprep.mubr.f32.mxu0 %v493
    %1122 = vmatmul.mubr.f32.gmra.mxu0 %v492
    %v1123 = vpop.f32.mrf.mxu0
    %v1124 = vadd.f32 %v891, %v1123
    %v1125 = vpop.f32.mrf.mxu0
    %v1126 = vadd.f32 %v893, %v1125
    %1127 = vmatprep.mubr.f32.mxu0 %v502
    %1128 = vmatmul.mubr.f32.gmra.mxu0 %v501
    %v1129 = vpop.f32.mrf.mxu0
    %v1130 = vadd.f32 %v897, %v1129
    %v1131 = vpop.f32.mrf.mxu0
    %v1132 = vadd.f32 %v899, %v1131
    %1133 = vmatprep.mubr.f32.mxu0 %v511
    %1134 = vmatmul.mubr.f32.gmra.mxu0 %v510
    %v1135 = vpop.f32.mrf.mxu0
    %v1136 = vadd.f32 %v903, %v1135
    %v1137 = vpop.f32.mrf.mxu0
    %v1138 = vadd.f32 %v905, %v1137
    %1139 = vmatprep.mubr.f32.mxu0 %v520
    %1140 = vmatmul.mubr.f32.gmra.mxu0 %v519
    %v1141 = vpop.f32.mrf.mxu0
    %v1142 = vadd.f32 %v909, %v1141
    %v1143 = vpop.f32.mrf.mxu0
    %v1144 = vadd.f32 %v911, %v1143
    %1145 = vmatprep.mubr.f32.mxu0 %v529
    %1146 = vmatmul.mubr.f32.gmra.mxu0 %v528
    %v1147 = vpop.f32.mrf.mxu0
    %v1148 = vadd.f32 %v915, %v1147
    %v1149 = vpop.f32.mrf.mxu0
    %v1150 = vadd.f32 %v917, %v1149
    %1151 = vmatprep.mubr.f32.mxu0 %v538
    %1152 = vmatmul.mubr.f32.gmra.mxu0 %v537
    %v1153 = vpop.f32.mrf.mxu0
    %v1154 = vadd.f32 %v921, %v1153
    %v1155 = vpop.f32.mrf.mxu0
    %v1156 = vadd.f32 %v923, %v1155
    %1157 = vmatprep.mubr.f32.mxu0 %v547
    %1158 = vmatmul.mubr.f32.gmra.mxu0 %v546
    %v1159 = vpop.f32.mrf.mxu0
    %v1160 = vadd.f32 %v927, %v1159
    %v1161 = vpop.f32.mrf.mxu0
    %v1162 = vadd.f32 %v929, %v1161
    %1163 = vmatprep.mubr.f32.mxu0 %v556
    %1164 = vmatmul.mubr.f32.gmra.mxu0 %v555
    %v1165 = vpop.f32.mrf.mxu0
    %v1166 = vadd.f32 %v933, %v1165
    %v1167 = vpop.f32.mrf.mxu0
    %v1168 = vadd.f32 %v935, %v1167
    %1169 = vmatprep.mubr.f32.mxu0 %v565
    %1170 = vmatmul.mubr.f32.gmra.mxu0 %v564
    %v1171 = vpop.f32.mrf.mxu0
    %v1172 = vadd.f32 %v939, %v1171
    %v1173 = vpop.f32.mrf.mxu0
    %v1174 = vadd.f32 %v941, %v1173
    %1175 = vmatprep.mubr.f32.mxu0 %v574
    %1176 = vmatmul.mubr.f32.gmra.mxu0 %v573
    %v1177 = vpop.f32.mrf.mxu0
    %v1178 = vadd.f32 %v945, %v1177
    %v1179 = vpop.f32.mrf.mxu0
    %v1180 = vadd.f32 %v947, %v1179
    %1181 = vmatprep.mubr.f32.mxu0 %v583
    %1182 = vmatmul.mubr.f32.gmra.mxu0 %v582
    %v1183 = vpop.f32.mrf.mxu0
    %v1184 = vadd.f32 %v951, %v1183
    %v1185 = vpop.f32.mrf.mxu0
    %v1186 = vadd.f32 %v953, %v1185
    %1187 = vmatprep.mubr.f32.mxu0 %v592
    %1188 = vmatmul.mubr.f32.gmra.mxu0 %v591
    %v1189 = vpop.f32.mrf.mxu0
    %v1190 = vadd.f32 %v957, %v1189
    %v1191 = vpop.f32.mrf.mxu0
    %v1192 = vadd.f32 %v959, %v1191
    %1193 = vmatprep.mubr.f32.mxu0 %v601
    %1194 = vmatmul.mubr.f32.gmra.mxu0 %v600
    %v1195 = vpop.f32.mrf.mxu0
    %v1196 = vadd.f32 %v963, %v1195
    %v1197 = vpop.f32.mrf.mxu0
    %v1198 = vadd.f32 %v965, %v1197
    %1199 = vmatprep.mubr.f32.mxu0 %v610
    %1200 = vmatmul.mubr.f32.gmra.mxu0 %v609
    %v1201 = vpop.f32.mrf.mxu0
    %v1202 = vadd.f32 %v969, %v1201
    %v1203 = vpop.f32.mrf.mxu0
    %v1204 = vadd.f32 %v971, %v1203
    %1205 = vmatprep.mubr.f32.mxu0 %v619
    %1206 = vmatmul.mubr.f32.gmra.mxu0 %v618
    %v1207 = vpop.f32.mrf.mxu0
    %v1208 = vadd.f32 %v975, %v1207
    %v1209 = vpop.f32.mrf.mxu0
    %v1210 = vadd.f32 %v977, %v1209
    %1211 = vmatprep.mubr.f32.mxu0 %v628
    %1212 = vmatmul.mubr.f32.gmra.mxu0 %v627
    %v1213 = vpop.f32.mrf.mxu0
    %v1214 = vadd.f32 %v981, %v1213
    %v1215 = vpop.f32.mrf.mxu0
    %v1216 = vadd.f32 %v983, %v1215
    %1217 = vmatprep.mubr.f32.mxu0 %v637
    %1218 = vmatmul.mubr.f32.gmra.mxu0 %v636
    %v1219 = vpop.f32.mrf.mxu0
    %v1220 = vadd.f32 %v987, %v1219
    %v1221 = vpop.f32.mrf.mxu0
    %v1222 = vadd.f32 %v989, %v1221
    %1223 = vmatprep.mubr.f32.mxu0 %v646
    %1224 = vmatmul.mubr.f32.gmra.mxu0 %v645
    %v1225 = vpop.f32.mrf.mxu0
    %v1226 = vadd.f32 %v993, %v1225
    %v1227 = vpop.f32.mrf.mxu0
    %v1228 = vadd.f32 %v995, %v1227
    %1229 = vmatprep.mubr.f32.mxu0 %v655
    %1230 = vmatmul.mubr.f32.gmra.mxu0 %v654
    %v1231 = vpop.f32.mrf.mxu0
    %v1232 = vadd.f32 %v999, %v1231
    %v1233 = vpop.f32.mrf.mxu0
    %v1234 = vadd.f32 %v1001, %v1233
    %1235 = vmatprep.mubr.f32.mxu0 %v664
    %1236 = vmatmul.mubr.f32.gmra.mxu0 %v663
    %v1237 = vpop.f32.mrf.mxu0
    %v1238 = vadd.f32 %v1005, %v1237
    %v1239 = vpop.f32.mrf.mxu0
    %v1240 = vadd.f32 %v1007, %v1239
    %1241 = vmatprep.mubr.f32.mxu0 %v673
    %1242 = vmatmul.mubr.f32.gmra.mxu0 %v672
    %v1243 = vpop.f32.mrf.mxu0
    %v1244 = vadd.f32 %v1011, %v1243
    %v1245 = vpop.f32.mrf.mxu0
    %v1246 = vadd.f32 %v1013, %v1245
    %1247 = vmatprep.mubr.f32.mxu0 %v682
    %1248 = vmatmul.mubr.f32.gmra.mxu0 %v681
    %v1249 = vpop.f32.mrf.mxu0
    %v1250 = vadd.f32 %v1017, %v1249
    %v1251 = vpop.f32.mrf.mxu0
    %v1252 = vadd.f32 %v1019, %v1251
    %1253 = vmatprep.mubr.f32.mxu0 %v691
    %1254 = vmatmul.mubr.f32.gmra.mxu0 %v690
    %v1255 = vpop.f32.mrf.mxu0
    %v1256 = vadd.f32 %v1023, %v1255
    %v1257 = vpop.f32.mrf.mxu0
    %v1258 = vadd.f32 %v1025, %v1257
    %1259 = vmatprep.mubr.f32.mxu0 %v700
    %1260 = vmatmul.mubr.f32.gmra.mxu0 %v699
    %v1261 = vpop.f32.mrf.mxu0
    %v1262 = vadd.f32 %v1029, %v1261
    %v1263 = vpop.f32.mrf.mxu0
    %v1264 = vadd.f32 %v1031, %v1263
    %1265 = vmatprep.mubr.f32.mxu0 %v709
    %1266 = vmatmul.mubr.f32.gmra.mxu0 %v708
    %v1267 = vpop.f32.mrf.mxu0
    %v1268 = vadd.f32 %v1035, %v1267
    %v1269 = vpop.f32.mrf.mxu0
    %v1270 = vadd.f32 %v1037, %v1269
    %1271 = vmatprep.mubr.f32.mxu0 %v718
    %1272 = vmatmul.mubr.f32.gmra.mxu0 %v717
    %v1273 = vpop.f32.mrf.mxu0
    %v1274 = vadd.f32 %v1041, %v1273
    %v1275 = vpop.f32.mrf.mxu0
    %v1276 = vadd.f32 %v1043, %v1275
    %1277 = vmatprep.mubr.f32.mxu0 %v727
    %1278 = vmatmul.mubr.f32.gmra.mxu0 %v726
    %v1279 = vpop.f32.mrf.mxu0
    %v1280 = vadd.f32 %v1047, %v1279
    %v1281 = vpop.f32.mrf.mxu0
    %v1282 = vadd.f32 %v1049, %v1281
    %1283 = vdwg.mxu0
    %1284 = vmatprep.subr.mxu0 %v290
    %1285 = vmatpush1.msra.mxu0 %v289
    %1286 = vmatprep.subr.mxu0 %v287
    %1287 = vmatpush1.msra.mxu0 %v286
    %1288 = vmatprep.subr.mxu0 %v284
    %1289 = vmatpush1.msra.mxu0 %v283
    %1290 = vmatprep.subr.mxu0 %v281
    %1291 = vmatpush1.msra.mxu0 %v280
    %1292 = vmatprep.subr.mxu0 %v278
    %1293 = vmatpush1.msra.mxu0 %v277
    %1294 = vmatprep.subr.mxu0 %v275
    %1295 = vmatpush1.msra.mxu0 %v274
    %1296 = vmatprep.subr.mxu0 %v272
    %1297 = vmatpush1.msra.mxu0 %v271
    %1298 = vmatprep.subr.mxu0 %v269
    %1299 = vmatpush1.msra.mxu0 %v268
    %1300 = vmatprep.subr.mxu0 %v266
    %1301 = vmatpush1.msra.mxu0 %v265
    %1302 = vmatprep.subr.mxu0 %v263
    %1303 = vmatpush1.msra.mxu0 %v262
    %1304 = vmatprep.subr.mxu0 %v260
    %1305 = vmatpush1.msra.mxu0 %v259
    %1306 = vmatprep.subr.mxu0 %v257
    %1307 = vmatpush1.msra.mxu0 %v256
    %1308 = vmatprep.subr.mxu0 %v254
    %1309 = vmatpush1.msra.mxu0 %v253
    %1310 = vmatprep.subr.mxu0 %v251
    %1311 = vmatpush1.msra.mxu0 %v250
    %1312 = vmatprep.subr.mxu0 %v248
    %1313 = vmatpush1.msra.mxu0 %v247
    %1314 = vmatprep.subr.mxu0 %v245
    %1315 = vmatpush1.msra.mxu0 %v244
    %1316 = vmatprep.subr.mxu0 %v338
    %1317 = vmatpush2.msra.mxu0 %v337
    %1318 = vmatprep.subr.mxu0 %v335
    %1319 = vmatpush2.msra.mxu0 %v334
    %1320 = vmatprep.subr.mxu0 %v332
    %1321 = vmatpush2.msra.mxu0 %v331
    %1322 = vmatprep.subr.mxu0 %v329
    %1323 = vmatpush2.msra.mxu0 %v328
    %1324 = vmatprep.subr.mxu0 %v326
    %1325 = vmatpush2.msra.mxu0 %v325
    %1326 = vmatprep.subr.mxu0 %v323
    %1327 = vmatpush2.msra.mxu0 %v322
    %1328 = vmatprep.subr.mxu0 %v320
    %1329 = vmatpush2.msra.mxu0 %v319
    %1330 = vmatprep.subr.mxu0 %v317
    %1331 = vmatpush2.msra.mxu0 %v316
    %1332 = vmatprep.subr.mxu0 %v314
    %1333 = vmatpush2.msra.mxu0 %v313
    %1334 = vmatprep.subr.mxu0 %v311
    %1335 = vmatpush2.msra.mxu0 %v310
    %1336 = vmatprep.subr.mxu0 %v308
    %1337 = vmatpush2.msra.mxu0 %v307
    %1338 = vmatprep.subr.mxu0 %v305
    %1339 = vmatpush2.msra.mxu0 %v304
    %1340 = vmatprep.subr.mxu0 %v302
    %1341 = vmatpush2.msra.mxu0 %v301
    %1342 = vmatprep.subr.mxu0 %v299
    %1343 = vmatpush2.msra.mxu0 %v298
    %1344 = vmatprep.subr.mxu0 %v296
    %1345 = vmatpush2.msra.mxu0 %v295
    %1346 = vmatprep.subr.mxu0 %v293
    %1347 = vmatpush2.msra.mxu0 %v292
    %1348 = vmatprep.mubr.f32.mxu0 %v486
    %1349 = vmatmul.mubr.f32.gmra.mxu0 %v485
    %v1350 = vpop.f32.mrf.mxu0
    %v1351 = vadd.f32 %v1118, %v1350
    %v1352 = vpop.f32.mrf.mxu0
    %v1353 = vadd.f32 %v1120, %v1352
    %1354 = vmatprep.mubr.f32.mxu0 %v495
    %1355 = vmatmul.mubr.f32.gmra.mxu0 %v494
    %v1356 = vpop.f32.mrf.mxu0
    %v1357 = vadd.f32 %v1124, %v1356
    %v1358 = vpop.f32.mrf.mxu0
    %v1359 = vadd.f32 %v1126, %v1358
    %1360 = vmatprep.mubr.f32.mxu0 %v504
    %1361 = vmatmul.mubr.f32.gmra.mxu0 %v503
    %v1362 = vpop.f32.mrf.mxu0
    %v1363 = vadd.f32 %v1130, %v1362
    %v1364 = vpop.f32.mrf.mxu0
    %v1365 = vadd.f32 %v1132, %v1364
    %1366 = vmatprep.mubr.f32.mxu0 %v513
    %1367 = vmatmul.mubr.f32.gmra.mxu0 %v512
    %v1368 = vpop.f32.mrf.mxu0
    %v1369 = vadd.f32 %v1136, %v1368
    %v1370 = vpop.f32.mrf.mxu0
    %v1371 = vadd.f32 %v1138, %v1370
    %1372 = vmatprep.mubr.f32.mxu0 %v522
    %1373 = vmatmul.mubr.f32.gmra.mxu0 %v521
    %v1374 = vpop.f32.mrf.mxu0
    %v1375 = vadd.f32 %v1142, %v1374
    %v1376 = vpop.f32.mrf.mxu0
    %v1377 = vadd.f32 %v1144, %v1376
    %1378 = vmatprep.mubr.f32.mxu0 %v531
    %1379 = vmatmul.mubr.f32.gmra.mxu0 %v530
    %v1380 = vpop.f32.mrf.mxu0
    %v1381 = vadd.f32 %v1148, %v1380
    %v1382 = vpop.f32.mrf.mxu0
    %v1383 = vadd.f32 %v1150, %v1382
    %1384 = vmatprep.mubr.f32.mxu0 %v540
    %1385 = vmatmul.mubr.f32.gmra.mxu0 %v539
    %v1386 = vpop.f32.mrf.mxu0
    %v1387 = vadd.f32 %v1154, %v1386
    %v1388 = vpop.f32.mrf.mxu0
    %v1389 = vadd.f32 %v1156, %v1388
    %1390 = vmatprep.mubr.f32.mxu0 %v549
    %1391 = vmatmul.mubr.f32.gmra.mxu0 %v548
    %v1392 = vpop.f32.mrf.mxu0
    %v1393 = vadd.f32 %v1160, %v1392
    %v1394 = vpop.f32.mrf.mxu0
    %v1395 = vadd.f32 %v1162, %v1394
    %1396 = vmatprep.mubr.f32.mxu0 %v558
    %1397 = vmatmul.mubr.f32.gmra.mxu0 %v557
    %v1398 = vpop.f32.mrf.mxu0
    %v1399 = vadd.f32 %v1166, %v1398
    %v1400 = vpop.f32.mrf.mxu0
    %v1401 = vadd.f32 %v1168, %v1400
    %1402 = vmatprep.mubr.f32.mxu0 %v567
    %1403 = vmatmul.mubr.f32.gmra.mxu0 %v566
    %v1404 = vpop.f32.mrf.mxu0
    %v1405 = vadd.f32 %v1172, %v1404
    %v1406 = vpop.f32.mrf.mxu0
    %v1407 = vadd.f32 %v1174, %v1406
    %1408 = vmatprep.mubr.f32.mxu0 %v576
    %1409 = vmatmul.mubr.f32.gmra.mxu0 %v575
    %v1410 = vpop.f32.mrf.mxu0
    %v1411 = vadd.f32 %v1178, %v1410
    %v1412 = vpop.f32.mrf.mxu0
    %v1413 = vadd.f32 %v1180, %v1412
    %1414 = vmatprep.mubr.f32.mxu0 %v585
    %1415 = vmatmul.mubr.f32.gmra.mxu0 %v584
    %v1416 = vpop.f32.mrf.mxu0
    %v1417 = vadd.f32 %v1184, %v1416
    %v1418 = vpop.f32.mrf.mxu0
    %v1419 = vadd.f32 %v1186, %v1418
    %1420 = vmatprep.mubr.f32.mxu0 %v594
    %1421 = vmatmul.mubr.f32.gmra.mxu0 %v593
    %v1422 = vpop.f32.mrf.mxu0
    %v1423 = vadd.f32 %v1190, %v1422
    %v1424 = vpop.f32.mrf.mxu0
    %v1425 = vadd.f32 %v1192, %v1424
    %1426 = vmatprep.mubr.f32.mxu0 %v603
    %1427 = vmatmul.mubr.f32.gmra.mxu0 %v602
    %v1428 = vpop.f32.mrf.mxu0
    %v1429 = vadd.f32 %v1196, %v1428
    %v1430 = vpop.f32.mrf.mxu0
    %v1431 = vadd.f32 %v1198, %v1430
    %1432 = vmatprep.mubr.f32.mxu0 %v612
    %1433 = vmatmul.mubr.f32.gmra.mxu0 %v611
    %v1434 = vpop.f32.mrf.mxu0
    %v1435 = vadd.f32 %v1202, %v1434
    %v1436 = vpop.f32.mrf.mxu0
    %v1437 = vadd.f32 %v1204, %v1436
    %1438 = vmatprep.mubr.f32.mxu0 %v621
    %1439 = vmatmul.mubr.f32.gmra.mxu0 %v620
    %v1440 = vpop.f32.mrf.mxu0
    %v1441 = vadd.f32 %v1208, %v1440
    %v1442 = vpop.f32.mrf.mxu0
    %v1443 = vadd.f32 %v1210, %v1442
    %1444 = vmatprep.mubr.f32.mxu0 %v630
    %1445 = vmatmul.mubr.f32.gmra.mxu0 %v629
    %v1446 = vpop.f32.mrf.mxu0
    %v1447 = vadd.f32 %v1214, %v1446
    %v1448 = vpop.f32.mrf.mxu0
    %v1449 = vadd.f32 %v1216, %v1448
    %1450 = vmatprep.mubr.f32.mxu0 %v639
    %1451 = vmatmul.mubr.f32.gmra.mxu0 %v638
    %v1452 = vpop.f32.mrf.mxu0
    %v1453 = vadd.f32 %v1220, %v1452
    %v1454 = vpop.f32.mrf.mxu0
    %v1455 = vadd.f32 %v1222, %v1454
    %1456 = vmatprep.mubr.f32.mxu0 %v648
    %1457 = vmatmul.mubr.f32.gmra.mxu0 %v647
    %v1458 = vpop.f32.mrf.mxu0
    %v1459 = vadd.f32 %v1226, %v1458
    %v1460 = vpop.f32.mrf.mxu0
    %v1461 = vadd.f32 %v1228, %v1460
    %1462 = vmatprep.mubr.f32.mxu0 %v657
    %1463 = vmatmul.mubr.f32.gmra.mxu0 %v656
    %v1464 = vpop.f32.mrf.mxu0
    %v1465 = vadd.f32 %v1232, %v1464
    %v1466 = vpop.f32.mrf.mxu0
    %v1467 = vadd.f32 %v1234, %v1466
    %1468 = vmatprep.mubr.f32.mxu0 %v666
    %1469 = vmatmul.mubr.f32.gmra.mxu0 %v665
    %v1470 = vpop.f32.mrf.mxu0
    %v1471 = vadd.f32 %v1238, %v1470
    %v1472 = vpop.f32.mrf.mxu0
    %v1473 = vadd.f32 %v1240, %v1472
    %1474 = vmatprep.mubr.f32.mxu0 %v675
    %1475 = vmatmul.mubr.f32.gmra.mxu0 %v674
    %v1476 = vpop.f32.mrf.mxu0
    %v1477 = vadd.f32 %v1244, %v1476
    %v1478 = vpop.f32.mrf.mxu0
    %v1479 = vadd.f32 %v1246, %v1478
    %1480 = vmatprep.mubr.f32.mxu0 %v684
    %1481 = vmatmul.mubr.f32.gmra.mxu0 %v683
    %v1482 = vpop.f32.mrf.mxu0
    %v1483 = vadd.f32 %v1250, %v1482
    %v1484 = vpop.f32.mrf.mxu0
    %v1485 = vadd.f32 %v1252, %v1484
    %1486 = vmatprep.mubr.f32.mxu0 %v693
    %1487 = vmatmul.mubr.f32.gmra.mxu0 %v692
    %v1488 = vpop.f32.mrf.mxu0
    %v1489 = vadd.f32 %v1256, %v1488
    %v1490 = vpop.f32.mrf.mxu0
    %v1491 = vadd.f32 %v1258, %v1490
    %1492 = vmatprep.mubr.f32.mxu0 %v702
    %1493 = vmatmul.mubr.f32.gmra.mxu0 %v701
    %v1494 = vpop.f32.mrf.mxu0
    %v1495 = vadd.f32 %v1262, %v1494
    %v1496 = vpop.f32.mrf.mxu0
    %v1497 = vadd.f32 %v1264, %v1496
    %1498 = vmatprep.mubr.f32.mxu0 %v711
    %1499 = vmatmul.mubr.f32.gmra.mxu0 %v710
    %v1500 = vpop.f32.mrf.mxu0
    %v1501 = vadd.f32 %v1268, %v1500
    %v1502 = vpop.f32.mrf.mxu0
    %v1503 = vadd.f32 %v1270, %v1502
    %1504 = vmatprep.mubr.f32.mxu0 %v720
    %1505 = vmatmul.mubr.f32.gmra.mxu0 %v719
    %v1506 = vpop.f32.mrf.mxu0
    %v1507 = vadd.f32 %v1274, %v1506
    %v1508 = vpop.f32.mrf.mxu0
    %v1509 = vadd.f32 %v1276, %v1508
    %1510 = vmatprep.mubr.f32.mxu0 %v729
    %1511 = vmatmul.mubr.f32.gmra.mxu0 %v728
    %v1512 = vpop.f32.mrf.mxu0
    %v1513 = vadd.f32 %v1280, %v1512
    %v1514 = vpop.f32.mrf.mxu0
    %v1515 = vadd.f32 %v1282, %v1514
    %1516 = vdwg.mxu0
    %1517 = vmatprep.subr.mxu0 %v386
    %1518 = vmatpush1.msra.mxu0 %v385
    %1519 = vmatprep.subr.mxu0 %v383
    %1520 = vmatpush1.msra.mxu0 %v382
    %1521 = vmatprep.subr.mxu0 %v380
    %1522 = vmatpush1.msra.mxu0 %v379
    %1523 = vmatprep.subr.mxu0 %v377
    %1524 = vmatpush1.msra.mxu0 %v376
    %1525 = vmatprep.subr.mxu0 %v374
    %1526 = vmatpush1.msra.mxu0 %v373
    %1527 = vmatprep.subr.mxu0 %v371
    %1528 = vmatpush1.msra.mxu0 %v370
    %1529 = vmatprep.subr.mxu0 %v368
    %1530 = vmatpush1.msra.mxu0 %v367
    %1531 = vmatprep.subr.mxu0 %v365
    %1532 = vmatpush1.msra.mxu0 %v364
    %1533 = vmatprep.subr.mxu0 %v362
    %1534 = vmatpush1.msra.mxu0 %v361
    %1535 = vmatprep.subr.mxu0 %v359
    %1536 = vmatpush1.msra.mxu0 %v358
    %1537 = vmatprep.subr.mxu0 %v356
    %1538 = vmatpush1.msra.mxu0 %v355
    %1539 = vmatprep.subr.mxu0 %v353
    %1540 = vmatpush1.msra.mxu0 %v352
    %1541 = vmatprep.subr.mxu0 %v350
    %1542 = vmatpush1.msra.mxu0 %v349
    %1543 = vmatprep.subr.mxu0 %v347
    %1544 = vmatpush1.msra.mxu0 %v346
    %1545 = vmatprep.subr.mxu0 %v344
    %1546 = vmatpush1.msra.mxu0 %v343
    %1547 = vmatprep.subr.mxu0 %v341
    %1548 = vmatpush1.msra.mxu0 %v340
    %1549 = vmatprep.subr.mxu0 %v434
    %1550 = vmatpush2.msra.mxu0 %v433
    %1551 = vmatprep.subr.mxu0 %v431
    %1552 = vmatpush2.msra.mxu0 %v430
    %1553 = vmatprep.subr.mxu0 %v428
    %1554 = vmatpush2.msra.mxu0 %v427
    %1555 = vmatprep.subr.mxu0 %v425
    %1556 = vmatpush2.msra.mxu0 %v424
    %1557 = vmatprep.subr.mxu0 %v422
    %1558 = vmatpush2.msra.mxu0 %v421
    %1559 = vmatprep.subr.mxu0 %v419
    %1560 = vmatpush2.msra.mxu0 %v418
    %1561 = vmatprep.subr.mxu0 %v416
    %1562 = vmatpush2.msra.mxu0 %v415
    %1563 = vmatprep.subr.mxu0 %v413
    %1564 = vmatpush2.msra.mxu0 %v412
    %1565 = vmatprep.subr.mxu0 %v410
    %1566 = vmatpush2.msra.mxu0 %v409
    %1567 = vmatprep.subr.mxu0 %v407
    %1568 = vmatpush2.msra.mxu0 %v406
    %1569 = vmatprep.subr.mxu0 %v404
    %1570 = vmatpush2.msra.mxu0 %v403
    %1571 = vmatprep.subr.mxu0 %v401
    %1572 = vmatpush2.msra.mxu0 %v400
    %1573 = vmatprep.subr.mxu0 %v398
    %1574 = vmatpush2.msra.mxu0 %v397
    %1575 = vmatprep.subr.mxu0 %v395
    %1576 = vmatpush2.msra.mxu0 %v394
    %1577 = vmatprep.subr.mxu0 %v392
    %1578 = vmatpush2.msra.mxu0 %v391
    %1579 = vmatprep.subr.mxu0 %v389
    %1580 = vmatpush2.msra.mxu0 %v388
    %1581 = vmatprep.mubr.f32.mxu0 %v488
    %1582 = vmatmul.mubr.f32.gmra.mxu0 %v487
    %v1583 = vpop.f32.mrf.mxu0
    %v1584 = vadd.f32 %v1351, %v1583
    %v1585 = vpop.f32.mrf.mxu0
    %v1586 = vadd.f32 %v1353, %v1585
    %1587 = vmatprep.mubr.f32.mxu0 %v497
    %1588 = vmatmul.mubr.f32.gmra.mxu0 %v496
    %v1589 = vpop.f32.mrf.mxu0
    %v1590 = vadd.f32 %v1357, %v1589
    %v1591 = vpop.f32.mrf.mxu0
    %v1592 = vadd.f32 %v1359, %v1591
    %1593 = vmatprep.mubr.f32.mxu0 %v506
    %1594 = vmatmul.mubr.f32.gmra.mxu0 %v505
    %v1595 = vpop.f32.mrf.mxu0
    %v1596 = vadd.f32 %v1363, %v1595
    %v1597 = vpop.f32.mrf.mxu0
    %v1598 = vadd.f32 %v1365, %v1597
    %1599 = vmatprep.mubr.f32.mxu0 %v515
    %1600 = vmatmul.mubr.f32.gmra.mxu0 %v514
    %v1601 = vpop.f32.mrf.mxu0
    %v1602 = vadd.f32 %v1369, %v1601
    %v1603 = vpop.f32.mrf.mxu0
    %v1604 = vadd.f32 %v1371, %v1603
    %1605 = vmatprep.mubr.f32.mxu0 %v524
    %1606 = vmatmul.mubr.f32.gmra.mxu0 %v523
    %v1607 = vpop.f32.mrf.mxu0
    %v1608 = vadd.f32 %v1375, %v1607
    %v1609 = vpop.f32.mrf.mxu0
    %v1610 = vadd.f32 %v1377, %v1609
    %1611 = vmatprep.mubr.f32.mxu0 %v533
    %1612 = vmatmul.mubr.f32.gmra.mxu0 %v532
    %v1613 = vpop.f32.mrf.mxu0
    %v1614 = vadd.f32 %v1381, %v1613
    %v1615 = vpop.f32.mrf.mxu0
    %v1616 = vadd.f32 %v1383, %v1615
    %1617 = vmatprep.mubr.f32.mxu0 %v542
    %1618 = vmatmul.mubr.f32.gmra.mxu0 %v541
    %v1619 = vpop.f32.mrf.mxu0
    %v1620 = vadd.f32 %v1387, %v1619
    %v1621 = vpop.f32.mrf.mxu0
    %v1622 = vadd.f32 %v1389, %v1621
    %1623 = vmatprep.mubr.f32.mxu0 %v551
    %1624 = vmatmul.mubr.f32.gmra.mxu0 %v550
    %v1625 = vpop.f32.mrf.mxu0
    %v1626 = vadd.f32 %v1393, %v1625
    %v1627 = vpop.f32.mrf.mxu0
    %v1628 = vadd.f32 %v1395, %v1627
    %1629 = vmatprep.mubr.f32.mxu0 %v560
    %1630 = vmatmul.mubr.f32.gmra.mxu0 %v559
    %v1631 = vpop.f32.mrf.mxu0
    %v1632 = vadd.f32 %v1399, %v1631
    %v1633 = vpop.f32.mrf.mxu0
    %v1634 = vadd.f32 %v1401, %v1633
    %1635 = vmatprep.mubr.f32.mxu0 %v569
    %1636 = vmatmul.mubr.f32.gmra.mxu0 %v568
    %v1637 = vpop.f32.mrf.mxu0
    %v1638 = vadd.f32 %v1405, %v1637
    %v1639 = vpop.f32.mrf.mxu0
    %v1640 = vadd.f32 %v1407, %v1639
    %1641 = vmatprep.mubr.f32.mxu0 %v578
    %1642 = vmatmul.mubr.f32.gmra.mxu0 %v577
    %v1643 = vpop.f32.mrf.mxu0
    %v1644 = vadd.f32 %v1411, %v1643
    %v1645 = vpop.f32.mrf.mxu0
    %v1646 = vadd.f32 %v1413, %v1645
    %1647 = vmatprep.mubr.f32.mxu0 %v587
    %1648 = vmatmul.mubr.f32.gmra.mxu0 %v586
    %v1649 = vpop.f32.mrf.mxu0
    %v1650 = vadd.f32 %v1417, %v1649
    %v1651 = vpop.f32.mrf.mxu0
    %v1652 = vadd.f32 %v1419, %v1651
    %1653 = vmatprep.mubr.f32.mxu0 %v596
    %1654 = vmatmul.mubr.f32.gmra.mxu0 %v595
    %v1655 = vpop.f32.mrf.mxu0
    %v1656 = vadd.f32 %v1423, %v1655
    %v1657 = vpop.f32.mrf.mxu0
    %v1658 = vadd.f32 %v1425, %v1657
    %1659 = vmatprep.mubr.f32.mxu0 %v605
    %1660 = vmatmul.mubr.f32.gmra.mxu0 %v604
    %v1661 = vpop.f32.mrf.mxu0
    %v1662 = vadd.f32 %v1429, %v1661
    %v1663 = vpop.f32.mrf.mxu0
    %v1664 = vadd.f32 %v1431, %v1663
    %1665 = vmatprep.mubr.f32.mxu0 %v614
    %1666 = vmatmul.mubr.f32.gmra.mxu0 %v613
    %v1667 = vpop.f32.mrf.mxu0
    %v1668 = vadd.f32 %v1435, %v1667
    %v1669 = vpop.f32.mrf.mxu0
    %v1670 = vadd.f32 %v1437, %v1669
    %1671 = vmatprep.mubr.f32.mxu0 %v623
    %1672 = vmatmul.mubr.f32.gmra.mxu0 %v622
    %v1673 = vpop.f32.mrf.mxu0
    %v1674 = vadd.f32 %v1441, %v1673
    %v1675 = vpop.f32.mrf.mxu0
    %v1676 = vadd.f32 %v1443, %v1675
    %1677 = vmatprep.mubr.f32.mxu0 %v632
    %1678 = vmatmul.mubr.f32.gmra.mxu0 %v631
    %v1679 = vpop.f32.mrf.mxu0
    %v1680 = vadd.f32 %v1447, %v1679
    %v1681 = vpop.f32.mrf.mxu0
    %v1682 = vadd.f32 %v1449, %v1681
    %1683 = vmatprep.mubr.f32.mxu0 %v641
    %1684 = vmatmul.mubr.f32.gmra.mxu0 %v640
    %v1685 = vpop.f32.mrf.mxu0
    %v1686 = vadd.f32 %v1453, %v1685
    %v1687 = vpop.f32.mrf.mxu0
    %v1688 = vadd.f32 %v1455, %v1687
    %1689 = vmatprep.mubr.f32.mxu0 %v650
    %1690 = vmatmul.mubr.f32.gmra.mxu0 %v649
    %v1691 = vpop.f32.mrf.mxu0
    %v1692 = vadd.f32 %v1459, %v1691
    %v1693 = vpop.f32.mrf.mxu0
    %v1694 = vadd.f32 %v1461, %v1693
    %1695 = vmatprep.mubr.f32.mxu0 %v659
    %1696 = vmatmul.mubr.f32.gmra.mxu0 %v658
    %v1697 = vpop.f32.mrf.mxu0
    %v1698 = vadd.f32 %v1465, %v1697
    %v1699 = vpop.f32.mrf.mxu0
    %v1700 = vadd.f32 %v1467, %v1699
    %1701 = vmatprep.mubr.f32.mxu0 %v668
    %1702 = vmatmul.mubr.f32.gmra.mxu0 %v667
    %v1703 = vpop.f32.mrf.mxu0
    %v1704 = vadd.f32 %v1471, %v1703
    %v1705 = vpop.f32.mrf.mxu0
    %v1706 = vadd.f32 %v1473, %v1705
    %1707 = vmatprep.mubr.f32.mxu0 %v677
    %1708 = vmatmul.mubr.f32.gmra.mxu0 %v676
    %v1709 = vpop.f32.mrf.mxu0
    %v1710 = vadd.f32 %v1477, %v1709
    %v1711 = vpop.f32.mrf.mxu0
    %v1712 = vadd.f32 %v1479, %v1711
    %1713 = vmatprep.mubr.f32.mxu0 %v686
    %1714 = vmatmul.mubr.f32.gmra.mxu0 %v685
    %v1715 = vpop.f32.mrf.mxu0
    %v1716 = vadd.f32 %v1483, %v1715
    %v1717 = vpop.f32.mrf.mxu0
    %v1718 = vadd.f32 %v1485, %v1717
    %1719 = vmatprep.mubr.f32.mxu0 %v695
    %1720 = vmatmul.mubr.f32.gmra.mxu0 %v694
    %v1721 = vpop.f32.mrf.mxu0
    %v1722 = vadd.f32 %v1489, %v1721
    %v1723 = vpop.f32.mrf.mxu0
    %v1724 = vadd.f32 %v1491, %v1723
    %1725 = vmatprep.mubr.f32.mxu0 %v704
    %1726 = vmatmul.mubr.f32.gmra.mxu0 %v703
    %v1727 = vpop.f32.mrf.mxu0
    %v1728 = vadd.f32 %v1495, %v1727
    %v1729 = vpop.f32.mrf.mxu0
    %v1730 = vadd.f32 %v1497, %v1729
    %1731 = vmatprep.mubr.f32.mxu0 %v713
    %1732 = vmatmul.mubr.f32.gmra.mxu0 %v712
    %v1733 = vpop.f32.mrf.mxu0
    %v1734 = vadd.f32 %v1501, %v1733
    %v1735 = vpop.f32.mrf.mxu0
    %v1736 = vadd.f32 %v1503, %v1735
    %1737 = vmatprep.mubr.f32.mxu0 %v722
    %1738 = vmatmul.mubr.f32.gmra.mxu0 %v721
    %v1739 = vpop.f32.mrf.mxu0
    %v1740 = vadd.f32 %v1507, %v1739
    %v1741 = vpop.f32.mrf.mxu0
    %v1742 = vadd.f32 %v1509, %v1741
    %1743 = vmatprep.mubr.f32.mxu0 %v731
    %1744 = vmatmul.mubr.f32.gmra.mxu0 %v730
    %v1745 = vpop.f32.mrf.mxu0
    %v1746 = vadd.f32 %v1513, %v1745
    %v1747 = vpop.f32.mrf.mxu0
    %v1748 = vadd.f32 %v1515, %v1747
    %1749 = vdwg.mxu0
    %1750 = vmatprep.subr.mxu0 0.0
    %1751 = vmatpush1.msra.mxu0 0.0
    %1752 = vmatprep.subr.mxu0 %v479
    %1753 = vmatpush1.msra.mxu0 %v478
    %1754 = vmatprep.subr.mxu0 %v476
    %1755 = vmatpush1.msra.mxu0 %v475
    %1756 = vmatprep.subr.mxu0 %v473
    %1757 = vmatpush1.msra.mxu0 %v472
    %1758 = vmatprep.subr.mxu0 %v470
    %1759 = vmatpush1.msra.mxu0 %v469
    %1760 = vmatprep.subr.mxu0 %v467
    %1761 = vmatpush1.msra.mxu0 %v466
    %1762 = vmatprep.subr.mxu0 %v464
    %1763 = vmatpush1.msra.mxu0 %v463
    %1764 = vmatprep.subr.mxu0 %v461
    %1765 = vmatpush1.msra.mxu0 %v460
    %1766 = vmatprep.subr.mxu0 %v458
    %1767 = vmatpush1.msra.mxu0 %v457
    %1768 = vmatprep.subr.mxu0 %v455
    %1769 = vmatpush1.msra.mxu0 %v454
    %1770 = vmatprep.subr.mxu0 %v452
    %1771 = vmatpush1.msra.mxu0 %v451
    %1772 = vmatprep.subr.mxu0 %v449
    %1773 = vmatpush1.msra.mxu0 %v448
    %1774 = vmatprep.subr.mxu0 %v446
    %1775 = vmatpush1.msra.mxu0 %v445
    %1776 = vmatprep.subr.mxu0 %v443
    %1777 = vmatpush1.msra.mxu0 %v442
    %1778 = vmatprep.subr.mxu0 %v440
    %1779 = vmatpush1.msra.mxu0 %v439
    %1780 = vmatprep.subr.mxu0 %v437
    %1781 = vmatpush1.msra.mxu0 %v436
    %1782 = vmatprep.subr.mxu0 0.0
    %1783 = vmatpush2.msra.mxu0 0.0
    %1784 = vmatprep.subr.mxu0 0.0
    %1785 = vmatpush2.msra.mxu0 0.0
    %1786 = vmatprep.subr.mxu0 0.0
    %1787 = vmatpush2.msra.mxu0 0.0
    %1788 = vmatprep.subr.mxu0 0.0
    %1789 = vmatpush2.msra.mxu0 0.0
    %1790 = vmatprep.subr.mxu0 0.0
    %1791 = vmatpush2.msra.mxu0 0.0
    %1792 = vmatprep.subr.mxu0 0.0
    %1793 = vmatpush2.msra.mxu0 0.0
    %1794 = vmatprep.subr.mxu0 0.0
    %1795 = vmatpush2.msra.mxu0 0.0
    %1796 = vmatprep.subr.mxu0 0.0
    %1797 = vmatpush2.msra.mxu0 0.0
    %1798 = vmatprep.subr.mxu0 0.0
    %1799 = vmatpush2.msra.mxu0 0.0
    %1800 = vmatprep.subr.mxu0 0.0
    %1801 = vmatpush2.msra.mxu0 0.0
    %1802 = vmatprep.subr.mxu0 0.0
    %1803 = vmatpush2.msra.mxu0 0.0
    %1804 = vmatprep.subr.mxu0 0.0
    %1805 = vmatpush2.msra.mxu0 0.0
    %1806 = vmatprep.subr.mxu0 0.0
    %1807 = vmatpush2.msra.mxu0 0.0
    %1808 = vmatprep.subr.mxu0 0.0
    %1809 = vmatpush2.msra.mxu0 0.0
    %1810 = vmatprep.subr.mxu0 0.0
    %1811 = vmatpush2.msra.mxu0 0.0
    %1812 = vmatprep.subr.mxu0 0.0
    %1813 = vmatpush2.msra.mxu0 0.0
    %1814 = vmatprep.mubr.f32.mxu0 0.0
    %1815 = vmatmul.mubr.f32.gmra.mxu0 %v735
    %v1816 = vpop.f32.mrf.mxu0
    %v1817 = vadd.f32 %v1584, %v1816
    %v1818 = vpop.f32.mrf.mxu0
    %v1819 = vadd.f32 %v1586, %v1818
    %1820 = vmatprep.mubr.f32.mxu0 0.0
    %1821 = vmatmul.mubr.f32.gmra.mxu0 %v738
    %v1822 = vpop.f32.mrf.mxu0
    %v1823 = vadd.f32 %v1590, %v1822
    %v1824 = vpop.f32.mrf.mxu0
    %v1825 = vadd.f32 %v1592, %v1824
    %1826 = vmatprep.mubr.f32.mxu0 0.0
    %1827 = vmatmul.mubr.f32.gmra.mxu0 %v741
    %v1828 = vpop.f32.mrf.mxu0
    %v1829 = vadd.f32 %v1596, %v1828
    %v1830 = vpop.f32.mrf.mxu0
    %v1831 = vadd.f32 %v1598, %v1830
    %1832 = vmatprep.mubr.f32.mxu0 0.0
    %1833 = vmatmul.mubr.f32.gmra.mxu0 %v744
    %v1834 = vpop.f32.mrf.mxu0
    %v1835 = vadd.f32 %v1602, %v1834
    %v1836 = vpop.f32.mrf.mxu0
    %v1837 = vadd.f32 %v1604, %v1836
    %1838 = vmatprep.mubr.f32.mxu0 0.0
    %1839 = vmatmul.mubr.f32.gmra.mxu0 %v747
    %v1840 = vpop.f32.mrf.mxu0
    %v1841 = vadd.f32 %v1608, %v1840
    %v1842 = vpop.f32.mrf.mxu0
    %v1843 = vadd.f32 %v1610, %v1842
    %1844 = vmatprep.mubr.f32.mxu0 0.0
    %1845 = vmatmul.mubr.f32.gmra.mxu0 %v750
    %v1846 = vpop.f32.mrf.mxu0
    %v1847 = vadd.f32 %v1614, %v1846
    %v1848 = vpop.f32.mrf.mxu0
    %v1849 = vadd.f32 %v1616, %v1848
    %1850 = vmatprep.mubr.f32.mxu0 0.0
    %1851 = vmatmul.mubr.f32.gmra.mxu0 %v753
    %v1852 = vpop.f32.mrf.mxu0
    %v1853 = vadd.f32 %v1620, %v1852
    %v1854 = vpop.f32.mrf.mxu0
    %v1855 = vadd.f32 %v1622, %v1854
    %1856 = vmatprep.mubr.f32.mxu0 0.0
    %1857 = vmatmul.mubr.f32.gmra.mxu0 %v756
    %v1858 = vpop.f32.mrf.mxu0
    %v1859 = vadd.f32 %v1626, %v1858
    %v1860 = vpop.f32.mrf.mxu0
    %v1861 = vadd.f32 %v1628, %v1860
    %1862 = vmatprep.mubr.f32.mxu0 0.0
    %1863 = vmatmul.mubr.f32.gmra.mxu0 %v759
    %v1864 = vpop.f32.mrf.mxu0
    %v1865 = vadd.f32 %v1632, %v1864
    %v1866 = vpop.f32.mrf.mxu0
    %v1867 = vadd.f32 %v1634, %v1866
    %1868 = vmatprep.mubr.f32.mxu0 0.0
    %1869 = vmatmul.mubr.f32.gmra.mxu0 %v762
    %v1870 = vpop.f32.mrf.mxu0
    %v1871 = vadd.f32 %v1638, %v1870
    %v1872 = vpop.f32.mrf.mxu0
    %v1873 = vadd.f32 %v1640, %v1872
    %1874 = vmatprep.mubr.f32.mxu0 0.0
    %1875 = vmatmul.mubr.f32.gmra.mxu0 %v765
    %v1876 = vpop.f32.mrf.mxu0
    %v1877 = vadd.f32 %v1644, %v1876
    %v1878 = vpop.f32.mrf.mxu0
    %v1879 = vadd.f32 %v1646, %v1878
    %1880 = vmatprep.mubr.f32.mxu0 0.0
    %1881 = vmatmul.mubr.f32.gmra.mxu0 %v768
    %v1882 = vpop.f32.mrf.mxu0
    %v1883 = vadd.f32 %v1650, %v1882
    %v1884 = vpop.f32.mrf.mxu0
    %v1885 = vadd.f32 %v1652, %v1884
    %1886 = vmatprep.mubr.f32.mxu0 0.0
    %1887 = vmatmul.mubr.f32.gmra.mxu0 %v771
    %v1888 = vpop.f32.mrf.mxu0
    %v1889 = vadd.f32 %v1656, %v1888
    %v1890 = vpop.f32.mrf.mxu0
    %v1891 = vadd.f32 %v1658, %v1890
    %1892 = vmatprep.mubr.f32.mxu0 0.0
    %1893 = vmatmul.mubr.f32.gmra.mxu0 %v774
    %v1894 = vpop.f32.mrf.mxu0
    %v1895 = vadd.f32 %v1662, %v1894
    %v1896 = vpop.f32.mrf.mxu0
    %v1897 = vadd.f32 %v1664, %v1896
    %1898 = vmatprep.mubr.f32.mxu0 0.0
    %1899 = vmatmul.mubr.f32.gmra.mxu0 %v777
    %v1900 = vpop.f32.mrf.mxu0
    %v1901 = vadd.f32 %v1668, %v1900
    %v1902 = vpop.f32.mrf.mxu0
    %v1903 = vadd.f32 %v1670, %v1902
    %1904 = vmatprep.mubr.f32.mxu0 0.0
    %1905 = vmatmul.mubr.f32.gmra.mxu0 %v780
    %v1906 = vpop.f32.mrf.mxu0
    %v1907 = vadd.f32 %v1674, %v1906
    %v1908 = vpop.f32.mrf.mxu0
    %v1909 = vadd.f32 %v1676, %v1908
    %1910 = vmatprep.mubr.f32.mxu0 0.0
    %1911 = vmatmul.mubr.f32.gmra.mxu0 %v783
    %v1912 = vpop.f32.mrf.mxu0
    %v1913 = vadd.f32 %v1680, %v1912
    %v1914 = vpop.f32.mrf.mxu0
    %v1915 = vadd.f32 %v1682, %v1914
    %1916 = vmatprep.mubr.f32.mxu0 0.0
    %1917 = vmatmul.mubr.f32.gmra.mxu0 %v786
    %v1918 = vpop.f32.mrf.mxu0
    %v1919 = vadd.f32 %v1686, %v1918
    %v1920 = vpop.f32.mrf.mxu0
    %v1921 = vadd.f32 %v1688, %v1920
    %1922 = vmatprep.mubr.f32.mxu0 0.0
    %1923 = vmatmul.mubr.f32.gmra.mxu0 %v789
    %v1924 = vpop.f32.mrf.mxu0
    %v1925 = vadd.f32 %v1692, %v1924
    %v1926 = vpop.f32.mrf.mxu0
    %v1927 = vadd.f32 %v1694, %v1926
    %1928 = vmatprep.mubr.f32.mxu0 0.0
    %1929 = vmatmul.mubr.f32.gmra.mxu0 %v792
    %v1930 = vpop.f32.mrf.mxu0
    %v1931 = vadd.f32 %v1698, %v1930
    %v1932 = vpop.f32.mrf.mxu0
    %v1933 = vadd.f32 %v1700, %v1932
    %1934 = vmatprep.mubr.f32.mxu0 0.0
    %1935 = vmatmul.mubr.f32.gmra.mxu0 %v795
    %v1936 = vpop.f32.mrf.mxu0
    %v1937 = vadd.f32 %v1704, %v1936
    %v1938 = vpop.f32.mrf.mxu0
    %v1939 = vadd.f32 %v1706, %v1938
    %1940 = vmatprep.mubr.f32.mxu0 0.0
    %1941 = vmatmul.mubr.f32.gmra.mxu0 %v798
    %v1942 = vpop.f32.mrf.mxu0
    %v1943 = vadd.f32 %v1710, %v1942
    %v1944 = vpop.f32.mrf.mxu0
    %v1945 = vadd.f32 %v1712, %v1944
    %1946 = vmatprep.mubr.f32.mxu0 0.0
    %1947 = vmatmul.mubr.f32.gmra.mxu0 %v801
    %v1948 = vpop.f32.mrf.mxu0
    %v1949 = vadd.f32 %v1716, %v1948
    %v1950 = vpop.f32.mrf.mxu0
    %v1951 = vadd.f32 %v1718, %v1950
    %1952 = vmatprep.mubr.f32.mxu0 0.0
    %1953 = vmatmul.mubr.f32.gmra.mxu0 %v804
    %v1954 = vpop.f32.mrf.mxu0
    %v1955 = vadd.f32 %v1722, %v1954
    %v1956 = vpop.f32.mrf.mxu0
    %v1957 = vadd.f32 %v1724, %v1956
    %1958 = vmatprep.mubr.f32.mxu0 0.0
    %1959 = vmatmul.mubr.f32.gmra.mxu0 %v807
    %v1960 = vpop.f32.mrf.mxu0
    %v1961 = vadd.f32 %v1728, %v1960
    %v1962 = vpop.f32.mrf.mxu0
    %v1963 = vadd.f32 %v1730, %v1962
    %1964 = vmatprep.mubr.f32.mxu0 0.0
    %1965 = vmatmul.mubr.f32.gmra.mxu0 %v810
    %v1966 = vpop.f32.mrf.mxu0
    %v1967 = vadd.f32 %v1734, %v1966
    %v1968 = vpop.f32.mrf.mxu0
    %v1969 = vadd.f32 %v1736, %v1968
    %1970 = vmatprep.mubr.f32.mxu0 0.0
    %1971 = vmatmul.mubr.f32.gmra.mxu0 %v813
    %v1972 = vpop.f32.mrf.mxu0
    %v1973 = vadd.f32 %v1740, %v1972
    %v1974 = vpop.f32.mrf.mxu0
    %v1975 = vadd.f32 %v1742, %v1974
    %1976 = vmatprep.mubr.f32.mxu0 0.0
    %1977 = vmatmul.mubr.f32.gmra.mxu0 %v816
    %v1978 = vpop.f32.mrf.mxu0
    %v1979 = vadd.f32 %v1746, %v1978
    %v1980 = vpop.f32.mrf.mxu0
    %v1981 = vadd.f32 %v1748, %v1980
    %1982 = vdwg.mxu0
    %1983 = vmatprep.subr.mxu0 0.0
    %1984 = vmatpush1.msra.mxu0 %v99
    %1985 = vmatprep.subr.mxu0 0.0
    %1986 = vmatpush1.msra.mxu0 %v96
    %1987 = vmatprep.subr.mxu0 0.0
    %1988 = vmatpush1.msra.mxu0 %v93
    %1989 = vmatprep.subr.mxu0 0.0
    %1990 = vmatpush1.msra.mxu0 %v90
    %1991 = vmatprep.subr.mxu0 0.0
    %1992 = vmatpush1.msra.mxu0 %v87
    %1993 = vmatprep.subr.mxu0 0.0
    %1994 = vmatpush1.msra.mxu0 %v84
    %1995 = vmatprep.subr.mxu0 0.0
    %1996 = vmatpush1.msra.mxu0 %v81
    %1997 = vmatprep.subr.mxu0 0.0
    %1998 = vmatpush1.msra.mxu0 %v78
    %1999 = vmatprep.subr.mxu0 0.0
    %2000 = vmatpush1.msra.mxu0 %v75
    %2001 = vmatprep.subr.mxu0 0.0
    %2002 = vmatpush1.msra.mxu0 %v72
    %2003 = vmatprep.subr.mxu0 0.0
    %2004 = vmatpush1.msra.mxu0 %v69
    %2005 = vmatprep.subr.mxu0 0.0
    %2006 = vmatpush1.msra.mxu0 %v66
    %2007 = vmatprep.subr.mxu0 0.0
    %2008 = vmatpush1.msra.mxu0 %v63
    %2009 = vmatprep.subr.mxu0 0.0
    %2010 = vmatpush1.msra.mxu0 %v60
    %2011 = vmatprep.subr.mxu0 0.0
    %2012 = vmatpush1.msra.mxu0 %v57
    %2013 = vmatprep.subr.mxu0 0.0
    %2014 = vmatpush1.msra.mxu0 %v54
    %2015 = vmatprep.subr.mxu0 0.0
    %2016 = vmatpush2.msra.mxu0 %v147
    %2017 = vmatprep.subr.mxu0 0.0
    %2018 = vmatpush2.msra.mxu0 %v144
    %2019 = vmatprep.subr.mxu0 0.0
    %2020 = vmatpush2.msra.mxu0 %v141
    %2021 = vmatprep.subr.mxu0 0.0
    %2022 = vmatpush2.msra.mxu0 %v138
    %2023 = vmatprep.subr.mxu0 0.0
    %2024 = vmatpush2.msra.mxu0 %v135
    %2025 = vmatprep.subr.mxu0 0.0
    %2026 = vmatpush2.msra.mxu0 %v132
    %2027 = vmatprep.subr.mxu0 0.0
    %2028 = vmatpush2.msra.mxu0 %v129
    %2029 = vmatprep.subr.mxu0 0.0
    %2030 = vmatpush2.msra.mxu0 %v126
    %2031 = vmatprep.subr.mxu0 0.0
    %2032 = vmatpush2.msra.mxu0 %v123
    %2033 = vmatprep.subr.mxu0 0.0
    %2034 = vmatpush2.msra.mxu0 %v120
    %2035 = vmatprep.subr.mxu0 0.0
    %2036 = vmatpush2.msra.mxu0 %v117
    %2037 = vmatprep.subr.mxu0 0.0
    %2038 = vmatpush2.msra.mxu0 %v114
    %2039 = vmatprep.subr.mxu0 0.0
    %2040 = vmatpush2.msra.mxu0 %v111
    %2041 = vmatprep.subr.mxu0 0.0
    %2042 = vmatpush2.msra.mxu0 %v108
    %2043 = vmatprep.subr.mxu0 0.0
    %2044 = vmatpush2.msra.mxu0 %v105
    %2045 = vmatprep.subr.mxu0 0.0
    %2046 = vmatpush2.msra.mxu0 %v102
    %2047 = vmatprep.mubr.f32.mxu0 %v482
    %2048 = vmatmul.mubr.f32.gmra.mxu0 %v481
    %v2049 = vpop.f32.mrf.mxu0
    %v2050 = vadd.f32 0.0, %v2049
    %v2051 = vpop.f32.mrf.mxu0
    %2052 = vmatprep.mubr.f32.mxu0 %v491
    %2053 = vmatmul.mubr.f32.gmra.mxu0 %v490
    %v2054 = vpop.f32.mrf.mxu0
    %v2055 = vadd.f32 0.0, %v2054
    %v2056 = vpop.f32.mrf.mxu0
    %2057 = vmatprep.mubr.f32.mxu0 %v500
    %2058 = vmatmul.mubr.f32.gmra.mxu0 %v499
    %v2059 = vpop.f32.mrf.mxu0
    %v2060 = vadd.f32 0.0, %v2059
    %v2061 = vpop.f32.mrf.mxu0
    %2062 = vmatprep.mubr.f32.mxu0 %v509
    %2063 = vmatmul.mubr.f32.gmra.mxu0 %v508
    %v2064 = vpop.f32.mrf.mxu0
    %v2065 = vadd.f32 0.0, %v2064
    %v2066 = vpop.f32.mrf.mxu0
    %2067 = vmatprep.mubr.f32.mxu0 %v518
    %2068 = vmatmul.mubr.f32.gmra.mxu0 %v517
    %v2069 = vpop.f32.mrf.mxu0
    %v2070 = vadd.f32 0.0, %v2069
    %v2071 = vpop.f32.mrf.mxu0
    %2072 = vmatprep.mubr.f32.mxu0 %v527
    %2073 = vmatmul.mubr.f32.gmra.mxu0 %v526
    %v2074 = vpop.f32.mrf.mxu0
    %v2075 = vadd.f32 0.0, %v2074
    %v2076 = vpop.f32.mrf.mxu0
    %2077 = vmatprep.mubr.f32.mxu0 %v536
    %2078 = vmatmul.mubr.f32.gmra.mxu0 %v535
    %v2079 = vpop.f32.mrf.mxu0
    %v2080 = vadd.f32 0.0, %v2079
    %v2081 = vpop.f32.mrf.mxu0
    %2082 = vmatprep.mubr.f32.mxu0 %v545
    %2083 = vmatmul.mubr.f32.gmra.mxu0 %v544
    %v2084 = vpop.f32.mrf.mxu0
    %v2085 = vadd.f32 0.0, %v2084
    %v2086 = vpop.f32.mrf.mxu0
    %2087 = vmatprep.mubr.f32.mxu0 %v554
    %2088 = vmatmul.mubr.f32.gmra.mxu0 %v553
    %v2089 = vpop.f32.mrf.mxu0
    %v2090 = vadd.f32 0.0, %v2089
    %v2091 = vpop.f32.mrf.mxu0
    %2092 = vmatprep.mubr.f32.mxu0 %v563
    %2093 = vmatmul.mubr.f32.gmra.mxu0 %v562
    %v2094 = vpop.f32.mrf.mxu0
    %v2095 = vadd.f32 0.0, %v2094
    %v2096 = vpop.f32.mrf.mxu0
    %2097 = vmatprep.mubr.f32.mxu0 %v572
    %2098 = vmatmul.mubr.f32.gmra.mxu0 %v571
    %v2099 = vpop.f32.mrf.mxu0
    %v2100 = vadd.f32 0.0, %v2099
    %v2101 = vpop.f32.mrf.mxu0
    %2102 = vmatprep.mubr.f32.mxu0 %v581
    %2103 = vmatmul.mubr.f32.gmra.mxu0 %v580
    %v2104 = vpop.f32.mrf.mxu0
    %v2105 = vadd.f32 0.0, %v2104
    %v2106 = vpop.f32.mrf.mxu0
    %2107 = vmatprep.mubr.f32.mxu0 %v590
    %2108 = vmatmul.mubr.f32.gmra.mxu0 %v589
    %v2109 = vpop.f32.mrf.mxu0
    %v2110 = vadd.f32 0.0, %v2109
    %v2111 = vpop.f32.mrf.mxu0
    %2112 = vmatprep.mubr.f32.mxu0 %v599
    %2113 = vmatmul.mubr.f32.gmra.mxu0 %v598
    %v2114 = vpop.f32.mrf.mxu0
    %v2115 = vadd.f32 0.0, %v2114
    %v2116 = vpop.f32.mrf.mxu0
    %2117 = vmatprep.mubr.f32.mxu0 %v608
    %2118 = vmatmul.mubr.f32.gmra.mxu0 %v607
    %v2119 = vpop.f32.mrf.mxu0
    %v2120 = vadd.f32 0.0, %v2119
    %v2121 = vpop.f32.mrf.mxu0
    %2122 = vmatprep.mubr.f32.mxu0 %v617
    %2123 = vmatmul.mubr.f32.gmra.mxu0 %v616
    %v2124 = vpop.f32.mrf.mxu0
    %v2125 = vadd.f32 0.0, %v2124
    %v2126 = vpop.f32.mrf.mxu0
    %2127 = vmatprep.mubr.f32.mxu0 %v626
    %2128 = vmatmul.mubr.f32.gmra.mxu0 %v625
    %v2129 = vpop.f32.mrf.mxu0
    %v2130 = vadd.f32 0.0, %v2129
    %v2131 = vpop.f32.mrf.mxu0
    %2132 = vmatprep.mubr.f32.mxu0 %v635
    %2133 = vmatmul.mubr.f32.gmra.mxu0 %v634
    %v2134 = vpop.f32.mrf.mxu0
    %v2135 = vadd.f32 0.0, %v2134
    %v2136 = vpop.f32.mrf.mxu0
    %2137 = vmatprep.mubr.f32.mxu0 %v644
    %2138 = vmatmul.mubr.f32.gmra.mxu0 %v643
    %v2139 = vpop.f32.mrf.mxu0
    %v2140 = vadd.f32 0.0, %v2139
    %v2141 = vpop.f32.mrf.mxu0
    %2142 = vmatprep.mubr.f32.mxu0 %v653
    %2143 = vmatmul.mubr.f32.gmra.mxu0 %v652
    %v2144 = vpop.f32.mrf.mxu0
    %v2145 = vadd.f32 0.0, %v2144
    %v2146 = vpop.f32.mrf.mxu0
    %2147 = vmatprep.mubr.f32.mxu0 %v662
    %2148 = vmatmul.mubr.f32.gmra.mxu0 %v661
    %v2149 = vpop.f32.mrf.mxu0
    %v2150 = vadd.f32 0.0, %v2149
    %v2151 = vpop.f32.mrf.mxu0
    %2152 = vmatprep.mubr.f32.mxu0 %v671
    %2153 = vmatmul.mubr.f32.gmra.mxu0 %v670
    %v2154 = vpop.f32.mrf.mxu0
    %v2155 = vadd.f32 0.0, %v2154
    %v2156 = vpop.f32.mrf.mxu0
    %2157 = vmatprep.mubr.f32.mxu0 %v680
    %2158 = vmatmul.mubr.f32.gmra.mxu0 %v679
    %v2159 = vpop.f32.mrf.mxu0
    %v2160 = vadd.f32 0.0, %v2159
    %v2161 = vpop.f32.mrf.mxu0
    %2162 = vmatprep.mubr.f32.mxu0 %v689
    %2163 = vmatmul.mubr.f32.gmra.mxu0 %v688
    %v2164 = vpop.f32.mrf.mxu0
    %v2165 = vadd.f32 0.0, %v2164
    %v2166 = vpop.f32.mrf.mxu0
    %2167 = vmatprep.mubr.f32.mxu0 %v698
    %2168 = vmatmul.mubr.f32.gmra.mxu0 %v697
    %v2169 = vpop.f32.mrf.mxu0
    %v2170 = vadd.f32 0.0, %v2169
    %v2171 = vpop.f32.mrf.mxu0
    %2172 = vmatprep.mubr.f32.mxu0 %v707
    %2173 = vmatmul.mubr.f32.gmra.mxu0 %v706
    %v2174 = vpop.f32.mrf.mxu0
    %v2175 = vadd.f32 0.0, %v2174
    %v2176 = vpop.f32.mrf.mxu0
    %2177 = vmatprep.mubr.f32.mxu0 %v716
    %2178 = vmatmul.mubr.f32.gmra.mxu0 %v715
    %v2179 = vpop.f32.mrf.mxu0
    %v2180 = vadd.f32 0.0, %v2179
    %v2181 = vpop.f32.mrf.mxu0
    %2182 = vmatprep.mubr.f32.mxu0 %v725
    %2183 = vmatmul.mubr.f32.gmra.mxu0 %v724
    %v2184 = vpop.f32.mrf.mxu0
    %v2185 = vadd.f32 0.0, %v2184
    %v2186 = vpop.f32.mrf.mxu0
    %2187 = vdwg.mxu0
    %2188 = vmatprep.subr.mxu0 0.0
    %2189 = vmatpush1.msra.mxu0 %v195
    %2190 = vmatprep.subr.mxu0 0.0
    %2191 = vmatpush1.msra.mxu0 %v192
    %2192 = vmatprep.subr.mxu0 0.0
    %2193 = vmatpush1.msra.mxu0 %v189
    %2194 = vmatprep.subr.mxu0 0.0
    %2195 = vmatpush1.msra.mxu0 %v186
    %2196 = vmatprep.subr.mxu0 0.0
    %2197 = vmatpush1.msra.mxu0 %v183
    %2198 = vmatprep.subr.mxu0 0.0
    %2199 = vmatpush1.msra.mxu0 %v180
    %2200 = vmatprep.subr.mxu0 0.0
    %2201 = vmatpush1.msra.mxu0 %v177
    %2202 = vmatprep.subr.mxu0 0.0
    %2203 = vmatpush1.msra.mxu0 %v174
    %2204 = vmatprep.subr.mxu0 0.0
    %2205 = vmatpush1.msra.mxu0 %v171
    %2206 = vmatprep.subr.mxu0 0.0
    %2207 = vmatpush1.msra.mxu0 %v168
    %2208 = vmatprep.subr.mxu0 0.0
    %2209 = vmatpush1.msra.mxu0 %v165
    %2210 = vmatprep.subr.mxu0 0.0
    %2211 = vmatpush1.msra.mxu0 %v162
    %2212 = vmatprep.subr.mxu0 0.0
    %2213 = vmatpush1.msra.mxu0 %v159
    %2214 = vmatprep.subr.mxu0 0.0
    %2215 = vmatpush1.msra.mxu0 %v156
    %2216 = vmatprep.subr.mxu0 0.0
    %2217 = vmatpush1.msra.mxu0 %v153
    %2218 = vmatprep.subr.mxu0 0.0
    %2219 = vmatpush1.msra.mxu0 %v150
    %2220 = vmatprep.subr.mxu0 0.0
    %2221 = vmatpush2.msra.mxu0 %v243
    %2222 = vmatprep.subr.mxu0 0.0
    %2223 = vmatpush2.msra.mxu0 %v240
    %2224 = vmatprep.subr.mxu0 0.0
    %2225 = vmatpush2.msra.mxu0 %v237
    %2226 = vmatprep.subr.mxu0 0.0
    %2227 = vmatpush2.msra.mxu0 %v234
    %2228 = vmatprep.subr.mxu0 0.0
    %2229 = vmatpush2.msra.mxu0 %v231
    %2230 = vmatprep.subr.mxu0 0.0
    %2231 = vmatpush2.msra.mxu0 %v228
    %2232 = vmatprep.subr.mxu0 0.0
    %2233 = vmatpush2.msra.mxu0 %v225
    %2234 = vmatprep.subr.mxu0 0.0
    %2235 = vmatpush2.msra.mxu0 %v222
    %2236 = vmatprep.subr.mxu0 0.0
    %2237 = vmatpush2.msra.mxu0 %v219
    %2238 = vmatprep.subr.mxu0 0.0
    %2239 = vmatpush2.msra.mxu0 %v216
    %2240 = vmatprep.subr.mxu0 0.0
    %2241 = vmatpush2.msra.mxu0 %v213
    %2242 = vmatprep.subr.mxu0 0.0
    %2243 = vmatpush2.msra.mxu0 %v210
    %2244 = vmatprep.subr.mxu0 0.0
    %2245 = vmatpush2.msra.mxu0 %v207
    %2246 = vmatprep.subr.mxu0 0.0
    %2247 = vmatpush2.msra.mxu0 %v204
    %2248 = vmatprep.subr.mxu0 0.0
    %2249 = vmatpush2.msra.mxu0 %v201
    %2250 = vmatprep.subr.mxu0 0.0
    %2251 = vmatpush2.msra.mxu0 %v198
    %2252 = vmatprep.mubr.f32.mxu0 %v484
    %2253 = vmatmul.mubr.f32.gmra.mxu0 %v483
    %v2254 = vpop.f32.mrf.mxu0
    %v2255 = vadd.f32 %v2050, %v2254
    %v2256 = vpop.f32.mrf.mxu0
    %2257 = vmatprep.mubr.f32.mxu0 %v493
    %2258 = vmatmul.mubr.f32.gmra.mxu0 %v492
    %v2259 = vpop.f32.mrf.mxu0
    %v2260 = vadd.f32 %v2055, %v2259
    %v2261 = vpop.f32.mrf.mxu0
    %2262 = vmatprep.mubr.f32.mxu0 %v502
    %2263 = vmatmul.mubr.f32.gmra.mxu0 %v501
    %v2264 = vpop.f32.mrf.mxu0
    %v2265 = vadd.f32 %v2060, %v2264
    %v2266 = vpop.f32.mrf.mxu0
    %2267 = vmatprep.mubr.f32.mxu0 %v511
    %2268 = vmatmul.mubr.f32.gmra.mxu0 %v510
    %v2269 = vpop.f32.mrf.mxu0
    %v2270 = vadd.f32 %v2065, %v2269
    %v2271 = vpop.f32.mrf.mxu0
    %2272 = vmatprep.mubr.f32.mxu0 %v520
    %2273 = vmatmul.mubr.f32.gmra.mxu0 %v519
    %v2274 = vpop.f32.mrf.mxu0
    %v2275 = vadd.f32 %v2070, %v2274
    %v2276 = vpop.f32.mrf.mxu0
    %2277 = vmatprep.mubr.f32.mxu0 %v529
    %2278 = vmatmul.mubr.f32.gmra.mxu0 %v528
    %v2279 = vpop.f32.mrf.mxu0
    %v2280 = vadd.f32 %v2075, %v2279
    %v2281 = vpop.f32.mrf.mxu0
    %2282 = vmatprep.mubr.f32.mxu0 %v538
    %2283 = vmatmul.mubr.f32.gmra.mxu0 %v537
    %v2284 = vpop.f32.mrf.mxu0
    %v2285 = vadd.f32 %v2080, %v2284
    %v2286 = vpop.f32.mrf.mxu0
    %2287 = vmatprep.mubr.f32.mxu0 %v547
    %2288 = vmatmul.mubr.f32.gmra.mxu0 %v546
    %v2289 = vpop.f32.mrf.mxu0
    %v2290 = vadd.f32 %v2085, %v2289
    %v2291 = vpop.f32.mrf.mxu0
    %2292 = vmatprep.mubr.f32.mxu0 %v556
    %2293 = vmatmul.mubr.f32.gmra.mxu0 %v555
    %v2294 = vpop.f32.mrf.mxu0
    %v2295 = vadd.f32 %v2090, %v2294
    %v2296 = vpop.f32.mrf.mxu0
    %2297 = vmatprep.mubr.f32.mxu0 %v565
    %2298 = vmatmul.mubr.f32.gmra.mxu0 %v564
    %v2299 = vpop.f32.mrf.mxu0
    %v2300 = vadd.f32 %v2095, %v2299
    %v2301 = vpop.f32.mrf.mxu0
    %2302 = vmatprep.mubr.f32.mxu0 %v574
    %2303 = vmatmul.mubr.f32.gmra.mxu0 %v573
    %v2304 = vpop.f32.mrf.mxu0
    %v2305 = vadd.f32 %v2100, %v2304
    %v2306 = vpop.f32.mrf.mxu0
    %2307 = vmatprep.mubr.f32.mxu0 %v583
    %2308 = vmatmul.mubr.f32.gmra.mxu0 %v582
    %v2309 = vpop.f32.mrf.mxu0
    %v2310 = vadd.f32 %v2105, %v2309
    %v2311 = vpop.f32.mrf.mxu0
    %2312 = vmatprep.mubr.f32.mxu0 %v592
    %2313 = vmatmul.mubr.f32.gmra.mxu0 %v591
    %v2314 = vpop.f32.mrf.mxu0
    %v2315 = vadd.f32 %v2110, %v2314
    %v2316 = vpop.f32.mrf.mxu0
    %2317 = vmatprep.mubr.f32.mxu0 %v601
    %2318 = vmatmul.mubr.f32.gmra.mxu0 %v600
    %v2319 = vpop.f32.mrf.mxu0
    %v2320 = vadd.f32 %v2115, %v2319
    %v2321 = vpop.f32.mrf.mxu0
    %2322 = vmatprep.mubr.f32.mxu0 %v610
    %2323 = vmatmul.mubr.f32.gmra.mxu0 %v609
    %v2324 = vpop.f32.mrf.mxu0
    %v2325 = vadd.f32 %v2120, %v2324
    %v2326 = vpop.f32.mrf.mxu0
    %2327 = vmatprep.mubr.f32.mxu0 %v619
    %2328 = vmatmul.mubr.f32.gmra.mxu0 %v618
    %v2329 = vpop.f32.mrf.mxu0
    %v2330 = vadd.f32 %v2125, %v2329
    %v2331 = vpop.f32.mrf.mxu0
    %2332 = vmatprep.mubr.f32.mxu0 %v628
    %2333 = vmatmul.mubr.f32.gmra.mxu0 %v627
    %v2334 = vpop.f32.mrf.mxu0
    %v2335 = vadd.f32 %v2130, %v2334
    %v2336 = vpop.f32.mrf.mxu0
    %2337 = vmatprep.mubr.f32.mxu0 %v637
    %2338 = vmatmul.mubr.f32.gmra.mxu0 %v636
    %v2339 = vpop.f32.mrf.mxu0
    %v2340 = vadd.f32 %v2135, %v2339
    %v2341 = vpop.f32.mrf.mxu0
    %2342 = vmatprep.mubr.f32.mxu0 %v646
    %2343 = vmatmul.mubr.f32.gmra.mxu0 %v645
    %v2344 = vpop.f32.mrf.mxu0
    %v2345 = vadd.f32 %v2140, %v2344
    %v2346 = vpop.f32.mrf.mxu0
    %2347 = vmatprep.mubr.f32.mxu0 %v655
    %2348 = vmatmul.mubr.f32.gmra.mxu0 %v654
    %v2349 = vpop.f32.mrf.mxu0
    %v2350 = vadd.f32 %v2145, %v2349
    %v2351 = vpop.f32.mrf.mxu0
    %2352 = vmatprep.mubr.f32.mxu0 %v664
    %2353 = vmatmul.mubr.f32.gmra.mxu0 %v663
    %v2354 = vpop.f32.mrf.mxu0
    %v2355 = vadd.f32 %v2150, %v2354
    %v2356 = vpop.f32.mrf.mxu0
    %2357 = vmatprep.mubr.f32.mxu0 %v673
    %2358 = vmatmul.mubr.f32.gmra.mxu0 %v672
    %v2359 = vpop.f32.mrf.mxu0
    %v2360 = vadd.f32 %v2155, %v2359
    %v2361 = vpop.f32.mrf.mxu0
    %2362 = vmatprep.mubr.f32.mxu0 %v682
    %2363 = vmatmul.mubr.f32.gmra.mxu0 %v681
    %v2364 = vpop.f32.mrf.mxu0
    %v2365 = vadd.f32 %v2160, %v2364
    %v2366 = vpop.f32.mrf.mxu0
    %2367 = vmatprep.mubr.f32.mxu0 %v691
    %2368 = vmatmul.mubr.f32.gmra.mxu0 %v690
    %v2369 = vpop.f32.mrf.mxu0
    %v2370 = vadd.f32 %v2165, %v2369
    %v2371 = vpop.f32.mrf.mxu0
    %2372 = vmatprep.mubr.f32.mxu0 %v700
    %2373 = vmatmul.mubr.f32.gmra.mxu0 %v699
    %v2374 = vpop.f32.mrf.mxu0
    %v2375 = vadd.f32 %v2170, %v2374
    %v2376 = vpop.f32.mrf.mxu0
    %2377 = vmatprep.mubr.f32.mxu0 %v709
    %2378 = vmatmul.mubr.f32.gmra.mxu0 %v708
    %v2379 = vpop.f32.mrf.mxu0
    %v2380 = vadd.f32 %v2175, %v2379
    %v2381 = vpop.f32.mrf.mxu0
    %2382 = vmatprep.mubr.f32.mxu0 %v718
    %2383 = vmatmul.mubr.f32.gmra.mxu0 %v717
    %v2384 = vpop.f32.mrf.mxu0
    %v2385 = vadd.f32 %v2180, %v2384
    %v2386 = vpop.f32.mrf.mxu0
    %2387 = vmatprep.mubr.f32.mxu0 %v727
    %2388 = vmatmul.mubr.f32.gmra.mxu0 %v726
    %v2389 = vpop.f32.mrf.mxu0
    %v2390 = vadd.f32 %v2185, %v2389
    %v2391 = vpop.f32.mrf.mxu0
    %2392 = vdwg.mxu0
    %2393 = vmatprep.subr.mxu0 0.0
    %2394 = vmatpush1.msra.mxu0 %v291
    %2395 = vmatprep.subr.mxu0 0.0
    %2396 = vmatpush1.msra.mxu0 %v288
    %2397 = vmatprep.subr.mxu0 0.0
    %2398 = vmatpush1.msra.mxu0 %v285
    %2399 = vmatprep.subr.mxu0 0.0
    %2400 = vmatpush1.msra.mxu0 %v282
    %2401 = vmatprep.subr.mxu0 0.0
    %2402 = vmatpush1.msra.mxu0 %v279
    %2403 = vmatprep.subr.mxu0 0.0
    %2404 = vmatpush1.msra.mxu0 %v276
    %2405 = vmatprep.subr.mxu0 0.0
    %2406 = vmatpush1.msra.mxu0 %v273
    %2407 = vmatprep.subr.mxu0 0.0
    %2408 = vmatpush1.msra.mxu0 %v270
    %2409 = vmatprep.subr.mxu0 0.0
    %2410 = vmatpush1.msra.mxu0 %v267
    %2411 = vmatprep.subr.mxu0 0.0
    %2412 = vmatpush1.msra.mxu0 %v264
    %2413 = vmatprep.subr.mxu0 0.0
    %2414 = vmatpush1.msra.mxu0 %v261
    %2415 = vmatprep.subr.mxu0 0.0
    %2416 = vmatpush1.msra.mxu0 %v258
    %2417 = vmatprep.subr.mxu0 0.0
    %2418 = vmatpush1.msra.mxu0 %v255
    %2419 = vmatprep.subr.mxu0 0.0
    %2420 = vmatpush1.msra.mxu0 %v252
    %2421 = vmatprep.subr.mxu0 0.0
    %2422 = vmatpush1.msra.mxu0 %v249
    %2423 = vmatprep.subr.mxu0 0.0
    %2424 = vmatpush1.msra.mxu0 %v246
    %2425 = vmatprep.subr.mxu0 0.0
    %2426 = vmatpush2.msra.mxu0 %v339
    %2427 = vmatprep.subr.mxu0 0.0
    %2428 = vmatpush2.msra.mxu0 %v336
    %2429 = vmatprep.subr.mxu0 0.0
    %2430 = vmatpush2.msra.mxu0 %v333
    %2431 = vmatprep.subr.mxu0 0.0
    %2432 = vmatpush2.msra.mxu0 %v330
    %2433 = vmatprep.subr.mxu0 0.0
    %2434 = vmatpush2.msra.mxu0 %v327
    %2435 = vmatprep.subr.mxu0 0.0
    %2436 = vmatpush2.msra.mxu0 %v324
    %2437 = vmatprep.subr.mxu0 0.0
    %2438 = vmatpush2.msra.mxu0 %v321
    %2439 = vmatprep.subr.mxu0 0.0
    %2440 = vmatpush2.msra.mxu0 %v318
    %2441 = vmatprep.subr.mxu0 0.0
    %2442 = vmatpush2.msra.mxu0 %v315
    %2443 = vmatprep.subr.mxu0 0.0
    %2444 = vmatpush2.msra.mxu0 %v312
    %2445 = vmatprep.subr.mxu0 0.0
    %2446 = vmatpush2.msra.mxu0 %v309
    %2447 = vmatprep.subr.mxu0 0.0
    %2448 = vmatpush2.msra.mxu0 %v306
    %2449 = vmatprep.subr.mxu0 0.0
    %2450 = vmatpush2.msra.mxu0 %v303
    %2451 = vmatprep.subr.mxu0 0.0
    %2452 = vmatpush2.msra.mxu0 %v300
    %2453 = vmatprep.subr.mxu0 0.0
    %2454 = vmatpush2.msra.mxu0 %v297
    %2455 = vmatprep.subr.mxu0 0.0
    %2456 = vmatpush2.msra.mxu0 %v294
    %2457 = vmatprep.mubr.f32.mxu0 %v486
    %2458 = vmatmul.mubr.f32.gmra.mxu0 %v485
    %v2459 = vpop.f32.mrf.mxu0
    %v2460 = vadd.f32 %v2255, %v2459
    %v2461 = vpop.f32.mrf.mxu0
    %2462 = vmatprep.mubr.f32.mxu0 %v495
    %2463 = vmatmul.mubr.f32.gmra.mxu0 %v494
    %v2464 = vpop.f32.mrf.mxu0
    %v2465 = vadd.f32 %v2260, %v2464
    %v2466 = vpop.f32.mrf.mxu0
    %2467 = vmatprep.mubr.f32.mxu0 %v504
    %2468 = vmatmul.mubr.f32.gmra.mxu0 %v503
    %v2469 = vpop.f32.mrf.mxu0
    %v2470 = vadd.f32 %v2265, %v2469
    %v2471 = vpop.f32.mrf.mxu0
    %2472 = vmatprep.mubr.f32.mxu0 %v513
    %2473 = vmatmul.mubr.f32.gmra.mxu0 %v512
    %v2474 = vpop.f32.mrf.mxu0
    %v2475 = vadd.f32 %v2270, %v2474
    %v2476 = vpop.f32.mrf.mxu0
    %2477 = vmatprep.mubr.f32.mxu0 %v522
    %2478 = vmatmul.mubr.f32.gmra.mxu0 %v521
    %v2479 = vpop.f32.mrf.mxu0
    %v2480 = vadd.f32 %v2275, %v2479
    %v2481 = vpop.f32.mrf.mxu0
    %2482 = vmatprep.mubr.f32.mxu0 %v531
    %2483 = vmatmul.mubr.f32.gmra.mxu0 %v530
    %v2484 = vpop.f32.mrf.mxu0
    %v2485 = vadd.f32 %v2280, %v2484
    %v2486 = vpop.f32.mrf.mxu0
    %2487 = vmatprep.mubr.f32.mxu0 %v540
    %2488 = vmatmul.mubr.f32.gmra.mxu0 %v539
    %v2489 = vpop.f32.mrf.mxu0
    %v2490 = vadd.f32 %v2285, %v2489
    %v2491 = vpop.f32.mrf.mxu0
    %2492 = vmatprep.mubr.f32.mxu0 %v549
    %2493 = vmatmul.mubr.f32.gmra.mxu0 %v548
    %v2494 = vpop.f32.mrf.mxu0
    %v2495 = vadd.f32 %v2290, %v2494
    %v2496 = vpop.f32.mrf.mxu0
    %2497 = vmatprep.mubr.f32.mxu0 %v558
    %2498 = vmatmul.mubr.f32.gmra.mxu0 %v557
    %v2499 = vpop.f32.mrf.mxu0
    %v2500 = vadd.f32 %v2295, %v2499
    %v2501 = vpop.f32.mrf.mxu0
    %2502 = vmatprep.mubr.f32.mxu0 %v567
    %2503 = vmatmul.mubr.f32.gmra.mxu0 %v566
    %v2504 = vpop.f32.mrf.mxu0
    %v2505 = vadd.f32 %v2300, %v2504
    %v2506 = vpop.f32.mrf.mxu0
    %2507 = vmatprep.mubr.f32.mxu0 %v576
    %2508 = vmatmul.mubr.f32.gmra.mxu0 %v575
    %v2509 = vpop.f32.mrf.mxu0
    %v2510 = vadd.f32 %v2305, %v2509
    %v2511 = vpop.f32.mrf.mxu0
    %2512 = vmatprep.mubr.f32.mxu0 %v585
    %2513 = vmatmul.mubr.f32.gmra.mxu0 %v584
    %v2514 = vpop.f32.mrf.mxu0
    %v2515 = vadd.f32 %v2310, %v2514
    %v2516 = vpop.f32.mrf.mxu0
    %2517 = vmatprep.mubr.f32.mxu0 %v594
    %2518 = vmatmul.mubr.f32.gmra.mxu0 %v593
    %v2519 = vpop.f32.mrf.mxu0
    %v2520 = vadd.f32 %v2315, %v2519
    %v2521 = vpop.f32.mrf.mxu0
    %2522 = vmatprep.mubr.f32.mxu0 %v603
    %2523 = vmatmul.mubr.f32.gmra.mxu0 %v602
    %v2524 = vpop.f32.mrf.mxu0
    %v2525 = vadd.f32 %v2320, %v2524
    %v2526 = vpop.f32.mrf.mxu0
    %2527 = vmatprep.mubr.f32.mxu0 %v612
    %2528 = vmatmul.mubr.f32.gmra.mxu0 %v611
    %v2529 = vpop.f32.mrf.mxu0
    %v2530 = vadd.f32 %v2325, %v2529
    %v2531 = vpop.f32.mrf.mxu0
    %2532 = vmatprep.mubr.f32.mxu0 %v621
    %2533 = vmatmul.mubr.f32.gmra.mxu0 %v620
    %v2534 = vpop.f32.mrf.mxu0
    %v2535 = vadd.f32 %v2330, %v2534
    %v2536 = vpop.f32.mrf.mxu0
    %2537 = vmatprep.mubr.f32.mxu0 %v630
    %2538 = vmatmul.mubr.f32.gmra.mxu0 %v629
    %v2539 = vpop.f32.mrf.mxu0
    %v2540 = vadd.f32 %v2335, %v2539
    %v2541 = vpop.f32.mrf.mxu0
    %2542 = vmatprep.mubr.f32.mxu0 %v639
    %2543 = vmatmul.mubr.f32.gmra.mxu0 %v638
    %v2544 = vpop.f32.mrf.mxu0
    %v2545 = vadd.f32 %v2340, %v2544
    %v2546 = vpop.f32.mrf.mxu0
    %2547 = vmatprep.mubr.f32.mxu0 %v648
    %2548 = vmatmul.mubr.f32.gmra.mxu0 %v647
    %v2549 = vpop.f32.mrf.mxu0
    %v2550 = vadd.f32 %v2345, %v2549
    %v2551 = vpop.f32.mrf.mxu0
    %2552 = vmatprep.mubr.f32.mxu0 %v657
    %2553 = vmatmul.mubr.f32.gmra.mxu0 %v656
    %v2554 = vpop.f32.mrf.mxu0
    %v2555 = vadd.f32 %v2350, %v2554
    %v2556 = vpop.f32.mrf.mxu0
    %2557 = vmatprep.mubr.f32.mxu0 %v666
    %2558 = vmatmul.mubr.f32.gmra.mxu0 %v665
    %v2559 = vpop.f32.mrf.mxu0
    %v2560 = vadd.f32 %v2355, %v2559
    %v2561 = vpop.f32.mrf.mxu0
    %2562 = vmatprep.mubr.f32.mxu0 %v675
    %2563 = vmatmul.mubr.f32.gmra.mxu0 %v674
    %v2564 = vpop.f32.mrf.mxu0
    %v2565 = vadd.f32 %v2360, %v2564
    %v2566 = vpop.f32.mrf.mxu0
    %2567 = vmatprep.mubr.f32.mxu0 %v684
    %2568 = vmatmul.mubr.f32.gmra.mxu0 %v683
    %v2569 = vpop.f32.mrf.mxu0
    %v2570 = vadd.f32 %v2365, %v2569
    %v2571 = vpop.f32.mrf.mxu0
    %2572 = vmatprep.mubr.f32.mxu0 %v693
    %2573 = vmatmul.mubr.f32.gmra.mxu0 %v692
    %v2574 = vpop.f32.mrf.mxu0
    %v2575 = vadd.f32 %v2370, %v2574
    %v2576 = vpop.f32.mrf.mxu0
    %2577 = vmatprep.mubr.f32.mxu0 %v702
    %2578 = vmatmul.mubr.f32.gmra.mxu0 %v701
    %v2579 = vpop.f32.mrf.mxu0
    %v2580 = vadd.f32 %v2375, %v2579
    %v2581 = vpop.f32.mrf.mxu0
    %2582 = vmatprep.mubr.f32.mxu0 %v711
    %2583 = vmatmul.mubr.f32.gmra.mxu0 %v710
    %v2584 = vpop.f32.mrf.mxu0
    %v2585 = vadd.f32 %v2380, %v2584
    %v2586 = vpop.f32.mrf.mxu0
    %2587 = vmatprep.mubr.f32.mxu0 %v720
    %2588 = vmatmul.mubr.f32.gmra.mxu0 %v719
    %v2589 = vpop.f32.mrf.mxu0
    %v2590 = vadd.f32 %v2385, %v2589
    %v2591 = vpop.f32.mrf.mxu0
    %2592 = vmatprep.mubr.f32.mxu0 %v729
    %2593 = vmatmul.mubr.f32.gmra.mxu0 %v728
    %v2594 = vpop.f32.mrf.mxu0
    %v2595 = vadd.f32 %v2390, %v2594
    %v2596 = vpop.f32.mrf.mxu0
    %2597 = vdwg.mxu0
    %2598 = vmatprep.subr.mxu0 0.0
    %2599 = vmatpush1.msra.mxu0 %v387
    %2600 = vmatprep.subr.mxu0 0.0
    %2601 = vmatpush1.msra.mxu0 %v384
    %2602 = vmatprep.subr.mxu0 0.0
    %2603 = vmatpush1.msra.mxu0 %v381
    %2604 = vmatprep.subr.mxu0 0.0
    %2605 = vmatpush1.msra.mxu0 %v378
    %2606 = vmatprep.subr.mxu0 0.0
    %2607 = vmatpush1.msra.mxu0 %v375
    %2608 = vmatprep.subr.mxu0 0.0
    %2609 = vmatpush1.msra.mxu0 %v372
    %2610 = vmatprep.subr.mxu0 0.0
    %2611 = vmatpush1.msra.mxu0 %v369
    %2612 = vmatprep.subr.mxu0 0.0
    %2613 = vmatpush1.msra.mxu0 %v366
    %2614 = vmatprep.subr.mxu0 0.0
    %2615 = vmatpush1.msra.mxu0 %v363
    %2616 = vmatprep.subr.mxu0 0.0
    %2617 = vmatpush1.msra.mxu0 %v360
    %2618 = vmatprep.subr.mxu0 0.0
    %2619 = vmatpush1.msra.mxu0 %v357
    %2620 = vmatprep.subr.mxu0 0.0
    %2621 = vmatpush1.msra.mxu0 %v354
    %2622 = vmatprep.subr.mxu0 0.0
    %2623 = vmatpush1.msra.mxu0 %v351
    %2624 = vmatprep.subr.mxu0 0.0
    %2625 = vmatpush1.msra.mxu0 %v348
    %2626 = vmatprep.subr.mxu0 0.0
    %2627 = vmatpush1.msra.mxu0 %v345
    %2628 = vmatprep.subr.mxu0 0.0
    %2629 = vmatpush1.msra.mxu0 %v342
    %2630 = vmatprep.subr.mxu0 0.0
    %2631 = vmatpush2.msra.mxu0 %v435
    %2632 = vmatprep.subr.mxu0 0.0
    %2633 = vmatpush2.msra.mxu0 %v432
    %2634 = vmatprep.subr.mxu0 0.0
    %2635 = vmatpush2.msra.mxu0 %v429
    %2636 = vmatprep.subr.mxu0 0.0
    %2637 = vmatpush2.msra.mxu0 %v426
    %2638 = vmatprep.subr.mxu0 0.0
    %2639 = vmatpush2.msra.mxu0 %v423
    %2640 = vmatprep.subr.mxu0 0.0
    %2641 = vmatpush2.msra.mxu0 %v420
    %2642 = vmatprep.subr.mxu0 0.0
    %2643 = vmatpush2.msra.mxu0 %v417
    %2644 = vmatprep.subr.mxu0 0.0
    %2645 = vmatpush2.msra.mxu0 %v414
    %2646 = vmatprep.subr.mxu0 0.0
    %2647 = vmatpush2.msra.mxu0 %v411
    %2648 = vmatprep.subr.mxu0 0.0
    %2649 = vmatpush2.msra.mxu0 %v408
    %2650 = vmatprep.subr.mxu0 0.0
    %2651 = vmatpush2.msra.mxu0 %v405
    %2652 = vmatprep.subr.mxu0 0.0
    %2653 = vmatpush2.msra.mxu0 %v402
    %2654 = vmatprep.subr.mxu0 0.0
    %2655 = vmatpush2.msra.mxu0 %v399
    %2656 = vmatprep.subr.mxu0 0.0
    %2657 = vmatpush2.msra.mxu0 %v396
    %2658 = vmatprep.subr.mxu0 0.0
    %2659 = vmatpush2.msra.mxu0 %v393
    %2660 = vmatprep.subr.mxu0 0.0
    %2661 = vmatpush2.msra.mxu0 %v390
    %2662 = vmatprep.mubr.f32.mxu0 %v488
    %2663 = vmatmul.mubr.f32.gmra.mxu0 %v487
    %v2664 = vpop.f32.mrf.mxu0
    %v2665 = vadd.f32 %v2460, %v2664
    %v2666 = vpop.f32.mrf.mxu0
    %2667 = vmatprep.mubr.f32.mxu0 %v497
    %2668 = vmatmul.mubr.f32.gmra.mxu0 %v496
    %v2669 = vpop.f32.mrf.mxu0
    %v2670 = vadd.f32 %v2465, %v2669
    %v2671 = vpop.f32.mrf.mxu0
    %2672 = vmatprep.mubr.f32.mxu0 %v506
    %2673 = vmatmul.mubr.f32.gmra.mxu0 %v505
    %v2674 = vpop.f32.mrf.mxu0
    %v2675 = vadd.f32 %v2470, %v2674
    %v2676 = vpop.f32.mrf.mxu0
    %2677 = vmatprep.mubr.f32.mxu0 %v515
    %2678 = vmatmul.mubr.f32.gmra.mxu0 %v514
    %v2679 = vpop.f32.mrf.mxu0
    %v2680 = vadd.f32 %v2475, %v2679
    %v2681 = vpop.f32.mrf.mxu0
    %2682 = vmatprep.mubr.f32.mxu0 %v524
    %2683 = vmatmul.mubr.f32.gmra.mxu0 %v523
    %v2684 = vpop.f32.mrf.mxu0
    %v2685 = vadd.f32 %v2480, %v2684
    %v2686 = vpop.f32.mrf.mxu0
    %2687 = vmatprep.mubr.f32.mxu0 %v533
    %2688 = vmatmul.mubr.f32.gmra.mxu0 %v532
    %v2689 = vpop.f32.mrf.mxu0
    %v2690 = vadd.f32 %v2485, %v2689
    %v2691 = vpop.f32.mrf.mxu0
    %2692 = vmatprep.mubr.f32.mxu0 %v542
    %2693 = vmatmul.mubr.f32.gmra.mxu0 %v541
    %v2694 = vpop.f32.mrf.mxu0
    %v2695 = vadd.f32 %v2490, %v2694
    %v2696 = vpop.f32.mrf.mxu0
    %2697 = vmatprep.mubr.f32.mxu0 %v551
    %2698 = vmatmul.mubr.f32.gmra.mxu0 %v550
    %v2699 = vpop.f32.mrf.mxu0
    %v2700 = vadd.f32 %v2495, %v2699
    %v2701 = vpop.f32.mrf.mxu0
    %2702 = vmatprep.mubr.f32.mxu0 %v560
    %2703 = vmatmul.mubr.f32.gmra.mxu0 %v559
    %v2704 = vpop.f32.mrf.mxu0
    %v2705 = vadd.f32 %v2500, %v2704
    %v2706 = vpop.f32.mrf.mxu0
    %2707 = vmatprep.mubr.f32.mxu0 %v569
    %2708 = vmatmul.mubr.f32.gmra.mxu0 %v568
    %v2709 = vpop.f32.mrf.mxu0
    %v2710 = vadd.f32 %v2505, %v2709
    %v2711 = vpop.f32.mrf.mxu0
    %2712 = vmatprep.mubr.f32.mxu0 %v578
    %2713 = vmatmul.mubr.f32.gmra.mxu0 %v577
    %v2714 = vpop.f32.mrf.mxu0
    %v2715 = vadd.f32 %v2510, %v2714
    %v2716 = vpop.f32.mrf.mxu0
    %2717 = vmatprep.mubr.f32.mxu0 %v587
    %2718 = vmatmul.mubr.f32.gmra.mxu0 %v586
    %v2719 = vpop.f32.mrf.mxu0
    %v2720 = vadd.f32 %v2515, %v2719
    %v2721 = vpop.f32.mrf.mxu0
    %2722 = vmatprep.mubr.f32.mxu0 %v596
    %2723 = vmatmul.mubr.f32.gmra.mxu0 %v595
    %v2724 = vpop.f32.mrf.mxu0
    %v2725 = vadd.f32 %v2520, %v2724
    %v2726 = vpop.f32.mrf.mxu0
    %2727 = vmatprep.mubr.f32.mxu0 %v605
    %2728 = vmatmul.mubr.f32.gmra.mxu0 %v604
    %v2729 = vpop.f32.mrf.mxu0
    %v2730 = vadd.f32 %v2525, %v2729
    %v2731 = vpop.f32.mrf.mxu0
    %2732 = vmatprep.mubr.f32.mxu0 %v614
    %2733 = vmatmul.mubr.f32.gmra.mxu0 %v613
    %v2734 = vpop.f32.mrf.mxu0
    %v2735 = vadd.f32 %v2530, %v2734
    %v2736 = vpop.f32.mrf.mxu0
    %2737 = vmatprep.mubr.f32.mxu0 %v623
    %2738 = vmatmul.mubr.f32.gmra.mxu0 %v622
    %v2739 = vpop.f32.mrf.mxu0
    %v2740 = vadd.f32 %v2535, %v2739
    %v2741 = vpop.f32.mrf.mxu0
    %2742 = vmatprep.mubr.f32.mxu0 %v632
    %2743 = vmatmul.mubr.f32.gmra.mxu0 %v631
    %v2744 = vpop.f32.mrf.mxu0
    %v2745 = vadd.f32 %v2540, %v2744
    %v2746 = vpop.f32.mrf.mxu0
    %2747 = vmatprep.mubr.f32.mxu0 %v641
    %2748 = vmatmul.mubr.f32.gmra.mxu0 %v640
    %v2749 = vpop.f32.mrf.mxu0
    %v2750 = vadd.f32 %v2545, %v2749
    %v2751 = vpop.f32.mrf.mxu0
    %2752 = vmatprep.mubr.f32.mxu0 %v650
    %2753 = vmatmul.mubr.f32.gmra.mxu0 %v649
    %v2754 = vpop.f32.mrf.mxu0
    %v2755 = vadd.f32 %v2550, %v2754
    %v2756 = vpop.f32.mrf.mxu0
    %2757 = vmatprep.mubr.f32.mxu0 %v659
    %2758 = vmatmul.mubr.f32.gmra.mxu0 %v658
    %v2759 = vpop.f32.mrf.mxu0
    %v2760 = vadd.f32 %v2555, %v2759
    %v2761 = vpop.f32.mrf.mxu0
    %2762 = vmatprep.mubr.f32.mxu0 %v668
    %2763 = vmatmul.mubr.f32.gmra.mxu0 %v667
    %v2764 = vpop.f32.mrf.mxu0
    %v2765 = vadd.f32 %v2560, %v2764
    %v2766 = vpop.f32.mrf.mxu0
    %2767 = vmatprep.mubr.f32.mxu0 %v677
    %2768 = vmatmul.mubr.f32.gmra.mxu0 %v676
    %v2769 = vpop.f32.mrf.mxu0
    %v2770 = vadd.f32 %v2565, %v2769
    %v2771 = vpop.f32.mrf.mxu0
    %2772 = vmatprep.mubr.f32.mxu0 %v686
    %2773 = vmatmul.mubr.f32.gmra.mxu0 %v685
    %v2774 = vpop.f32.mrf.mxu0
    %v2775 = vadd.f32 %v2570, %v2774
    %v2776 = vpop.f32.mrf.mxu0
    %2777 = vmatprep.mubr.f32.mxu0 %v695
    %2778 = vmatmul.mubr.f32.gmra.mxu0 %v694
    %v2779 = vpop.f32.mrf.mxu0
    %v2780 = vadd.f32 %v2575, %v2779
    %v2781 = vpop.f32.mrf.mxu0
    %2782 = vmatprep.mubr.f32.mxu0 %v704
    %2783 = vmatmul.mubr.f32.gmra.mxu0 %v703
    %v2784 = vpop.f32.mrf.mxu0
    %v2785 = vadd.f32 %v2580, %v2784
    %v2786 = vpop.f32.mrf.mxu0
    %2787 = vmatprep.mubr.f32.mxu0 %v713
    %2788 = vmatmul.mubr.f32.gmra.mxu0 %v712
    %v2789 = vpop.f32.mrf.mxu0
    %v2790 = vadd.f32 %v2585, %v2789
    %v2791 = vpop.f32.mrf.mxu0
    %2792 = vmatprep.mubr.f32.mxu0 %v722
    %2793 = vmatmul.mubr.f32.gmra.mxu0 %v721
    %v2794 = vpop.f32.mrf.mxu0
    %v2795 = vadd.f32 %v2590, %v2794
    %v2796 = vpop.f32.mrf.mxu0
    %2797 = vmatprep.mubr.f32.mxu0 %v731
    %2798 = vmatmul.mubr.f32.gmra.mxu0 %v730
    %v2799 = vpop.f32.mrf.mxu0
    %v2800 = vadd.f32 %v2595, %v2799
    %v2801 = vpop.f32.mrf.mxu0
    %2802 = vdwg.mxu0
    %2803 = vmatprep.subr.mxu0 0.0
    %2804 = vmatpush1.msra.mxu0 0.0
    %2805 = vmatprep.subr.mxu0 0.0
    %2806 = vmatpush1.msra.mxu0 %v480
    %2807 = vmatprep.subr.mxu0 0.0
    %2808 = vmatpush1.msra.mxu0 %v477
    %2809 = vmatprep.subr.mxu0 0.0
    %2810 = vmatpush1.msra.mxu0 %v474
    %2811 = vmatprep.subr.mxu0 0.0
    %2812 = vmatpush1.msra.mxu0 %v471
    %2813 = vmatprep.subr.mxu0 0.0
    %2814 = vmatpush1.msra.mxu0 %v468
    %2815 = vmatprep.subr.mxu0 0.0
    %2816 = vmatpush1.msra.mxu0 %v465
    %2817 = vmatprep.subr.mxu0 0.0
    %2818 = vmatpush1.msra.mxu0 %v462
    %2819 = vmatprep.subr.mxu0 0.0
    %2820 = vmatpush1.msra.mxu0 %v459
    %2821 = vmatprep.subr.mxu0 0.0
    %2822 = vmatpush1.msra.mxu0 %v456
    %2823 = vmatprep.subr.mxu0 0.0
    %2824 = vmatpush1.msra.mxu0 %v453
    %2825 = vmatprep.subr.mxu0 0.0
    %2826 = vmatpush1.msra.mxu0 %v450
    %2827 = vmatprep.subr.mxu0 0.0
    %2828 = vmatpush1.msra.mxu0 %v447
    %2829 = vmatprep.subr.mxu0 0.0
    %2830 = vmatpush1.msra.mxu0 %v444
    %2831 = vmatprep.subr.mxu0 0.0
    %2832 = vmatpush1.msra.mxu0 %v441
    %2833 = vmatprep.subr.mxu0 0.0
    %2834 = vmatpush1.msra.mxu0 %v438
    %2835 = vmatprep.subr.mxu0 0.0
    %2836 = vmatpush2.msra.mxu0 0.0
    %2837 = vmatprep.subr.mxu0 0.0
    %2838 = vmatpush2.msra.mxu0 0.0
    %2839 = vmatprep.subr.mxu0 0.0
    %2840 = vmatpush2.msra.mxu0 0.0
    %2841 = vmatprep.subr.mxu0 0.0
    %2842 = vmatpush2.msra.mxu0 0.0
    %2843 = vmatprep.subr.mxu0 0.0
    %2844 = vmatpush2.msra.mxu0 0.0
    %2845 = vmatprep.subr.mxu0 0.0
    %2846 = vmatpush2.msra.mxu0 0.0
    %2847 = vmatprep.subr.mxu0 0.0
    %2848 = vmatpush2.msra.mxu0 0.0
    %2849 = vmatprep.subr.mxu0 0.0
    %2850 = vmatpush2.msra.mxu0 0.0
    %2851 = vmatprep.subr.mxu0 0.0
    %2852 = vmatpush2.msra.mxu0 0.0
    %2853 = vmatprep.subr.mxu0 0.0
    %2854 = vmatpush2.msra.mxu0 0.0
    %2855 = vmatprep.subr.mxu0 0.0
    %2856 = vmatpush2.msra.mxu0 0.0
    %2857 = vmatprep.subr.mxu0 0.0
    %2858 = vmatpush2.msra.mxu0 0.0
    %2859 = vmatprep.subr.mxu0 0.0
    %2860 = vmatpush2.msra.mxu0 0.0
    %2861 = vmatprep.subr.mxu0 0.0
    %2862 = vmatpush2.msra.mxu0 0.0
    %2863 = vmatprep.subr.mxu0 0.0
    %2864 = vmatpush2.msra.mxu0 0.0
    %2865 = vmatprep.subr.mxu0 0.0
    %2866 = vmatpush2.msra.mxu0 0.0
    %2867 = vmatprep.mubr.f32.mxu0 0.0
    %2868 = vmatmul.mubr.f32.gmra.mxu0 %v735
    %v2869 = vpop.f32.mrf.mxu0
    %v2870 = vadd.f32 %v2665, %v2869
    %v2871 = vpop.f32.mrf.mxu0
    %2872 = vmatprep.mubr.f32.mxu0 0.0
    %2873 = vmatmul.mubr.f32.gmra.mxu0 %v738
    %v2874 = vpop.f32.mrf.mxu0
    %v2875 = vadd.f32 %v2670, %v2874
    %v2876 = vpop.f32.mrf.mxu0
    %2877 = vmatprep.mubr.f32.mxu0 0.0
    %2878 = vmatmul.mubr.f32.gmra.mxu0 %v741
    %v2879 = vpop.f32.mrf.mxu0
    %v2880 = vadd.f32 %v2675, %v2879
    %v2881 = vpop.f32.mrf.mxu0
    %2882 = vmatprep.mubr.f32.mxu0 0.0
    %2883 = vmatmul.mubr.f32.gmra.mxu0 %v744
    %v2884 = vpop.f32.mrf.mxu0
    %v2885 = vadd.f32 %v2680, %v2884
    %v2886 = vpop.f32.mrf.mxu0
    %2887 = vmatprep.mubr.f32.mxu0 0.0
    %2888 = vmatmul.mubr.f32.gmra.mxu0 %v747
    %v2889 = vpop.f32.mrf.mxu0
    %v2890 = vadd.f32 %v2685, %v2889
    %v2891 = vpop.f32.mrf.mxu0
    %2892 = vmatprep.mubr.f32.mxu0 0.0
    %2893 = vmatmul.mubr.f32.gmra.mxu0 %v750
    %v2894 = vpop.f32.mrf.mxu0
    %v2895 = vadd.f32 %v2690, %v2894
    %v2896 = vpop.f32.mrf.mxu0
    %2897 = vmatprep.mubr.f32.mxu0 0.0
    %2898 = vmatmul.mubr.f32.gmra.mxu0 %v753
    %v2899 = vpop.f32.mrf.mxu0
    %v2900 = vadd.f32 %v2695, %v2899
    %v2901 = vpop.f32.mrf.mxu0
    %2902 = vmatprep.mubr.f32.mxu0 0.0
    %2903 = vmatmul.mubr.f32.gmra.mxu0 %v756
    %v2904 = vpop.f32.mrf.mxu0
    %v2905 = vadd.f32 %v2700, %v2904
    %v2906 = vpop.f32.mrf.mxu0
    %2907 = vmatprep.mubr.f32.mxu0 0.0
    %2908 = vmatmul.mubr.f32.gmra.mxu0 %v759
    %v2909 = vpop.f32.mrf.mxu0
    %v2910 = vadd.f32 %v2705, %v2909
    %v2911 = vpop.f32.mrf.mxu0
    %2912 = vmatprep.mubr.f32.mxu0 0.0
    %2913 = vmatmul.mubr.f32.gmra.mxu0 %v762
    %v2914 = vpop.f32.mrf.mxu0
    %v2915 = vadd.f32 %v2710, %v2914
    %v2916 = vpop.f32.mrf.mxu0
    %2917 = vmatprep.mubr.f32.mxu0 0.0
    %2918 = vmatmul.mubr.f32.gmra.mxu0 %v765
    %v2919 = vpop.f32.mrf.mxu0
    %v2920 = vadd.f32 %v2715, %v2919
    %v2921 = vpop.f32.mrf.mxu0
    %2922 = vmatprep.mubr.f32.mxu0 0.0
    %2923 = vmatmul.mubr.f32.gmra.mxu0 %v768
    %v2924 = vpop.f32.mrf.mxu0
    %v2925 = vadd.f32 %v2720, %v2924
    %v2926 = vpop.f32.mrf.mxu0
    %2927 = vmatprep.mubr.f32.mxu0 0.0
    %2928 = vmatmul.mubr.f32.gmra.mxu0 %v771
    %v2929 = vpop.f32.mrf.mxu0
    %v2930 = vadd.f32 %v2725, %v2929
    %v2931 = vpop.f32.mrf.mxu0
    %2932 = vmatprep.mubr.f32.mxu0 0.0
    %2933 = vmatmul.mubr.f32.gmra.mxu0 %v774
    %v2934 = vpop.f32.mrf.mxu0
    %v2935 = vadd.f32 %v2730, %v2934
    %v2936 = vpop.f32.mrf.mxu0
    %2937 = vmatprep.mubr.f32.mxu0 0.0
    %2938 = vmatmul.mubr.f32.gmra.mxu0 %v777
    %v2939 = vpop.f32.mrf.mxu0
    %v2940 = vadd.f32 %v2735, %v2939
    %v2941 = vpop.f32.mrf.mxu0
    %2942 = vmatprep.mubr.f32.mxu0 0.0
    %2943 = vmatmul.mubr.f32.gmra.mxu0 %v780
    %v2944 = vpop.f32.mrf.mxu0
    %v2945 = vadd.f32 %v2740, %v2944
    %v2946 = vpop.f32.mrf.mxu0
    %2947 = vmatprep.mubr.f32.mxu0 0.0
    %2948 = vmatmul.mubr.f32.gmra.mxu0 %v783
    %v2949 = vpop.f32.mrf.mxu0
    %v2950 = vadd.f32 %v2745, %v2949
    %v2951 = vpop.f32.mrf.mxu0
    %2952 = vmatprep.mubr.f32.mxu0 0.0
    %2953 = vmatmul.mubr.f32.gmra.mxu0 %v786
    %v2954 = vpop.f32.mrf.mxu0
    %v2955 = vadd.f32 %v2750, %v2954
    %v2956 = vpop.f32.mrf.mxu0
    %2957 = vmatprep.mubr.f32.mxu0 0.0
    %2958 = vmatmul.mubr.f32.gmra.mxu0 %v789
    %v2959 = vpop.f32.mrf.mxu0
    %v2960 = vadd.f32 %v2755, %v2959
    %v2961 = vpop.f32.mrf.mxu0
    %2962 = vmatprep.mubr.f32.mxu0 0.0
    %2963 = vmatmul.mubr.f32.gmra.mxu0 %v792
    %v2964 = vpop.f32.mrf.mxu0
    %v2965 = vadd.f32 %v2760, %v2964
    %v2966 = vpop.f32.mrf.mxu0
    %2967 = vmatprep.mubr.f32.mxu0 0.0
    %2968 = vmatmul.mubr.f32.gmra.mxu0 %v795
    %v2969 = vpop.f32.mrf.mxu0
    %v2970 = vadd.f32 %v2765, %v2969
    %v2971 = vpop.f32.mrf.mxu0
    %2972 = vmatprep.mubr.f32.mxu0 0.0
    %2973 = vmatmul.mubr.f32.gmra.mxu0 %v798
    %v2974 = vpop.f32.mrf.mxu0
    %v2975 = vadd.f32 %v2770, %v2974
    %v2976 = vpop.f32.mrf.mxu0
    %2977 = vmatprep.mubr.f32.mxu0 0.0
    %2978 = vmatmul.mubr.f32.gmra.mxu0 %v801
    %v2979 = vpop.f32.mrf.mxu0
    %v2980 = vadd.f32 %v2775, %v2979
    %v2981 = vpop.f32.mrf.mxu0
    %2982 = vmatprep.mubr.f32.mxu0 0.0
    %2983 = vmatmul.mubr.f32.gmra.mxu0 %v804
    %v2984 = vpop.f32.mrf.mxu0
    %v2985 = vadd.f32 %v2780, %v2984
    %v2986 = vpop.f32.mrf.mxu0
    %2987 = vmatprep.mubr.f32.mxu0 0.0
    %2988 = vmatmul.mubr.f32.gmra.mxu0 %v807
    %v2989 = vpop.f32.mrf.mxu0
    %v2990 = vadd.f32 %v2785, %v2989
    %v2991 = vpop.f32.mrf.mxu0
    %2992 = vmatprep.mubr.f32.mxu0 0.0
    %2993 = vmatmul.mubr.f32.gmra.mxu0 %v810
    %v2994 = vpop.f32.mrf.mxu0
    %v2995 = vadd.f32 %v2790, %v2994
    %v2996 = vpop.f32.mrf.mxu0
    %2997 = vmatprep.mubr.f32.mxu0 0.0
    %2998 = vmatmul.mubr.f32.gmra.mxu0 %v813
    %v2999 = vpop.f32.mrf.mxu0
    %v3000 = vadd.f32 %v2795, %v2999
    %v3001 = vpop.f32.mrf.mxu0
    %3002 = vmatprep.mubr.f32.mxu0 0.0
    %3003 = vmatmul.mubr.f32.gmra.mxu0 %v816
    %v3004 = vpop.f32.mrf.mxu0
    %v3005 = vadd.f32 %v2800, %v3004
    %v3006 = vpop.f32.mrf.mxu0
    %3007 = vdwg.mxu0
    %v3008 = vmax.f32 %v1817, %v1901
    %v3009 = vmax.f32 %v1819, %v1903
    %v3010 = vmax.f32 %v2870, %v2940
    %v3011 = vmax.f32 %v1823, %v1907
    %v3012 = vmax.f32 %v1825, %v1909
    %v3013 = vmax.f32 %v2875, %v2945
    %v3014 = vmax.f32 %v1829, %v1913
    %v3015 = vmax.f32 %v1831, %v1915
    %v3016 = vmax.f32 %v2880, %v2950
    %v3017 = vmax.f32 %v1835, %v1919
    %v3018 = vmax.f32 %v1837, %v1921
    %v3019 = vmax.f32 %v2885, %v2955
    %v3020 = vmax.f32 %v1841, %v1925
    %v3021 = vmax.f32 %v1843, %v1927
    %v3022 = vmax.f32 %v2890, %v2960
    %v3023 = vmax.f32 %v1847, %v1931
    %v3024 = vmax.f32 %v1849, %v1933
    %v3025 = vmax.f32 %v2895, %v2965
    %v3026 = vmax.f32 %v1853, %v1937
    %v3027 = vmax.f32 %v1855, %v1939
    %v3028 = vmax.f32 %v2900, %v2970
    %v3029 = vmax.f32 %v1859, %v1943
    %v3030 = vmax.f32 %v1861, %v1945
    %v3031 = vmax.f32 %v2905, %v2975
    %v3032 = vmax.f32 %v1865, %v1949
    %v3033 = vmax.f32 %v1867, %v1951
    %v3034 = vmax.f32 %v2910, %v2980
    %v3035 = vmax.f32 %v1871, %v1955
    %v3036 = vmax.f32 %v1873, %v1957
    %v3037 = vmax.f32 %v2915, %v2985
    %v3038 = vmax.f32 %v1877, %v1961
    %v3039 = vmax.f32 %v1879, %v1963
    %v3040 = vmax.f32 %v2920, %v2990
    %v3041 = vmax.f32 %v1883, %v1967
    %v3042 = vmax.f32 %v1885, %v1969
    %v3043 = vmax.f32 %v2925, %v2995
    %v3044 = vmax.f32 %v1889, %v1973
    %v3045 = vmax.f32 %v1891, %v1975
    %v3046 = vmax.f32 %v2930, %v3000
    %v3047 = vmax.f32 %v1895, %v1979
    %v3048 = vmax.f32 %v1897, %v1981
    %v3049 = vmax.f32 %v2935, %v3005
    %v3050 = vld [vmem:[%s2] sm:$0xff]
    %v3051 = vld [vmem:[%s2 + $0x8] sm:$0xff]
    %v3052 = vld [vmem:[%s2 + $0x10] sm:$0xff]
    %v3053 = vld [vmem:[%s2 + $0x18] sm:$0xff]
    %v3054 = vld [vmem:[%s2 + $0x20] sm:$0xff]
    %v3055 = vld [vmem:[%s2 + $0x28] sm:$0xff]
    %v3056 = vld [vmem:[%s2 + $0x30] sm:$0xff]
    %v3057 = vld [vmem:[%s2 + $0x38] sm:$0xff]
    %v3058 = vld [vmem:[%s2 + $0x40] sm:$0xff]
    %v3059 = vld [vmem:[%s2 + $0x48] sm:$0xff]
    %v3060 = vld [vmem:[%s2 + $0x50] sm:$0xff]
    %v3061 = vld [vmem:[%s2 + $0x58] sm:$0xff]
    %v3062 = vld [vmem:[%s2 + $0x60] sm:$0xff]
    %v3063 = vld [vmem:[%s2 + $0x68] sm:$0xff]
    %3065 = vset.pattern.permute.xlu0 0
    %3066 = vperm.xlu0 %3065, %v3050
    %v3067 = vpop.permute.xlu0 %3066
    %3070 = vset.pattern.permute.xlu0 0
    %3071 = vperm.xlu0 %3070, %v3051
    %v3072 = vpop.permute.xlu0 %3071
    %3075 = vset.pattern.permute.xlu0 0
    %3076 = vperm.xlu0 %3075, %v3052
    %v3077 = vpop.permute.xlu0 %3076
    %3080 = vset.pattern.permute.xlu0 0
    %3081 = vperm.xlu0 %3080, %v3053
    %v3082 = vpop.permute.xlu0 %3081
    %3085 = vset.pattern.permute.xlu0 0
    %3086 = vperm.xlu0 %3085, %v3054
    %v3087 = vpop.permute.xlu0 %3086
    %3090 = vset.pattern.permute.xlu0 0
    %3091 = vperm.xlu0 %3090, %v3055
    %v3092 = vpop.permute.xlu0 %3091
    %3095 = vset.pattern.permute.xlu0 0
    %3096 = vperm.xlu0 %3095, %v3056
    %v3097 = vpop.permute.xlu0 %3096
    %3100 = vset.pattern.permute.xlu0 0
    %3101 = vperm.xlu0 %3100, %v3057
    %v3102 = vpop.permute.xlu0 %3101
    %3105 = vset.pattern.permute.xlu0 0
    %3106 = vperm.xlu0 %3105, %v3058
    %v3107 = vpop.permute.xlu0 %3106
    %3110 = vset.pattern.permute.xlu0 0
    %3111 = vperm.xlu0 %3110, %v3059
    %v3112 = vpop.permute.xlu0 %3111
    %3115 = vset.pattern.permute.xlu0 0
    %3116 = vperm.xlu0 %3115, %v3060
    %v3117 = vpop.permute.xlu0 %3116
    %3120 = vset.pattern.permute.xlu0 0
    %3121 = vperm.xlu0 %3120, %v3061
    %v3122 = vpop.permute.xlu0 %3121
    %3125 = vset.pattern.permute.xlu0 0
    %3126 = vperm.xlu0 %3125, %v3062
    %v3127 = vpop.permute.xlu0 %3126
    %3130 = vset.pattern.permute.xlu0 0
    %3131 = vperm.xlu0 %3130, %v3063
    %v3132 = vpop.permute.xlu0 %3131
    %v3134 = vadd.f32 %v3008, %v3067
    %v3135 = vadd.f32 %v3009, %v3067
    %v3136 = vadd.f32 %v3010, %v3067
    %v3137 = vadd.f32 %v3011, %v3072
    %v3138 = vadd.f32 %v3012, %v3072
    %v3139 = vadd.f32 %v3013, %v3072
    %v3140 = vadd.f32 %v3014, %v3077
    %v3141 = vadd.f32 %v3015, %v3077
    %v3142 = vadd.f32 %v3016, %v3077
    %v3143 = vadd.f32 %v3017, %v3082
    %v3144 = vadd.f32 %v3018, %v3082
    %v3145 = vadd.f32 %v3019, %v3082
    %v3146 = vadd.f32 %v3020, %v3087
    %v3147 = vadd.f32 %v3021, %v3087
    %v3148 = vadd.f32 %v3022, %v3087
    %v3149 = vadd.f32 %v3023, %v3092
    %v3150 = vadd.f32 %v3024, %v3092
    %v3151 = vadd.f32 %v3025, %v3092
    %v3152 = vadd.f32 %v3026, %v3097
    %v3153 = vadd.f32 %v3027, %v3097
    %v3154 = vadd.f32 %v3028, %v3097
    %v3155 = vadd.f32 %v3029, %v3102
    %v3156 = vadd.f32 %v3030, %v3102
    %v3157 = vadd.f32 %v3031, %v3102
    %v3158 = vadd.f32 %v3032, %v3107
    %v3159 = vadd.f32 %v3033, %v3107
    %v3160 = vadd.f32 %v3034, %v3107
    %v3161 = vadd.f32 %v3035, %v3112
    %v3162 = vadd.f32 %v3036, %v3112
    %v3163 = vadd.f32 %v3037, %v3112
    %v3164 = vadd.f32 %v3038, %v3117
    %v3165 = vadd.f32 %v3039, %v3117
    %v3166 = vadd.f32 %v3040, %v3117
    %v3167 = vadd.f32 %v3041, %v3122
    %v3168 = vadd.f32 %v3042, %v3122
    %v3169 = vadd.f32 %v3043, %v3122
    %v3170 = vadd.f32 %v3044, %v3127
    %v3171 = vadd.f32 %v3045, %v3127
    %v3172 = vadd.f32 %v3046, %v3127
    %v3173 = vadd.f32 %v3047, %v3132
    %v3174 = vadd.f32 %v3048, %v3132
    %v3175 = vadd.f32 %v3049, %v3132
    %v3176 = vmax.f32 %v3134, 0.0
    %v3177 = vmax.f32 %v3135, 0.0
    %v3178 = vmax.f32 %v3136, 0.0
    %v3179 = vmax.f32 %v3137, 0.0
    %v3180 = vmax.f32 %v3138, 0.0
    %v3181 = vmax.f32 %v3139, 0.0
    %v3182 = vmax.f32 %v3140, 0.0
    %v3183 = vmax.f32 %v3141, 0.0
    %v3184 = vmax.f32 %v3142, 0.0
    %v3185 = vmax.f32 %v3143, 0.0
    %v3186 = vmax.f32 %v3144, 0.0
    %v3187 = vmax.f32 %v3145, 0.0
    %v3188 = vmax.f32 %v3146, 0.0
    %v3189 = vmax.f32 %v3147, 0.0
    %v3190 = vmax.f32 %v3148, 0.0
    %v3191 = vmax.f32 %v3149, 0.0
    %v3192 = vmax.f32 %v3150, 0.0
    %v3193 = vmax.f32 %v3151, 0.0
    %v3194 = vmax.f32 %v3152, 0.0
    %v3195 = vmax.f32 %v3153, 0.0
    %v3196 = vmax.f32 %v3154, 0.0
    %v3197 = vmax.f32 %v3155, 0.0
    %v3198 = vmax.f32 %v3156, 0.0
    %v3199 = vmax.f32 %v3157, 0.0
    %v3200 = vmax.f32 %v3158, 0.0
    %v3201 = vmax.f32 %v3159, 0.0
    %v3202 = vmax.f32 %v3160, 0.0
    %v3203 = vmax.f32 %v3161, 0.0
    %v3204 = vmax.f32 %v3162, 0.0
    %v3205 = vmax.f32 %v3163, 0.0
    %v3206 = vmax.f32 %v3164, 0.0
    %v3207 = vmax.f32 %v3165, 0.0
    %v3208 = vmax.f32 %v3166, 0.0
    %v3209 = vmax.f32 %v3167, 0.0
    %v3210 = vmax.f32 %v3168, 0.0
    %v3211 = vmax.f32 %v3169, 0.0
    %v3212 = vmax.f32 %v3170, 0.0
    %v3213 = vmax.f32 %v3171, 0.0
    %v3214 = vmax.f32 %v3172, 0.0
    %v3215 = vmax.f32 %v3173, 0.0
    %v3216 = vmax.f32 %v3174, 0.0
    %v3217 = vmax.f32 %v3175, 0.0
    %v3218 = vld [vmem:[%s3] sm:$0xff]
    %v3219 = vld [vmem:[%s3 + $0x8] sm:$0xff]
    %v3220 = vld [vmem:[%s3 + $0x10] sm:$0x3]
    %vm3221 = vcmask 916480
    %v3223 = vsel %vm3221, %v3218, 0
    %v3226 = vsel %vm3221, %v3219, 0
    %v3229 = vsel %vm3221, %v3220, 0
    %3231 = vmatprep.subr.mxu0 0.0
    %3232 = vmatpush1.msra.mxu0 0.0
    %3233 = vmatprep.subr.mxu0 0.0
    %3234 = vmatpush1.msra.mxu0 0.0
    %3235 = vmatprep.subr.mxu0 %v3216
    %3236 = vmatpush1.msra.mxu0 %v3215
    %3237 = vmatprep.subr.mxu0 %v3213
    %3238 = vmatpush1.msra.mxu0 %v3212
    %3239 = vmatprep.subr.mxu0 %v3210
    %3240 = vmatpush1.msra.mxu0 %v3209
    %3241 = vmatprep.subr.mxu0 %v3207
    %3242 = vmatpush1.msra.mxu0 %v3206
    %3243 = vmatprep.subr.mxu0 %v3204
    %3244 = vmatpush1.msra.mxu0 %v3203
    %3245 = vmatprep.subr.mxu0 %v3201
    %3246 = vmatpush1.msra.mxu0 %v3200
    %3247 = vmatprep.subr.mxu0 %v3198
    %3248 = vmatpush1.msra.mxu0 %v3197
    %3249 = vmatprep.subr.mxu0 %v3195
    %3250 = vmatpush1.msra.mxu0 %v3194
    %3251 = vmatprep.subr.mxu0 %v3192
    %3252 = vmatpush1.msra.mxu0 %v3191
    %3253 = vmatprep.subr.mxu0 %v3189
    %3254 = vmatpush1.msra.mxu0 %v3188
    %3255 = vmatprep.subr.mxu0 %v3186
    %3256 = vmatpush1.msra.mxu0 %v3185
    %3257 = vmatprep.subr.mxu0 %v3183
    %3258 = vmatpush1.msra.mxu0 %v3182
    %3259 = vmatprep.subr.mxu0 %v3180
    %3260 = vmatpush1.msra.mxu0 %v3179
    %3261 = vmatprep.subr.mxu0 %v3177
    %3262 = vmatpush1.msra.mxu0 %v3176
    %3263 = vmatprep.subr.mxu0 0.0
    %3264 = vmatpush2.msra.mxu0 0.0
    %3265 = vmatprep.subr.mxu0 0.0
    %3266 = vmatpush2.msra.mxu0 0.0
    %3267 = vmatprep.subr.mxu0 0.0
    %3268 = vmatpush2.msra.mxu0 0.0
    %3269 = vmatprep.subr.mxu0 0.0
    %3270 = vmatpush2.msra.mxu0 0.0
    %3271 = vmatprep.subr.mxu0 0.0
    %3272 = vmatpush2.msra.mxu0 0.0
    %3273 = vmatprep.subr.mxu0 0.0
    %3274 = vmatpush2.msra.mxu0 0.0
    %3275 = vmatprep.subr.mxu0 0.0
    %3276 = vmatpush2.msra.mxu0 0.0
    %3277 = vmatprep.subr.mxu0 0.0
    %3278 = vmatpush2.msra.mxu0 0.0
    %3279 = vmatprep.subr.mxu0 0.0
    %3280 = vmatpush2.msra.mxu0 0.0
    %3281 = vmatprep.subr.mxu0 0.0
    %3282 = vmatpush2.msra.mxu0 0.0
    %3283 = vmatprep.subr.mxu0 0.0
    %3284 = vmatpush2.msra.mxu0 0.0
    %3285 = vmatprep.subr.mxu0 0.0
    %3286 = vmatpush2.msra.mxu0 0.0
    %3287 = vmatprep.subr.mxu0 0.0
    %3288 = vmatpush2.msra.mxu0 0.0
    %3289 = vmatprep.subr.mxu0 0.0
    %3290 = vmatpush2.msra.mxu0 0.0
    %3291 = vmatprep.subr.mxu0 0.0
    %3292 = vmatpush2.msra.mxu0 0.0
    %3293 = vmatprep.subr.mxu0 0.0
    %3294 = vmatpush2.msra.mxu0 0.0
    %3295 = vmatprep.mubr.f32.mxu0 0.0
    %3296 = vmatmul.mubr.f32.gmra.mxu0 %v3223
    %v3297 = vpop.f32.mrf.mxu0
    %v3298 = vadd.f32 0.0, %v3297
    %v3299 = vpop.f32.mrf.mxu0
    %v3300 = vadd.f32 0.0, %v3299
    %3301 = vmatprep.mubr.f32.mxu0 0.0
    %3302 = vmatmul.mubr.f32.gmra.mxu0 %v3226
    %v3303 = vpop.f32.mrf.mxu0
    %v3304 = vadd.f32 0.0, %v3303
    %v3305 = vpop.f32.mrf.mxu0
    %v3306 = vadd.f32 0.0, %v3305
    %3307 = vmatprep.mubr.f32.mxu0 0.0
    %3308 = vmatmul.mubr.f32.gmra.mxu0 %v3229
    %v3309 = vpop.f32.mrf.mxu0
    %v3310 = vadd.f32 0.0, %v3309
    %v3311 = vpop.f32.mrf.mxu0
    %v3312 = vadd.f32 0.0, %v3311
    %3313 = vdwg.mxu0
    %3314 = vmatprep.subr.mxu0 0.0
    %3315 = vmatpush1.msra.mxu0 0.0
    %3316 = vmatprep.subr.mxu0 0.0
    %3317 = vmatpush1.msra.mxu0 0.0
    %3318 = vmatprep.subr.mxu0 0.0
    %3319 = vmatpush1.msra.mxu0 %v3217
    %3320 = vmatprep.subr.mxu0 0.0
    %3321 = vmatpush1.msra.mxu0 %v3214
    %3322 = vmatprep.subr.mxu0 0.0
    %3323 = vmatpush1.msra.mxu0 %v3211
    %3324 = vmatprep.subr.mxu0 0.0
    %3325 = vmatpush1.msra.mxu0 %v3208
    %3326 = vmatprep.subr.mxu0 0.0
    %3327 = vmatpush1.msra.mxu0 %v3205
    %3328 = vmatprep.subr.mxu0 0.0
    %3329 = vmatpush1.msra.mxu0 %v3202
    %3330 = vmatprep.subr.mxu0 0.0
    %3331 = vmatpush1.msra.mxu0 %v3199
    %3332 = vmatprep.subr.mxu0 0.0
    %3333 = vmatpush1.msra.mxu0 %v3196
    %3334 = vmatprep.subr.mxu0 0.0
    %3335 = vmatpush1.msra.mxu0 %v3193
    %3336 = vmatprep.subr.mxu0 0.0
    %3337 = vmatpush1.msra.mxu0 %v3190
    %3338 = vmatprep.subr.mxu0 0.0
    %3339 = vmatpush1.msra.mxu0 %v3187
    %3340 = vmatprep.subr.mxu0 0.0
    %3341 = vmatpush1.msra.mxu0 %v3184
    %3342 = vmatprep.subr.mxu0 0.0
    %3343 = vmatpush1.msra.mxu0 %v3181
    %3344 = vmatprep.subr.mxu0 0.0
    %3345 = vmatpush1.msra.mxu0 %v3178
    %3346 = vmatprep.subr.mxu0 0.0
    %3347 = vmatpush2.msra.mxu0 0.0
    %3348 = vmatprep.subr.mxu0 0.0
    %3349 = vmatpush2.msra.mxu0 0.0
    %3350 = vmatprep.subr.mxu0 0.0
    %3351 = vmatpush2.msra.mxu0 0.0
    %3352 = vmatprep.subr.mxu0 0.0
    %3353 = vmatpush2.msra.mxu0 0.0
    %3354 = vmatprep.subr.mxu0 0.0
    %3355 = vmatpush2.msra.mxu0 0.0
    %3356 = vmatprep.subr.mxu0 0.0
    %3357 = vmatpush2.msra.mxu0 0.0
    %3358 = vmatprep.subr.mxu0 0.0
    %3359 = vmatpush2.msra.mxu0 0.0
    %3360 = vmatprep.subr.mxu0 0.0
    %3361 = vmatpush2.msra.mxu0 0.0
    %3362 = vmatprep.subr.mxu0 0.0
    %3363 = vmatpush2.msra.mxu0 0.0
    %3364 = vmatprep.subr.mxu0 0.0
    %3365 = vmatpush2.msra.mxu0 0.0
    %3366 = vmatprep.subr.mxu0 0.0
    %3367 = vmatpush2.msra.mxu0 0.0
    %3368 = vmatprep.subr.mxu0 0.0
    %3369 = vmatpush2.msra.mxu0 0.0
    %3370 = vmatprep.subr.mxu0 0.0
    %3371 = vmatpush2.msra.mxu0 0.0
    %3372 = vmatprep.subr.mxu0 0.0
    %3373 = vmatpush2.msra.mxu0 0.0
    %3374 = vmatprep.subr.mxu0 0.0
    %3375 = vmatpush2.msra.mxu0 0.0
    %3376 = vmatprep.subr.mxu0 0.0
    %3377 = vmatpush2.msra.mxu0 0.0
    %3378 = vmatprep.mubr.f32.mxu0 0.0
    %3379 = vmatmul.mubr.f32.gmra.mxu0 %v3223
    %v3380 = vpop.f32.mrf.mxu0
    %v3381 = vadd.f32 0.0, %v3380
    %v3382 = vpop.f32.mrf.mxu0
    %3383 = vmatprep.mubr.f32.mxu0 0.0
    %3384 = vmatmul.mubr.f32.gmra.mxu0 %v3226
    %v3385 = vpop.f32.mrf.mxu0
    %v3386 = vadd.f32 0.0, %v3385
    %v3387 = vpop.f32.mrf.mxu0
    %3388 = vmatprep.mubr.f32.mxu0 0.0
    %3389 = vmatmul.mubr.f32.gmra.mxu0 %v3229
    %v3390 = vpop.f32.mrf.mxu0
    %v3391 = vadd.f32 0.0, %v3390
    %v3392 = vpop.f32.mrf.mxu0
    %3393 = vdwg.mxu0
    %vm3400 = vcmask 1046528
    %v3401 = vrot.slane %v3304, 1
    %v3402 = vrot.slane %v3310, 1
    %v3403 = vsel %vm3400, %v3401, %v3402
    %v3404 = vrot.slane %v3306, 1
    %v3405 = vrot.slane %v3312, 1
    %v3406 = vsel %vm3400, %v3404, %v3405
    %v3407 = vrot.slane %v3386, 1
    %v3408 = vrot.slane %v3391, 1
    %v3409 = vsel %vm3400, %v3407, %v3408
    %v3416 = vmax.f32 %v3298, %v3403
    %v3417 = vmax.f32 %v3300, %v3406
    %v3418 = vmax.f32 %v3381, %v3409
    %v3419 = vmax.f32 %v3304, %v3402
    %v3420 = vmax.f32 %v3306, %v3405
    %v3421 = vmax.f32 %v3386, %v3408
    %v3422 = vld [vmem:[#allocation2] sm:$0x1]
    %v3424 = vlaneseq
    %v3425 = vshrl.u32 %v3424, 7
    %v3426 = vsub.s32 0, %v3425
    %v3427 = vrot.slane %v3422, %v3426
    %3428 = vset.pattern.permute.xlu0 0
    %3429 = vperm.xlu0 %3428, %v3427
    %v3430 = vpop.permute.xlu0 %3429
    %v3432 = vadd.f32 %v3416, %v3430
    %v3433 = vadd.f32 %v3417, %v3430
    %v3434 = vadd.f32 %v3418, %v3430
    %v3435 = vadd.f32 %v3419, %v3430
    %v3436 = vadd.f32 %v3420, %v3430
    %v3437 = vadd.f32 %v3421, %v3430
    %v3438 = vmax.f32 %v3432, 0.0
    %v3439 = vmax.f32 %v3433, 0.0
    %v3440 = vmax.f32 %v3434, 0.0
    %v3441 = vmax.f32 %v3435, 0.0
    %v3442 = vmax.f32 %v3436, 0.0
    %v3443 = vmax.f32 %v3437, 0.0
    %vm3448 = vcmask 1040384
    %v3449 = vrot.slane %v3438, 7
    %v3450 = vrot.slane %v3439, 7
    %v3451 = vrot.slane %v3441, 7
    %v3452 = vsel %vm3448, %v3449, %v3451
    %v3453 = vrot.slane %v3442, 7
    %v3454 = vsel %vm3448, %v3450, %v3453
    %3455 = vrot.lane.b32.xlu0 %v3449, 127
    %v3456 = vpop.permute.xlu0 %3455
    %3457 = vrot.lane.b32.xlu0 %v3450, 127
    %v3458 = vpop.permute.xlu0 %3457
    %3459 = vrot.lane.b32.xlu0 %v3452, 127
    %v3460 = vpop.permute.xlu0 %3459
    %3461 = vrot.lane.b32.xlu0 %v3454, 127
    %v3462 = vpop.permute.xlu0 %3461
    %vm3463 = vcmask 1039360
    %v3464 = vsel %vm3463, %v3456, %v3458
    %v3465 = vsel %vm3463, %v3460, %v3462
    %vm3470 = vcmask 1041408
    %v3471 = vrot.slane %v3438, 6
    %v3472 = vrot.slane %v3439, 6
    %v3473 = vrot.slane %v3441, 6
    %v3474 = vsel %vm3470, %v3471, %v3473
    %v3475 = vrot.slane %v3442, 6
    %v3476 = vsel %vm3470, %v3472, %v3475
    %3477 = vrot.lane.b32.xlu0 %v3471, 126
    %v3478 = vpop.permute.xlu0 %3477
    %3479 = vrot.lane.b32.xlu0 %v3472, 126
    %v3480 = vpop.permute.xlu0 %3479
    %3481 = vrot.lane.b32.xlu0 %v3474, 126
    %v3482 = vpop.permute.xlu0 %3481
    %3483 = vrot.lane.b32.xlu0 %v3476, 126
    %v3484 = vpop.permute.xlu0 %3483
    %vm3485 = vcmask 1031168
    %v3486 = vsel %vm3485, %v3478, %v3480
    %v3487 = vsel %vm3485, %v3482, %v3484
    %vm3492 = vcmask 1042432
    %v3493 = vrot.slane %v3438, 5
    %v3494 = vrot.slane %v3439, 5
    %v3495 = vrot.slane %v3441, 5
    %v3496 = vsel %vm3492, %v3493, %v3495
    %v3497 = vrot.slane %v3442, 5
    %v3498 = vsel %vm3492, %v3494, %v3497
    %3499 = vrot.lane.b32.xlu0 %v3493, 125
    %v3500 = vpop.permute.xlu0 %3499
    %3501 = vrot.lane.b32.xlu0 %v3494, 125
    %v3502 = vpop.permute.xlu0 %3501
    %3503 = vrot.lane.b32.xlu0 %v3496, 125
    %v3504 = vpop.permute.xlu0 %3503
    %3505 = vrot.lane.b32.xlu0 %v3498, 125
    %v3506 = vpop.permute.xlu0 %3505
    %vm3507 = vcmask 1022976
    %v3508 = vsel %vm3507, %v3500, %v3502
    %v3509 = vsel %vm3507, %v3504, %v3506
    %vm3516 = vcmask 1043456
    %v3517 = vrot.slane %v3438, 4
    %v3518 = vrot.slane %v3439, 4
    %v3519 = vrot.slane %v3440, 4
    %v3520 = vrot.slane %v3441, 4
    %v3521 = vsel %vm3516, %v3517, %v3520
    %v3522 = vrot.slane %v3442, 4
    %v3523 = vsel %vm3516, %v3518, %v3522
    %v3524 = vrot.slane %v3443, 4
    %v3525 = vsel %vm3516, %v3519, %v3524
    %3526 = vrot.lane.b32.xlu0 %v3517, 103
    %v3527 = vpop.permute.xlu0 %3526
    %3528 = vrot.lane.b32.xlu0 %v3518, 103
    %v3529 = vpop.permute.xlu0 %3528
    %3530 = vrot.lane.b32.xlu0 %v3519, 103
    %v3531 = vpop.permute.xlu0 %3530
    %3532 = vrot.lane.b32.xlu0 %v3521, 103
    %v3533 = vpop.permute.xlu0 %3532
    %3534 = vrot.lane.b32.xlu0 %v3523, 103
    %v3535 = vpop.permute.xlu0 %3534
    %3536 = vrot.lane.b32.xlu0 %v3525, 103
    %v3537 = vpop.permute.xlu0 %3536
    %vm3538 = vcmask 842752
    %v3539 = vsel %vm3538, %v3527, %v3529
    %v3540 = vsel %vm3538, %v3529, %v3531
    %v3541 = vsel %vm3538, %v3533, %v3535
    %v3542 = vsel %vm3538, %v3535, %v3537
    %vm3547 = vcmask 1044480
    %v3548 = vrot.slane %v3438, 3
    %v3549 = vrot.slane %v3439, 3
    %v3550 = vrot.slane %v3440, 3
    %v3551 = vrot.slane %v3441, 3
    %v3552 = vsel %vm3547, %v3548, %v3551
    %v3553 = vrot.slane %v3442, 3
    %v3554 = vsel %vm3547, %v3549, %v3553
    %v3555 = vrot.slane %v3443, 3
    %v3556 = vsel %vm3547, %v3550, %v3555
    %3557 = vrot.lane.b32.xlu0 %v3548, 102
    %v3558 = vpop.permute.xlu0 %3557
    %3559 = vrot.lane.b32.xlu0 %v3549, 102
    %v3560 = vpop.permute.xlu0 %3559
    %3561 = vrot.lane.b32.xlu0 %v3550, 102
    %v3562 = vpop.permute.xlu0 %3561
    %3563 = vrot.lane.b32.xlu0 %v3552, 102
    %v3564 = vpop.permute.xlu0 %3563
    %3565 = vrot.lane.b32.xlu0 %v3554, 102
    %v3566 = vpop.permute.xlu0 %3565
    %3567 = vrot.lane.b32.xlu0 %v3556, 102
    %v3568 = vpop.permute.xlu0 %3567
    %vm3569 = vcmask 834560
    %v3570 = vsel %vm3569, %v3558, %v3560
    %v3571 = vsel %vm3569, %v3560, %v3562
    %v3572 = vsel %vm3569, %v3564, %v3566
    %v3573 = vsel %vm3569, %v3566, %v3568
    %vm3578 = vcmask 1045504
    %v3579 = vrot.slane %v3438, 2
    %v3580 = vrot.slane %v3439, 2
    %v3581 = vrot.slane %v3440, 2
    %v3582 = vrot.slane %v3441, 2
    %v3583 = vsel %vm3578, %v3579, %v3582
    %v3584 = vrot.slane %v3442, 2
    %v3585 = vsel %vm3578, %v3580, %v3584
    %v3586 = vrot.slane %v3443, 2
    %v3587 = vsel %vm3578, %v3581, %v3586
    %3588 = vrot.lane.b32.xlu0 %v3579, 101
    %v3589 = vpop.permute.xlu0 %3588
    %3590 = vrot.lane.b32.xlu0 %v3580, 101
    %v3591 = vpop.permute.xlu0 %3590
    %3592 = vrot.lane.b32.xlu0 %v3581, 101
    %v3593 = vpop.permute.xlu0 %3592
    %3594 = vrot.lane.b32.xlu0 %v3583, 101
    %v3595 = vpop.permute.xlu0 %3594
    %3596 = vrot.lane.b32.xlu0 %v3585, 101
    %v3597 = vpop.permute.xlu0 %3596
    %3598 = vrot.lane.b32.xlu0 %v3587, 101
    %v3599 = vpop.permute.xlu0 %3598
    %vm3600 = vcmask 826368
    %v3601 = vsel %vm3600, %v3589, %v3591
    %v3602 = vsel %vm3600, %v3591, %v3593
    %v3603 = vsel %vm3600, %v3595, %v3597
    %v3604 = vsel %vm3600, %v3597, %v3599
    %v3609 = vrot.slane %v3438, 1
    %v3610 = vrot.slane %v3439, 1
    %v3611 = vrot.slane %v3440, 1
    %v3612 = vrot.slane %v3441, 1
    %v3613 = vsel %vm3400, %v3609, %v3612
    %v3614 = vrot.slane %v3442, 1
    %v3615 = vsel %vm3400, %v3610, %v3614
    %v3616 = vrot.slane %v3443, 1
    %v3617 = vsel %vm3400, %v3611, %v3616
    %3618 = vrot.lane.b32.xlu0 %v3609, 100
    %v3619 = vpop.permute.xlu0 %3618
    %3620 = vrot.lane.b32.xlu0 %v3610, 100
    %v3621 = vpop.permute.xlu0 %3620
    %3622 = vrot.lane.b32.xlu0 %v3611, 100
    %v3623 = vpop.permute.xlu0 %3622
    %3624 = vrot.lane.b32.xlu0 %v3613, 100
    %v3625 = vpop.permute.xlu0 %3624
    %3626 = vrot.lane.b32.xlu0 %v3615, 100
    %v3627 = vpop.permute.xlu0 %3626
    %3628 = vrot.lane.b32.xlu0 %v3617, 100
    %v3629 = vpop.permute.xlu0 %3628
    %vm3630 = vcmask 818176
    %v3631 = vsel %vm3630, %v3619, %v3621
    %v3632 = vsel %vm3630, %v3621, %v3623
    %v3633 = vsel %vm3630, %v3625, %v3627
    %v3634 = vsel %vm3630, %v3627, %v3629
    %3639 = vrot.lane.b32.xlu0 %v3438, 78
    %v3640 = vpop.permute.xlu0 %3639
    %3641 = vrot.lane.b32.xlu0 %v3439, 78
    %v3642 = vpop.permute.xlu0 %3641
    %3643 = vrot.lane.b32.xlu0 %v3440, 78
    %v3644 = vpop.permute.xlu0 %3643
    %3645 = vrot.lane.b32.xlu0 %v3441, 78
    %v3646 = vpop.permute.xlu0 %3645
    %3647 = vrot.lane.b32.xlu0 %v3442, 78
    %v3648 = vpop.permute.xlu0 %3647
    %3649 = vrot.lane.b32.xlu0 %v3443, 78
    %v3650 = vpop.permute.xlu0 %3649
    %vm3651 = vcmask 637952
    %v3652 = vsel %vm3651, %v3640, %v3642
    %v3653 = vsel %vm3651, %v3642, %v3644
    %v3654 = vsel %vm3651, %v3646, %v3648
    %v3655 = vsel %vm3651, %v3648, %v3650
    %v3660 = vrot.slane %v3440, 7
    %v3661 = vrot.slane %v3443, 7
    %v3662 = vsel %vm3448, %v3660, %v3661
    %3663 = vrot.lane.b32.xlu0 %v3449, 77
    %v3664 = vpop.permute.xlu0 %3663
    %3665 = vrot.lane.b32.xlu0 %v3450, 77
    %v3666 = vpop.permute.xlu0 %3665
    %3667 = vrot.lane.b32.xlu0 %v3660, 77
    %v3668 = vpop.permute.xlu0 %3667
    %3669 = vrot.lane.b32.xlu0 %v3452, 77
    %v3670 = vpop.permute.xlu0 %3669
    %3671 = vrot.lane.b32.xlu0 %v3454, 77
    %v3672 = vpop.permute.xlu0 %3671
    %3673 = vrot.lane.b32.xlu0 %v3662, 77
    %v3674 = vpop.permute.xlu0 %3673
    %vm3675 = vcmask 629760
    %v3676 = vsel %vm3675, %v3664, %v3666
    %v3677 = vsel %vm3675, %v3666, %v3668
    %v3678 = vsel %vm3675, %v3670, %v3672
    %v3679 = vsel %vm3675, %v3672, %v3674
    %v3684 = vrot.slane %v3440, 6
    %v3685 = vrot.slane %v3443, 6
    %v3686 = vsel %vm3470, %v3684, %v3685
    %3687 = vrot.lane.b32.xlu0 %v3471, 76
    %v3688 = vpop.permute.xlu0 %3687
    %3689 = vrot.lane.b32.xlu0 %v3472, 76
    %v3690 = vpop.permute.xlu0 %3689
    %3691 = vrot.lane.b32.xlu0 %v3684, 76
    %v3692 = vpop.permute.xlu0 %3691
    %3693 = vrot.lane.b32.xlu0 %v3474, 76
    %v3694 = vpop.permute.xlu0 %3693
    %3695 = vrot.lane.b32.xlu0 %v3476, 76
    %v3696 = vpop.permute.xlu0 %3695
    %3697 = vrot.lane.b32.xlu0 %v3686, 76
    %v3698 = vpop.permute.xlu0 %3697
    %vm3699 = vcmask 621568
    %v3700 = vsel %vm3699, %v3688, %v3690
    %v3701 = vsel %vm3699, %v3690, %v3692
    %v3702 = vsel %vm3699, %v3694, %v3696
    %v3703 = vsel %vm3699, %v3696, %v3698
    %v3708 = vrot.slane %v3440, 5
    %v3709 = vrot.slane %v3443, 5
    %v3710 = vsel %vm3492, %v3708, %v3709
    %3711 = vrot.lane.b32.xlu0 %v3493, 75
    %v3712 = vpop.permute.xlu0 %3711
    %3713 = vrot.lane.b32.xlu0 %v3494, 75
    %v3714 = vpop.permute.xlu0 %3713
    %3715 = vrot.lane.b32.xlu0 %v3708, 75
    %v3716 = vpop.permute.xlu0 %3715
    %3717 = vrot.lane.b32.xlu0 %v3496, 75
    %v3718 = vpop.permute.xlu0 %3717
    %3719 = vrot.lane.b32.xlu0 %v3498, 75
    %v3720 = vpop.permute.xlu0 %3719
    %3721 = vrot.lane.b32.xlu0 %v3710, 75
    %v3722 = vpop.permute.xlu0 %3721
    %vm3723 = vcmask 613376
    %v3724 = vsel %vm3723, %v3712, %v3714
    %v3725 = vsel %vm3723, %v3714, %v3716
    %v3726 = vsel %vm3723, %v3718, %v3720
    %v3727 = vsel %vm3723, %v3720, %v3722
    %3732 = vrot.lane.b32.xlu0 %v3517, 53
    %v3733 = vpop.permute.xlu0 %3732
    %3734 = vrot.lane.b32.xlu0 %v3518, 53
    %v3735 = vpop.permute.xlu0 %3734
    %3736 = vrot.lane.b32.xlu0 %v3519, 53
    %v3737 = vpop.permute.xlu0 %3736
    %3738 = vrot.lane.b32.xlu0 %v3521, 53
    %v3739 = vpop.permute.xlu0 %3738
    %3740 = vrot.lane.b32.xlu0 %v3523, 53
    %v3741 = vpop.permute.xlu0 %3740
    %3742 = vrot.lane.b32.xlu0 %v3525, 53
    %v3743 = vpop.permute.xlu0 %3742
    %vm3744 = vcmask 433152
    %v3745 = vsel %vm3744, %v3733, %v3735
    %v3746 = vsel %vm3744, %v3735, %v3737
    %v3747 = vsel %vm3744, %v3739, %v3741
    %v3748 = vsel %vm3744, %v3741, %v3743
    %3753 = vrot.lane.b32.xlu0 %v3548, 52
    %v3754 = vpop.permute.xlu0 %3753
    %3755 = vrot.lane.b32.xlu0 %v3549, 52
    %v3756 = vpop.permute.xlu0 %3755
    %3757 = vrot.lane.b32.xlu0 %v3550, 52
    %v3758 = vpop.permute.xlu0 %3757
    %3759 = vrot.lane.b32.xlu0 %v3552, 52
    %v3760 = vpop.permute.xlu0 %3759
    %3761 = vrot.lane.b32.xlu0 %v3554, 52
    %v3762 = vpop.permute.xlu0 %3761
    %3763 = vrot.lane.b32.xlu0 %v3556, 52
    %v3764 = vpop.permute.xlu0 %3763
    %vm3765 = vcmask 424960
    %v3766 = vsel %vm3765, %v3754, %v3756
    %v3767 = vsel %vm3765, %v3756, %v3758
    %v3768 = vsel %vm3765, %v3760, %v3762
    %v3769 = vsel %vm3765, %v3762, %v3764
    %3774 = vrot.lane.b32.xlu0 %v3579, 51
    %v3775 = vpop.permute.xlu0 %3774
    %3776 = vrot.lane.b32.xlu0 %v3580, 51
    %v3777 = vpop.permute.xlu0 %3776
    %3778 = vrot.lane.b32.xlu0 %v3581, 51
    %v3779 = vpop.permute.xlu0 %3778
    %3780 = vrot.lane.b32.xlu0 %v3583, 51
    %v3781 = vpop.permute.xlu0 %3780
    %3782 = vrot.lane.b32.xlu0 %v3585, 51
    %v3783 = vpop.permute.xlu0 %3782
    %3784 = vrot.lane.b32.xlu0 %v3587, 51
    %v3785 = vpop.permute.xlu0 %3784
    %vm3786 = vcmask 416768
    %v3787 = vsel %vm3786, %v3775, %v3777
    %v3788 = vsel %vm3786, %v3777, %v3779
    %v3789 = vsel %vm3786, %v3781, %v3783
    %v3790 = vsel %vm3786, %v3783, %v3785
    %3795 = vrot.lane.b32.xlu0 %v3609, 50
    %v3796 = vpop.permute.xlu0 %3795
    %3797 = vrot.lane.b32.xlu0 %v3610, 50
    %v3798 = vpop.permute.xlu0 %3797
    %3799 = vrot.lane.b32.xlu0 %v3611, 50
    %v3800 = vpop.permute.xlu0 %3799
    %3801 = vrot.lane.b32.xlu0 %v3613, 50
    %v3802 = vpop.permute.xlu0 %3801
    %3803 = vrot.lane.b32.xlu0 %v3615, 50
    %v3804 = vpop.permute.xlu0 %3803
    %3805 = vrot.lane.b32.xlu0 %v3617, 50
    %v3806 = vpop.permute.xlu0 %3805
    %vm3807 = vcmask 408576
    %v3808 = vsel %vm3807, %v3796, %v3798
    %v3809 = vsel %vm3807, %v3798, %v3800
    %v3810 = vsel %vm3807, %v3802, %v3804
    %v3811 = vsel %vm3807, %v3804, %v3806
    %v3816 = vsel %vm3448, %v3441, %v3464
    %v3817 = vsel %vm3448, %v3442, %v3458
    %v3818 = vsel %vm3470, %v3465, %v3486
    %v3819 = vsel %vm3470, %v3462, %v3480
    %v3820 = vsel %vm3492, %v3487, %v3508
    %v3821 = vsel %vm3492, %v3484, %v3502
    %v3822 = vsel %vm3516, %v3509, %v3539
    %v3823 = vsel %vm3516, %v3506, %v3540
    %v3824 = vsel %vm3547, %v3541, %v3570
    %v3825 = vsel %vm3547, %v3542, %v3571
    %v3826 = vsel %vm3578, %v3572, %v3601
    %v3827 = vsel %vm3578, %v3573, %v3602
    %v3828 = vsel %vm3400, %v3603, %v3631
    %v3829 = vsel %vm3400, %v3604, %v3632
    %v3830 = vsel %vm3448, %v3654, %v3676
    %v3831 = vsel %vm3448, %v3655, %v3677
    %v3832 = vsel %vm3470, %v3678, %v3700
    %v3833 = vsel %vm3470, %v3679, %v3701
    %v3834 = vsel %vm3492, %v3702, %v3724
    %v3835 = vsel %vm3492, %v3703, %v3725
    %v3836 = vsel %vm3516, %v3726, %v3745
    %v3837 = vsel %vm3516, %v3727, %v3746
    %v3838 = vsel %vm3547, %v3747, %v3766
    %v3839 = vsel %vm3547, %v3748, %v3767
    %v3840 = vsel %vm3578, %v3768, %v3787
    %v3841 = vsel %vm3578, %v3769, %v3788
    %v3842 = vsel %vm3400, %v3789, %v3808
    %v3843 = vsel %vm3400, %v3790, %v3809
    %v3844 = vld [vmem:[%s5] sm:$0xff]
    %v3846 = vcombine.high %v3844, %v3844
    %vm3847 = vcmask 130048
    %v3848 = vsel %vm3847, %v3846, 0
    %3850 = vmatprep.subr.mxu0 %v3841
    %3851 = vmatpush1.msra.mxu0 %v3840
    %3852 = vmatprep.subr.mxu0 %v3839
    %3853 = vmatpush1.msra.mxu0 %v3838
    %3854 = vmatprep.subr.mxu0 %v3837
    %3855 = vmatpush1.msra.mxu0 %v3836
    %3856 = vmatprep.subr.mxu0 %v3835
    %3857 = vmatpush1.msra.mxu0 %v3834
    %3858 = vmatprep.subr.mxu0 %v3833
    %3859 = vmatpush1.msra.mxu0 %v3832
    %3860 = vmatprep.subr.mxu0 %v3831
    %3861 = vmatpush1.msra.mxu0 %v3830
    %3862 = vmatprep.subr.mxu0 %v3653
    %3863 = vmatpush1.msra.mxu0 %v3652
    %3864 = vmatprep.subr.mxu0 %v3634
    %3865 = vmatpush1.msra.mxu0 %v3633
    %3866 = vmatprep.subr.mxu0 %v3829
    %3867 = vmatpush1.msra.mxu0 %v3828
    %3868 = vmatprep.subr.mxu0 %v3827
    %3869 = vmatpush1.msra.mxu0 %v3826
    %3870 = vmatprep.subr.mxu0 %v3825
    %3871 = vmatpush1.msra.mxu0 %v3824
    %3872 = vmatprep.subr.mxu0 %v3823
    %3873 = vmatpush1.msra.mxu0 %v3822
    %3874 = vmatprep.subr.mxu0 %v3821
    %3875 = vmatpush1.msra.mxu0 %v3820
    %3876 = vmatprep.subr.mxu0 %v3819
    %3877 = vmatpush1.msra.mxu0 %v3818
    %3878 = vmatprep.subr.mxu0 %v3817
    %3879 = vmatpush1.msra.mxu0 %v3816
    %3880 = vmatprep.subr.mxu0 %v3439
    %3881 = vmatpush1.msra.mxu0 %v3438
    %3882 = vmatprep.subr.mxu0 0.0
    %3883 = vmatpush2.msra.mxu0 0.0
    %3884 = vmatprep.subr.mxu0 0.0
    %3885 = vmatpush2.msra.mxu0 0.0
    %3886 = vmatprep.subr.mxu0 0.0
    %3887 = vmatpush2.msra.mxu0 0.0
    %3888 = vmatprep.subr.mxu0 0.0
    %3889 = vmatpush2.msra.mxu0 0.0
    %3890 = vmatprep.subr.mxu0 0.0
    %3891 = vmatpush2.msra.mxu0 0.0
    %3892 = vmatprep.subr.mxu0 0.0
    %3893 = vmatpush2.msra.mxu0 0.0
    %3894 = vmatprep.subr.mxu0 0.0
    %3895 = vmatpush2.msra.mxu0 0.0
    %3896 = vmatprep.subr.mxu0 0.0
    %3897 = vmatpush2.msra.mxu0 0.0
    %3898 = vmatprep.subr.mxu0 0.0
    %3899 = vmatpush2.msra.mxu0 0.0
    %3900 = vmatprep.subr.mxu0 0.0
    %3901 = vmatpush2.msra.mxu0 0.0
    %3902 = vmatprep.subr.mxu0 0.0
    %3903 = vmatpush2.msra.mxu0 0.0
    %3904 = vmatprep.subr.mxu0 0.0
    %3905 = vmatpush2.msra.mxu0 0.0
    %3906 = vmatprep.subr.mxu0 0.0
    %3907 = vmatpush2.msra.mxu0 0.0
    %3908 = vmatprep.subr.mxu0 0.0
    %3909 = vmatpush2.msra.mxu0 0.0
    %3910 = vmatprep.subr.mxu0 %v3811
    %3911 = vmatpush2.msra.mxu0 %v3810
    %3912 = vmatprep.subr.mxu0 %v3843
    %3913 = vmatpush2.msra.mxu0 %v3842
    %3914 = vmatprep.mubr.f32.mxu0 %v3848
    %3915 = vmatmul.mubr.f32.gmra.mxu0 %v3844
    %v3916 = vpop.f32.mrf.mxu0
    %v3917 = vadd.f32 0.0, %v3916
    %v3918 = vpop.f32.mrf.mxu0
    %v3919 = vadd.f32 0.0, %v3918
    %3920 = vdwg.mxu0
    %3923 = vrot.lane.b32.xlu0 %v3917, 127
    %v3924 = vpop.permute.xlu0 %3923
    %3925 = vrot.lane.b32.xlu0 %v3919, 127
    %v3926 = vpop.permute.xlu0 %3925
    %v3927 = vsel %vm3463, %v3924, %v3926
    %v3930 = vmax.f32 %v3917, %v3927
    %v3931 = vmax.f32 %v3919, %v3926
    %3934 = vrot.lane.b32.xlu0 %v3930, 103
    %v3935 = vpop.permute.xlu0 %3934
    %3936 = vrot.lane.b32.xlu0 %v3931, 103
    %v3937 = vpop.permute.xlu0 %3936
    %v3938 = vsel %vm3538, %v3935, %v3937
    %v3941 = vmax.f32 %v3930, %v3938
    %v3942 = vmax.f32 %v3931, %v3937
    %v3943 = vld [vmem:[%s6] sm:$0xf]
    %3945 = vset.pattern.permute.xlu0 0
    %3946 = vperm.xlu0 %3945, %v3943
    %v3947 = vpop.permute.xlu0 %3946
    %v3949 = vadd.f32 %v3941, %v3947
    %v3950 = vadd.f32 %v3942, %v3947
    %v3951 = vmax.f32 %v3949, 0.0
    %v3952 = vmax.f32 %v3950, 0.0
    %v3955 = vrot.slane %v3951, 4
    %v3956 = vrot.slane %v3952, 4
    %3957 = vrot.lane.b32.xlu0 %v3955, 126
    %v3958 = vpop.permute.xlu0 %3957
    %3959 = vrot.lane.b32.xlu0 %v3956, 126
    %v3960 = vpop.permute.xlu0 %3959
    %v3961 = vsel %vm3485, %v3958, %v3960
    %3964 = vrot.lane.b32.xlu0 %v3951, 78
    %v3965 = vpop.permute.xlu0 %3964
    %3966 = vrot.lane.b32.xlu0 %v3952, 78
    %v3967 = vpop.permute.xlu0 %3966
    %v3968 = vsel %vm3651, %v3965, %v3967
    %3971 = vrot.lane.b32.xlu0 %v3955, 76
    %v3972 = vpop.permute.xlu0 %3971
    %3973 = vrot.lane.b32.xlu0 %v3956, 76
    %v3974 = vpop.permute.xlu0 %3973
    %v3975 = vsel %vm3699, %v3972, %v3974
    %v3978 = vsel %vm3516, %v3951, %v3961
    %v3979 = vsel %vm3516, %v3952, %v3960
    %v3980 = vsel %vm3516, %v3968, %v3975
    %v3981 = vsel %vm3516, %v3967, %v3974
    %v3982 = vld [vmem:[%s7] sm:$0x3]
    %v3984 = vsel %vm3847, %v3982, 0
    %3986 = vmatprep.subr.mxu0 0.0
    %3987 = vmatpush1.msra.mxu0 0.0
    %3988 = vmatprep.subr.mxu0 0.0
    %3989 = vmatpush1.msra.mxu0 0.0
    %3990 = vmatprep.subr.mxu0 0.0
    %3991 = vmatpush1.msra.mxu0 0.0
    %3992 = vmatprep.subr.mxu0 0.0
    %3993 = vmatpush1.msra.mxu0 0.0
    %3994 = vmatprep.subr.mxu0 0.0
    %3995 = vmatpush1.msra.mxu0 0.0
    %3996 = vmatprep.subr.mxu0 0.0
    %3997 = vmatpush1.msra.mxu0 0.0
    %3998 = vmatprep.subr.mxu0 0.0
    %3999 = vmatpush1.msra.mxu0 0.0
    %4000 = vmatprep.subr.mxu0 0.0
    %4001 = vmatpush1.msra.mxu0 0.0
    %4002 = vmatprep.subr.mxu0 0.0
    %4003 = vmatpush1.msra.mxu0 0.0
    %4004 = vmatprep.subr.mxu0 0.0
    %4005 = vmatpush1.msra.mxu0 0.0
    %4006 = vmatprep.subr.mxu0 0.0
    %4007 = vmatpush1.msra.mxu0 0.0
    %4008 = vmatprep.subr.mxu0 0.0
    %4009 = vmatpush1.msra.mxu0 0.0
    %4010 = vmatprep.subr.mxu0 0.0
    %4011 = vmatpush1.msra.mxu0 0.0
    %4012 = vmatprep.subr.mxu0 0.0
    %4013 = vmatpush1.msra.mxu0 0.0
    %4014 = vmatprep.subr.mxu0 %v3981
    %4015 = vmatpush1.msra.mxu0 %v3980
    %4016 = vmatprep.subr.mxu0 %v3979
    %4017 = vmatpush1.msra.mxu0 %v3978
    %4018 = vmatprep.subr.mxu0 0.0
    %4019 = vmatpush2.msra.mxu0 0.0
    %4020 = vmatprep.subr.mxu0 0.0
    %4021 = vmatpush2.msra.mxu0 0.0
    %4022 = vmatprep.subr.mxu0 0.0
    %4023 = vmatpush2.msra.mxu0 0.0
    %4024 = vmatprep.subr.mxu0 0.0
    %4025 = vmatpush2.msra.mxu0 0.0
    %4026 = vmatprep.subr.mxu0 0.0
    %4027 = vmatpush2.msra.mxu0 0.0
    %4028 = vmatprep.subr.mxu0 0.0
    %4029 = vmatpush2.msra.mxu0 0.0
    %4030 = vmatprep.subr.mxu0 0.0
    %4031 = vmatpush2.msra.mxu0 0.0
    %4032 = vmatprep.subr.mxu0 0.0
    %4033 = vmatpush2.msra.mxu0 0.0
    %4034 = vmatprep.subr.mxu0 0.0
    %4035 = vmatpush2.msra.mxu0 0.0
    %4036 = vmatprep.subr.mxu0 0.0
    %4037 = vmatpush2.msra.mxu0 0.0
    %4038 = vmatprep.subr.mxu0 0.0
    %4039 = vmatpush2.msra.mxu0 0.0
    %4040 = vmatprep.subr.mxu0 0.0
    %4041 = vmatpush2.msra.mxu0 0.0
    %4042 = vmatprep.subr.mxu0 0.0
    %4043 = vmatpush2.msra.mxu0 0.0
    %4044 = vmatprep.subr.mxu0 0.0
    %4045 = vmatpush2.msra.mxu0 0.0
    %4046 = vmatprep.subr.mxu0 0.0
    %4047 = vmatpush2.msra.mxu0 0.0
    %4048 = vmatprep.subr.mxu0 0.0
    %4049 = vmatpush2.msra.mxu0 0.0
    %4050 = vmatprep.mubr.f32.mxu0 0.0
    %4051 = vmatmul.mubr.f32.gmra.mxu0 %v3984
    %v4052 = vpop.f32.mrf.mxu0
    %v4053 = vadd.f32 0.0, %v4052
    %v4054 = vpop.f32.mrf.mxu0
    %v4055 = vadd.f32 0.0, %v4054
    %4056 = vdwg.mxu0
    %4058 = vrot.lane.b32.xlu0 %v4053, 126
    %v4059 = vpop.permute.xlu0 %4058
    %v4061 = vmax.f32 %v4053, %v4059
    %4063 = vrot.lane.b32.xlu0 %v4055, 126
    %v4064 = vpop.permute.xlu0 %4063
    %v4065 = vsel %vm3485, %v4059, %v4064
    %v4068 = vmax.f32 %v4053, %v4065
    %v4069 = vmax.f32 %v4055, %v4064
    %4072 = vrot.lane.b32.xlu0 %v4068, 78
    %v4073 = vpop.permute.xlu0 %4072
    %4074 = vrot.lane.b32.xlu0 %v4069, 78
    %v4075 = vpop.permute.xlu0 %4074
    %v4076 = vsel %vm3651, %v4073, %v4075
    %v4078 = vmax.f32 %v4061, %v4076
    %v4079 = vld [vmem:[%s8] sm:$0x3]
    %4081 = vset.pattern.permute.xlu0 0
    %4082 = vperm.xlu0 %4081, %v4079
    %v4083 = vpop.permute.xlu0 %4082
    %v4085 = vadd.f32 %v4078, %v4083
    %v4086 = vmax.f32 %v4085, 0.0
    %v4087 = vld [vmem:[%s9] sm:$0xff]
    %v4088 = vld [vmem:[%s9 + $0x8] sm:$0xff]
    %v4089 = vld [vmem:[%s9 + $0x10] sm:$0xff]
    %v4090 = vld [vmem:[%s9 + $0x18] sm:$0xff]
    %v4091 = vld [vmem:[%s9 + $0x20] sm:$0xff]
    %v4092 = vld [vmem:[%s9 + $0x28] sm:$0xff]
    %v4093 = vld [vmem:[%s9 + $0x30] sm:$0xff]
    %v4094 = vld [vmem:[%s9 + $0x38] sm:$0xff]
    %v4095 = vld [vmem:[%s9 + $0x40] sm:$0xff]
    %v4096 = vld [vmem:[%s9 + $0x48] sm:$0xff]
    %v4097 = vld [vmem:[%s9 + $0x50] sm:$0xff]
    %v4098 = vld [vmem:[%s9 + $0x58] sm:$0xff]
    %v4099 = vld [vmem:[%s9 + $0x60] sm:$0xff]
    %v4100 = vld [vmem:[%s9 + $0x68] sm:$0xff]
    %v4101 = vld [vmem:[%s9 + $0x70] sm:$0x1f]
    %v4102 = vld [vmem:[%s10] sm:$0xff]
    %v4103 = vld [vmem:[%s10 + $0x8] sm:$0xff]
    %v4104 = vld [vmem:[%s10 + $0x10] sm:$0xff]
    %v4105 = vld [vmem:[%s10 + $0x18] sm:$0xff]
    %v4106 = vld [vmem:[%s10 + $0x20] sm:$0xff]
    %v4107 = vld [vmem:[%s10 + $0x28] sm:$0xff]
    %v4108 = vld [vmem:[%s10 + $0x30] sm:$0xff]
    %v4109 = vld [vmem:[%s10 + $0x38] sm:$0xff]
    %v4110 = vld [vmem:[%s10 + $0x40] sm:$0xff]
    %v4111 = vld [vmem:[%s10 + $0x48] sm:$0xff]
    %v4112 = vld [vmem:[%s10 + $0x50] sm:$0xff]
    %v4113 = vld [vmem:[%s10 + $0x58] sm:$0xff]
    %v4114 = vld [vmem:[%s10 + $0x60] sm:$0xff]
    %v4115 = vld [vmem:[%s10 + $0x68] sm:$0xff]
    %v4116 = vld [vmem:[%s10 + $0x70] sm:$0x1f]
    %v4118 = vrot.slane %v4086, 1
    %vm4119 = vcmask 957440
    %v4120 = vsel %vm4119, %v4118, 0
    %v4123 = vsel %vm3547, %v4116, 0
    %4125 = vmatprep.subr.mxu0 0.0
    %4126 = vmatpush1.msra.mxu0 0.0
    %4127 = vmatprep.subr.mxu0 0.0
    %4128 = vmatpush1.msra.mxu0 %v4123
    %4129 = vmatprep.subr.mxu0 0.0
    %4130 = vmatpush1.msra.mxu0 %v4115
    %4131 = vmatprep.subr.mxu0 0.0
    %4132 = vmatpush1.msra.mxu0 %v4114
    %4133 = vmatprep.subr.mxu0 0.0
    %4134 = vmatpush1.msra.mxu0 %v4113
    %4135 = vmatprep.subr.mxu0 0.0
    %4136 = vmatpush1.msra.mxu0 %v4112
    %4137 = vmatprep.subr.mxu0 0.0
    %4138 = vmatpush1.msra.mxu0 %v4111
    %4139 = vmatprep.subr.mxu0 0.0
    %4140 = vmatpush1.msra.mxu0 %v4110
    %4141 = vmatprep.subr.mxu0 0.0
    %4142 = vmatpush1.msra.mxu0 %v4109
    %4143 = vmatprep.subr.mxu0 0.0
    %4144 = vmatpush1.msra.mxu0 %v4108
    %4145 = vmatprep.subr.mxu0 0.0
    %4146 = vmatpush1.msra.mxu0 %v4107
    %4147 = vmatprep.subr.mxu0 0.0
    %4148 = vmatpush1.msra.mxu0 %v4106
    %4149 = vmatprep.subr.mxu0 0.0
    %4150 = vmatpush1.msra.mxu0 %v4105
    %4151 = vmatprep.subr.mxu0 0.0
    %4152 = vmatpush1.msra.mxu0 %v4104
    %4153 = vmatprep.subr.mxu0 0.0
    %4154 = vmatpush1.msra.mxu0 %v4103
    %4155 = vmatprep.subr.mxu0 0.0
    %4156 = vmatpush1.msra.mxu0 %v4102
    %4157 = vmatprep.subr.mxu0 0.0
    %4158 = vmatpush2.msra.mxu0 0.0
    %4159 = vmatprep.subr.mxu0 0.0
    %4160 = vmatpush2.msra.mxu0 0.0
    %4161 = vmatprep.subr.mxu0 0.0
    %4162 = vmatpush2.msra.mxu0 0.0
    %4163 = vmatprep.subr.mxu0 0.0
    %4164 = vmatpush2.msra.mxu0 0.0
    %4165 = vmatprep.subr.mxu0 0.0
    %4166 = vmatpush2.msra.mxu0 0.0
    %4167 = vmatprep.subr.mxu0 0.0
    %4168 = vmatpush2.msra.mxu0 0.0
    %4169 = vmatprep.subr.mxu0 0.0
    %4170 = vmatpush2.msra.mxu0 0.0
    %4171 = vmatprep.subr.mxu0 0.0
    %4172 = vmatpush2.msra.mxu0 0.0
    %4173 = vmatprep.subr.mxu0 0.0
    %4174 = vmatpush2.msra.mxu0 0.0
    %4175 = vmatprep.subr.mxu0 0.0
    %4176 = vmatpush2.msra.mxu0 0.0
    %4177 = vmatprep.subr.mxu0 0.0
    %4178 = vmatpush2.msra.mxu0 0.0
    %4179 = vmatprep.subr.mxu0 0.0
    %4180 = vmatpush2.msra.mxu0 0.0
    %4181 = vmatprep.subr.mxu0 0.0
    %4182 = vmatpush2.msra.mxu0 0.0
    %4183 = vmatprep.subr.mxu0 0.0
    %4184 = vmatpush2.msra.mxu0 0.0
    %4185 = vmatprep.subr.mxu0 0.0
    %4186 = vmatpush2.msra.mxu0 0.0
    %4187 = vmatprep.subr.mxu0 0.0
    %4188 = vmatpush2.msra.mxu0 0.0
    %4189 = vmatprep.mubr.f32.mxu0 0.0
    %4190 = vmatmul.mubr.f32.gmra.mxu0 %v4120
    %v4191 = vpop.f32.mrf.mxu0
    %v4192 = vadd.f32 0.0, %v4191
    %v4193 = vpop.f32.mrf.mxu0
    %4194 = vdwg.mxu0
    %v4195 = vsel %vm4119, %v4086, 0
    %v4198 = vsel %vm3547, %v4101, 0
    %4200 = vmatprep.subr.mxu0 0.0
    %4201 = vmatpush1.msra.mxu0 0.0
    %4202 = vmatprep.subr.mxu0 0.0
    %4203 = vmatpush1.msra.mxu0 %v4198
    %4204 = vmatprep.subr.mxu0 0.0
    %4205 = vmatpush1.msra.mxu0 %v4100
    %4206 = vmatprep.subr.mxu0 0.0
    %4207 = vmatpush1.msra.mxu0 %v4099
    %4208 = vmatprep.subr.mxu0 0.0
    %4209 = vmatpush1.msra.mxu0 %v4098
    %4210 = vmatprep.subr.mxu0 0.0
    %4211 = vmatpush1.msra.mxu0 %v4097
    %4212 = vmatprep.subr.mxu0 0.0
    %4213 = vmatpush1.msra.mxu0 %v4096
    %4214 = vmatprep.subr.mxu0 0.0
    %4215 = vmatpush1.msra.mxu0 %v4095
    %4216 = vmatprep.subr.mxu0 0.0
    %4217 = vmatpush1.msra.mxu0 %v4094
    %4218 = vmatprep.subr.mxu0 0.0
    %4219 = vmatpush1.msra.mxu0 %v4093
    %4220 = vmatprep.subr.mxu0 0.0
    %4221 = vmatpush1.msra.mxu0 %v4092
    %4222 = vmatprep.subr.mxu0 0.0
    %4223 = vmatpush1.msra.mxu0 %v4091
    %4224 = vmatprep.subr.mxu0 0.0
    %4225 = vmatpush1.msra.mxu0 %v4090
    %4226 = vmatprep.subr.mxu0 0.0
    %4227 = vmatpush1.msra.mxu0 %v4089
    %4228 = vmatprep.subr.mxu0 0.0
    %4229 = vmatpush1.msra.mxu0 %v4088
    %4230 = vmatprep.subr.mxu0 0.0
    %4231 = vmatpush1.msra.mxu0 %v4087
    %4232 = vmatprep.subr.mxu0 0.0
    %4233 = vmatpush2.msra.mxu0 0.0
    %4234 = vmatprep.subr.mxu0 0.0
    %4235 = vmatpush2.msra.mxu0 0.0
    %4236 = vmatprep.subr.mxu0 0.0
    %4237 = vmatpush2.msra.mxu0 0.0
    %4238 = vmatprep.subr.mxu0 0.0
    %4239 = vmatpush2.msra.mxu0 0.0
    %4240 = vmatprep.subr.mxu0 0.0
    %4241 = vmatpush2.msra.mxu0 0.0
    %4242 = vmatprep.subr.mxu0 0.0
    %4243 = vmatpush2.msra.mxu0 0.0
    %4244 = vmatprep.subr.mxu0 0.0
    %4245 = vmatpush2.msra.mxu0 0.0
    %4246 = vmatprep.subr.mxu0 0.0
    %4247 = vmatpush2.msra.mxu0 0.0
    %4248 = vmatprep.subr.mxu0 0.0
    %4249 = vmatpush2.msra.mxu0 0.0
    %4250 = vmatprep.subr.mxu0 0.0
    %4251 = vmatpush2.msra.mxu0 0.0
    %4252 = vmatprep.subr.mxu0 0.0
    %4253 = vmatpush2.msra.mxu0 0.0
    %4254 = vmatprep.subr.mxu0 0.0
    %4255 = vmatpush2.msra.mxu0 0.0
    %4256 = vmatprep.subr.mxu0 0.0
    %4257 = vmatpush2.msra.mxu0 0.0
    %4258 = vmatprep.subr.mxu0 0.0
    %4259 = vmatpush2.msra.mxu0 0.0
    %4260 = vmatprep.subr.mxu0 0.0
    %4261 = vmatpush2.msra.mxu0 0.0
    %4262 = vmatprep.subr.mxu0 0.0
    %4263 = vmatpush2.msra.mxu0 0.0
    %4264 = vmatprep.mubr.f32.mxu0 0.0
    %4265 = vmatmul.mubr.f32.gmra.mxu0 %v4195
    %v4266 = vpop.f32.mrf.mxu0
    %v4267 = vadd.f32 %v4192, %v4266
    %v4268 = vpop.f32.mrf.mxu0
    %4269 = vdwg.mxu0
    %v4270 = vld [vmem:[%s11] sm:$0x1]
    %v4271 = vadd.f32 %v4267, %v4270
    %v4272 = vmax.f32 %v4271, 0.0
    %v4273 = vld [vmem:[%s12] sm:$0xff]
    %v4274 = vld [vmem:[%s12 + $0x8] sm:$0xff]
    %v4275 = vld [vmem:[%s12 + $0x10] sm:$0xf]
    %v4276 = vld [vmem:[#allocation3] sm:$0x1]
    %vm4277 = vcmask 162816
    %v4279 = vsel %vm4277, %v4272, 0
    %v4282 = vsel %vm3516, %v4275, 0
    %4284 = vmatprep.subr.mxu0 0.0
    %4285 = vmatpush1.msra.mxu0 0.0
    %4286 = vmatprep.subr.mxu0 0.0
    %4287 = vmatpush1.msra.mxu0 0.0
    %4288 = vmatprep.subr.mxu0 0.0
    %4289 = vmatpush1.msra.mxu0 0.0
    %4290 = vmatprep.subr.mxu0 0.0
    %4291 = vmatpush1.msra.mxu0 0.0
    %4292 = vmatprep.subr.mxu0 0.0
    %4293 = vmatpush1.msra.mxu0 0.0
    %4294 = vmatprep.subr.mxu0 0.0
    %4295 = vmatpush1.msra.mxu0 0.0
    %4296 = vmatprep.subr.mxu0 0.0
    %4297 = vmatpush1.msra.mxu0 0.0
    %4298 = vmatprep.subr.mxu0 0.0
    %4299 = vmatpush1.msra.mxu0 0.0
    %4300 = vmatprep.subr.mxu0 0.0
    %4301 = vmatpush1.msra.mxu0 0.0
    %4302 = vmatprep.subr.mxu0 0.0
    %4303 = vmatpush1.msra.mxu0 0.0
    %4304 = vmatprep.subr.mxu0 0.0
    %4305 = vmatpush1.msra.mxu0 0.0
    %4306 = vmatprep.subr.mxu0 0.0
    %4307 = vmatpush1.msra.mxu0 0.0
    %4308 = vmatprep.subr.mxu0 0.0
    %4309 = vmatpush1.msra.mxu0 0.0
    %4310 = vmatprep.subr.mxu0 0.0
    %4311 = vmatpush1.msra.mxu0 %v4282
    %4312 = vmatprep.subr.mxu0 0.0
    %4313 = vmatpush1.msra.mxu0 %v4274
    %4314 = vmatprep.subr.mxu0 0.0
    %4315 = vmatpush1.msra.mxu0 %v4273
    %4316 = vmatprep.subr.mxu0 0.0
    %4317 = vmatpush2.msra.mxu0 0.0
    %4318 = vmatprep.subr.mxu0 0.0
    %4319 = vmatpush2.msra.mxu0 0.0
    %4320 = vmatprep.subr.mxu0 0.0
    %4321 = vmatpush2.msra.mxu0 0.0
    %4322 = vmatprep.subr.mxu0 0.0
    %4323 = vmatpush2.msra.mxu0 0.0
    %4324 = vmatprep.subr.mxu0 0.0
    %4325 = vmatpush2.msra.mxu0 0.0
    %4326 = vmatprep.subr.mxu0 0.0
    %4327 = vmatpush2.msra.mxu0 0.0
    %4328 = vmatprep.subr.mxu0 0.0
    %4329 = vmatpush2.msra.mxu0 0.0
    %4330 = vmatprep.subr.mxu0 0.0
    %4331 = vmatpush2.msra.mxu0 0.0
    %4332 = vmatprep.subr.mxu0 0.0
    %4333 = vmatpush2.msra.mxu0 0.0
    %4334 = vmatprep.subr.mxu0 0.0
    %4335 = vmatpush2.msra.mxu0 0.0
    %4336 = vmatprep.subr.mxu0 0.0
    %4337 = vmatpush2.msra.mxu0 0.0
    %4338 = vmatprep.subr.mxu0 0.0
    %4339 = vmatpush2.msra.mxu0 0.0
    %4340 = vmatprep.subr.mxu0 0.0
    %4341 = vmatpush2.msra.mxu0 0.0
    %4342 = vmatprep.subr.mxu0 0.0
    %4343 = vmatpush2.msra.mxu0 0.0
    %4344 = vmatprep.subr.mxu0 0.0
    %4345 = vmatpush2.msra.mxu0 0.0
    %4346 = vmatprep.subr.mxu0 0.0
    %4347 = vmatpush2.msra.mxu0 0.0
    %4348 = vmatprep.mubr.f32.mxu0 0.0
    %4349 = vmatmul.mubr.f32.gmra.mxu0 %v4279
    %v4350 = vpop.f32.mrf.mxu0
    %v4351 = vadd.f32 %v4276, %v4350
    %v4352 = vpop.f32.mrf.mxu0
    %4353 = vdwg.mxu0
    %vm4354 = vcmask 0
    %4355 = vst.msk [vmem:[#allocation4] sm:$0x1] %vm4354, %v4351
    // Predicated region
    $region58: #{net_forward.1} parent=1 // pred_check
      _
    $region59: #{net_forward.1} parent=1 // pred_check_branch
      %4357 = sbr.rel (0) target = $region61
    $region60: #{net_forward.1} parent=1 // pred_region
      %s4359 = ssub.s32 16, 16
      %4360 = vsyncadd [#allocation5], %s4359
      %s4362 = sshll.u32 [#allocation4], 4
      %s4363 = int_to_ptr.vmem [resolvable:$true] %s4362
      %4365 = dma.vmem_to_hbm [thread:$0]  %s4363, 16, %s14, [#allocation5]
    $region61: #{net_forward.1} parent=1 // pred_fallthru
      _
    // Predicated region
    $region62: #{net_forward.1} parent=1 // pred_check
      _
    $region63: #{net_forward.1} parent=1 // pred_check_branch
      %4367 = sbr.rel (0) target = $region65
    $region64: #{net_forward.1} parent=1 // pred_region
      %4368 = dma.done [#allocation5], 16
    $region65: #{net_forward.1} parent=1 // pred_fallthru
      _
    %4369 = vsyncpa [#allocation5], 1

</llo_original>
